<compile_context>
chip_gen: v5e
topology: v5e:2x2
jax: 0.10.0
libtpu: 0.0.40
codegen_flags: <defaults>
</compile_context>

<pallas_src>
import functools

import jax
import jax.numpy as jnp
from jax.experimental import pallas as pl
from jax.experimental.pallas import tpu as pltpu


# ----------------------------------------------------------------------------
# Pallas kernel: one grid step == a tile of whole images
# ----------------------------------------------------------------------------
def inception_a_kernel(x_ref, w1_ref, w3_ref, w42_ref, w43_ref, aux_ref,
                       o_ref, *, H, W):
    M, C = o_ref.shape                       # M = images_per_block * H * W
    C4, C8, C16 = C // 4, C // 8, C // 16

    # ---- per-image (h, w) coordinates and boundary masks (computed once) ----
    r = jax.lax.broadcasted_iota(jnp.int32, (M, 1), 0)
    if W & (W - 1) == 0:                     # power-of-two fast path
        w_pos = jnp.bitwise_and(r, W - 1)
        hq = jax.lax.shift_right_logical(r, W.bit_length() - 1)
    else:
        w_pos = r % W
        hq = r // W
    h_pos = jnp.bitwise_and(hq, H - 1) if H & (H - 1) == 0 else hq % H

    h_ok = {-1: h_pos > 0, 0: None, 1: h_pos < H - 1}
    w_ok = {-1: w_pos > 0, 0: None, 1: w_pos < W - 1}
    masks = {}
    for dh in (-1, 0, 1):
        for dw in (-1, 0, 1):
            if dh == 0 and dw == 0:
                continue
            ms = [m for m in (h_ok[dh], w_ok[dw]) if m is not None]
            masks[(dh, dw)] = ms[0] if len(ms) == 1 else jnp.logical_and(*ms)

    def tap(v, dh, dw):
        # v viewed as (n_img, H, W, :) shifted by (dh, dw); zero outside the
        # image.  pltpu.roll wraps, but every wrapped row is a row the
        # boundary mask zeroes, so semantics match a zero-padded shift.
        s = dh * W + dw
        if s == 0:
            return v
        rolled = pltpu.roll(v, shift=(-s) % M, axis=0)   # y[r] = v[(r+s) % M]
        return jnp.where(masks[(dh, dw)], rolled, 0.0)

    def conv3x3(v, w_taps):
        # 3x3 "same" conv as 9 accumulated MXU dots (no im2col lane concat).
        # w_taps: (9, Cin, Cout) with tap index k = (dh+1)*3 + (dw+1).
        acc = jnp.dot(v, w_taps[4], preferred_element_type=jnp.float32)  # center
        k = 0
        for dh in (-1, 0, 1):
            for dw in (-1, 0, 1):
                if not (dh == 0 and dw == 0):
                    acc = acc + jnp.dot(tap(v, dh, dw), w_taps[k],
                                        preferred_element_type=jnp.float32)
                k += 1
        return acc

    bias_mid = aux_ref[0:1, :]     # branch3_1 / branch4_1 biases, 0 elsewhere
    bias_out = aux_ref[1:2, :]     # output-channel-aligned biases
    bias_42 = aux_ref[2:3, 0:C8]   # branch4_2 bias
    m_b2 = aux_ref[3:4, :]         # 1.0 on output lanes [0, C4)
    m_b1 = aux_ref[4:5, :]         # 1.0 on output lanes [3*C4, 4*C4)

    # ---- all four 1x1 convolutions: one fused bf16 MXU dot ------------------
    y1 = jnp.dot(x_ref[...], w1_ref[...],
                 preferred_element_type=jnp.float32) + bias_mid

    # branch1: 3x3 avg-pool (count_include_pad; 1/9 folded into the packed
    # weight), applied after its 1x1 conv (they commute), separable sums.
    pw = y1 + tap(y1, 0, -1) + tap(y1, 0, 1)
    pooled = pw + tap(pw, -1, 0) + tap(pw, 1, 0)

    # branch3: 1x1 -> 3x3 (weights pre-embedded into output cols [C4, 2*C4)).
    b3 = conv3x3(y1[:, C4:C4 + C8], w3_ref)

    # branch4: 1x1 -> 3x3 -> 3x3 (last weights embedded into [2*C4, 3*C4)).
    b4_mid = conv3x3(y1[:, C4 + C8:C4 + C8 + C16], w42_ref) + bias_42
    b4 = conv3x3(b4_mid, w43_ref)

    # ---- assemble [branch2 | branch3 | branch4 | branch1], single store -----
    o_ref[...] = y1 * m_b2 + pooled * m_b1 + b3 + b4 + bias_out


# ----------------------------------------------------------------------------
# Parameters (deterministic, torch-layout OIHW) and weight packing
# ----------------------------------------------------------------------------
def make_params(key, cin):
    c4, c8, c16 = cin // 4, cin // 8, cin // 16
    defs = {
        "branch1_1x1":   (c4,  cin, 1, 1),
        "branch2_1x1":   (c4,  cin, 1, 1),
        "branch3_1_1x1": (c8,  cin, 1, 1),
        "branch3_2_5x5": (c4,  c8,  3, 3),   # named 5x5 in the module, actually 3x3 pad 1
        "branch4_1_1x1": (c16, cin, 1, 1),
        "branch4_2_3x3": (c8,  c16, 3, 3),
        "branch4_3_3x3": (c4,  c8,  3, 3),
    }
    params = {}
    for i, (name, shape) in enumerate(defs.items()):
        kw, kb = jax.random.split(jax.random.fold_in(key, i))
        fan_in = shape[1] * shape[2] * shape[3]
        params[name] = {
            "w": jax.random.normal(kw, shape, jnp.float32) / jnp.sqrt(fan_in),
            "b": 0.1 * jax.random.normal(kb, (shape[0],), jnp.float32),
        }
    return params


def _w1x1_t(w):      # (Cout, Cin, 1, 1) -> (Cin, Cout)
    return jnp.transpose(w[:, :, 0, 0])


def _w3x3_taps(w):   # (Cout, Cin, 3, 3) -> (9, Cin, Cout); tap k=(dh+1)*3+(dw+1)
    return jnp.transpose(w, (2, 3, 1, 0)).reshape(9, w.shape[1], w.shape[0])


@jax.jit
def inception_a(x_nchw, params):
    p = params
    B, Cin, H, W = x_nchw.shape
    c4, c8, c16 = Cin // 4, Cin // 8, Cin // 16
    c_out = 4 * c4
    HW = H * W

    # NCHW -> NHWC -> flat (B*H*W, Cin); bf16 halves the dominant x DMA bytes.
    x2d = jnp.transpose(x_nchw, (0, 2, 3, 1)).reshape(B * HW, Cin)
    x2d = x2d.astype(jnp.bfloat16)

    # Packed 1x1 weight: columns laid out to match the output channel map,
    # zero-padded to a full c_out lanes, pool's 1/9 folded into branch1 cols.
    pad_cols = 3 * c4 - (c4 + c8 + c16)
    w1 = jnp.concatenate([
        _w1x1_t(p["branch2_1x1"]["w"]),
        _w1x1_t(p["branch3_1_1x1"]["w"]),
        _w1x1_t(p["branch4_1_1x1"]["w"]),
        jnp.zeros((Cin, pad_cols), jnp.float32),
        _w1x1_t(p["branch1_1x1"]["w"]) * (1.0 / 9.0),
    ], axis=1).astype(jnp.bfloat16)

    # 3x3 weights as 9 per-tap (Cin, Cout) matrices (f32); the two convs that
    # feed the output directly are zero-embedded into their output columns.
    w3 = jnp.pad(_w3x3_taps(p["branch3_2_5x5"]["w"]),
                 ((0, 0), (0, 0), (c4, 2 * c4)))           # (9, c8, c_out)
    w42 = _w3x3_taps(p["branch4_2_3x3"]["w"])              # (9, c16, c8)
    w43 = jnp.pad(_w3x3_taps(p["branch4_3_3x3"]["w"]),
                  ((0, 0), (0, 0), (2 * c4, c4)))          # (9, c8, c_out)

    # Aux rows: [bias_mid, bias_out, bias4_2(padded), branch2 mask, branch1 mask]
    bias_mid = jnp.zeros((c_out,), jnp.float32)
    bias_mid = bias_mid.at[c4:c4 + c8].set(p["branch3_1_1x1"]["b"])
    bias_mid = bias_mid.at[c4 + c8:c4 + c8 + c16].set(p["branch4_1_1x1"]["b"])
    bias_out = jnp.concatenate([
        p["branch2_1x1"]["b"], p["branch3_2_5x5"]["b"],
        p["branch4_3_3x3"]["b"], p["branch1_1x1"]["b"]])
    bias_42 = jnp.zeros((c_out,), jnp.float32).at[0:c8].set(p["branch4_2_3x3"]["b"])
    lane = jnp.arange(c_out)
    m_b2 = (lane < c4).astype(jnp.float32)
    m_b1 = (lane >= 3 * c4).astype(jnp.float32)
    aux = jnp.stack([bias_mid, bias_out, bias_42, m_b2, m_b1], axis=0)

    # Grid: tiles of whole images over the flat row axis, marked "parallel"
    # (v7x megacore).  Aim for ~256-row tiles but keep >=2 blocks when B >= 2.
    ipb = max(1, 256 // HW)
    if B >= 2:
        ipb = min(ipb, B // 2)
    while B % ipb:
        ipb -= 1
    rows = ipb * HW
    grid = (B // ipb,)

    out2d = pl.pallas_call(
        functools.partial(inception_a_kernel, H=H, W=W),
        out_shape=jax.ShapeDtypeStruct((B * HW, c_out), jnp.float32),
        grid=grid,
        in_specs=[
            pl.BlockSpec((rows, Cin), lambda i: (i, 0)),        # x: pipelined
            pl.BlockSpec((Cin, c_out), lambda i: (0, 0)),       # weights stay
            pl.BlockSpec((9, c8, c_out), lambda i: (0, 0, 0)),  #  VMEM-resident
            pl.BlockSpec((9, c16, c8), lambda i: (0, 0, 0)),
            pl.BlockSpec((9, c8, c_out), lambda i: (0, 0, 0)),
            pl.BlockSpec((5, c_out), lambda i: (0, 0)),
        ],
        out_specs=pl.BlockSpec((rows, c_out), lambda i: (i, 0)),
        compiler_params=pltpu.CompilerParams(
            dimension_semantics=("parallel",),
            vmem_limit_bytes=32 * 1024 * 1024,
        ),
    )(x2d, w1, w3, w42, w43, aux)

    return jnp.transpose(out2d.reshape(B, H, W, c_out), (0, 3, 1, 2))


# ----------------------------------------------------------------------------
# Pure-JAX reference (NCHW, PyTorch semantics) for the correctness check
# ----------------------------------------------------------------------------
def _conv_ref(x, w, b, pad):
    y = jax.lax.conv_general_dilated(
        x, w, (1, 1), [(pad, pad), (pad, pad)],
        dimension_numbers=("NCHW", "OIHW", "NCHW"),
        precision=jax.lax.Precision.HIGHEST)
    return y + b.reshape(1, -1, 1, 1)


def reference(x, params):
    p = params
    pooled = jax.lax.reduce_window(
        x, 0.0, jax.lax.add, (1, 1, 3, 3), (1, 1, 1, 1),
        [(0, 0), (0, 0), (1, 1), (1, 1)]) / 9.0   # count_include_pad=True
    b1 = _conv_ref(pooled, p["branch1_1x1"]["w"], p["branch1_1x1"]["b"], 0)
    b2 = _conv_ref(x, p["branch2_1x1"]["w"], p["branch2_1x1"]["b"], 0)
    b3 = _conv_ref(x, p["branch3_1_1x1"]["w"], p["branch3_1_1x1"]["b"], 0)
    b3 = _conv_ref(b3, p["branch3_2_5x5"]["w"], p["branch3_2_5x5"]["b"], 1)
    b4 = _conv_ref(x, p["branch4_1_1x1"]["w"], p["branch4_1_1x1"]["b"], 0)
    b4 = _conv_ref(b4, p["branch4_2_3x3"]["w"], p["branch4_2_3x3"]["b"], 1)
    b4 = _conv_ref(b4, p["branch4_3_3x3"]["w"], p["branch4_3_3x3"]["b"], 1)
    return jnp.concatenate([b2, b3, b4, b1], axis=1)


if __name__ == "__main__":
    BATCH, CIN, HEIGHT, WIDTH = 2, 128, 8, 8   # CIN=128 -> lane-dense in/out

    key = jax.random.PRNGKey(0)
    kx, kp = jax.random.split(key)
    x = jax.random.normal(kx, (BATCH, CIN, HEIGHT, WIDTH), jnp.float32)
    params = make_params(kp, CIN)

    out = jax.block_until_ready(inception_a(x, params))
    ref = jax.block_until_ready(reference(x, params))

    assert out.shape == ref.shape, (out.shape, ref.shape)
    # Tolerance sized for the bf16 input / 1x1 MXU dot (f32 accumulation); the
    # 3x3 chains run in f32, the f32 reference uses HIGHEST-precision convs.
    max_err = float(jnp.max(jnp.abs(out - ref)))
    assert jnp.allclose(out, ref, rtol=2e-2, atol=3e-2), max_err

    print("KERNEL_OK")
</pallas_src>

<mosaic_0001>
module attributes {stable_mosaic.version = 11 : i64} {
  func.func @inception_a_kernel(%arg0: i32, %arg1: memref<64x128xbf16, #tpu.memory_space<vmem>>, %arg2: memref<128x128xbf16, #tpu.memory_space<vmem>>, %arg3: memref<9x16x128xf32, #tpu.memory_space<vmem>>, %arg4: memref<9x8x16xf32, #tpu.memory_space<vmem>>, %arg5: memref<9x16x128xf32, #tpu.memory_space<vmem>>, %arg6: memref<5x128xf32, #tpu.memory_space<vmem>>, %arg7: memref<64x128xf32, #tpu.memory_space<vmem>>) attributes {dimension_semantics = [#tpu.dimension_semantics<parallel>], iteration_bounds = array<i64: 2>, scalar_prefetch = 0 : i64, scratch_operands = 0 : i64, tpu.core_type = #tpu.core_type<tc>, window_params = [{transform_indices = @transform_0, window_bounds = array<i64: 64, 128>}, {pipeline_mode = #tpu.pipeline_mode<synchronous>, transform_indices = @transform_1, window_bounds = array<i64: 128, 128>}, {pipeline_mode = #tpu.pipeline_mode<synchronous>, transform_indices = @transform_2, window_bounds = array<i64: 9, 16, 128>}, {pipeline_mode = #tpu.pipeline_mode<synchronous>, transform_indices = @transform_3, window_bounds = array<i64: 9, 8, 16>}, {pipeline_mode = #tpu.pipeline_mode<synchronous>, transform_indices = @transform_4, window_bounds = array<i64: 9, 16, 128>}, {pipeline_mode = #tpu.pipeline_mode<synchronous>, transform_indices = @transform_5, window_bounds = array<i64: 5, 128>}, {transform_indices = @transform_6, window_bounds = array<i64: 64, 128>}]} {
    %0 = tpu.iota {dimensions = array<i32: 0>} : vector<64x1xi32>
    %c7_i32 = arith.constant 7 : i32
    %1 = vector.broadcast %c7_i32 : i32 to vector<64x1xi32>
    %2 = arith.andi %0, %1 : vector<64x1xi32>
    %c3_i32 = arith.constant 3 : i32
    %3 = vector.broadcast %c3_i32 : i32 to vector<64x1xi32>
    %4 = arith.shrui %0, %3 : vector<64x1xi32>
    %c7_i32_0 = arith.constant 7 : i32
    %5 = vector.broadcast %c7_i32_0 : i32 to vector<64x1xi32>
    %6 = arith.andi %4, %5 : vector<64x1xi32>
    %c0_i32 = arith.constant 0 : i32
    %7 = vector.broadcast %c0_i32 : i32 to vector<64x1xi32>
    %8 = arith.cmpi sgt, %6, %7 : vector<64x1xi32>
    %c7_i32_1 = arith.constant 7 : i32
    %9 = vector.broadcast %c7_i32_1 : i32 to vector<64x1xi32>
    %10 = arith.cmpi slt, %6, %9 : vector<64x1xi32>
    %c0_i32_2 = arith.constant 0 : i32
    %11 = vector.broadcast %c0_i32_2 : i32 to vector<64x1xi32>
    %12 = arith.cmpi sgt, %2, %11 : vector<64x1xi32>
    %c7_i32_3 = arith.constant 7 : i32
    %13 = vector.broadcast %c7_i32_3 : i32 to vector<64x1xi32>
    %14 = arith.cmpi slt, %2, %13 : vector<64x1xi32>
    %15 = arith.andi %8, %12 : vector<64x1xi1>
    %16 = arith.andi %8, %14 : vector<64x1xi1>
    %17 = arith.andi %10, %12 : vector<64x1xi1>
    %18 = arith.andi %10, %14 : vector<64x1xi1>
    %c0 = arith.constant 0 : index
    %c0_4 = arith.constant 0 : index
    %19 = vector.load %arg6[%c0, %c0_4] : memref<5x128xf32, #tpu.memory_space<vmem>>, vector<1x128xf32>
    %c1 = arith.constant 1 : index
    %c0_5 = arith.constant 0 : index
    %20 = vector.load %arg6[%c1, %c0_5] : memref<5x128xf32, #tpu.memory_space<vmem>>, vector<1x128xf32>
    %c2 = arith.constant 2 : index
    %c0_6 = arith.constant 0 : index
    %21 = vector.load %arg6[%c2, %c0_6] : memref<5x128xf32, #tpu.memory_space<vmem>>, vector<1x16xf32>
    %c3 = arith.constant 3 : index
    %c0_7 = arith.constant 0 : index
    %22 = vector.load %arg6[%c3, %c0_7] : memref<5x128xf32, #tpu.memory_space<vmem>>, vector<1x128xf32>
    %c4 = arith.constant 4 : index
    %c0_8 = arith.constant 0 : index
    %23 = vector.load %arg6[%c4, %c0_8] : memref<5x128xf32, #tpu.memory_space<vmem>>, vector<1x128xf32>
    %c0_9 = arith.constant 0 : index
    %c0_10 = arith.constant 0 : index
    %24 = vector.load %arg1[%c0_9, %c0_10] : memref<64x128xbf16, #tpu.memory_space<vmem>>, vector<64x128xbf16>
    %c0_11 = arith.constant 0 : index
    %c0_12 = arith.constant 0 : index
    %25 = vector.load %arg2[%c0_11, %c0_12] : memref<128x128xbf16, #tpu.memory_space<vmem>>, vector<128x128xbf16>
    %cst = arith.constant dense<0.000000e+00> : vector<64x128xf32>
    %26 = tpu.matmul %24, %25, %cst {dimension_numbers = #tpu.dot_dimension_numbers<[1], [0], [0], [1], [0, 0, 1, 1], [], []>} : vector<64x128xbf16>, vector<128x128xbf16>, vector<64x128xf32> -> vector<64x128xf32>
    %27 = vector.broadcast %19 : vector<1x128xf32> to vector<64x128xf32>
    %28 = arith.addf %26, %27 : vector<64x128xf32>
    %c1_i32 = arith.constant 1 : i32
    %29 = tpu.dynamic_rotate %28 by %c1_i32 dim 0 : vector<64x128xf32>, i32 -> vector<64x128xf32>
    %cst_13 = arith.constant 0.000000e+00 : f32
    %30 = vector.shape_cast %12 : vector<64x1xi1> to vector<64x1xi1>
    %31 = vector.broadcast %30 : vector<64x1xi1> to vector<64x128xi1>
    %32 = vector.broadcast %cst_13 : f32 to vector<64x128xf32>
    %33 = arith.select %31, %29, %32 : vector<64x128xi1>, vector<64x128xf32>
    %34 = arith.addf %28, %33 : vector<64x128xf32>
    %c63_i32 = arith.constant 63 : i32
    %35 = tpu.dynamic_rotate %28 by %c63_i32 dim 0 : vector<64x128xf32>, i32 -> vector<64x128xf32>
    %cst_14 = arith.constant 0.000000e+00 : f32
    %36 = vector.shape_cast %14 : vector<64x1xi1> to vector<64x1xi1>
    %37 = vector.broadcast %36 : vector<64x1xi1> to vector<64x128xi1>
    %38 = vector.broadcast %cst_14 : f32 to vector<64x128xf32>
    %39 = arith.select %37, %35, %38 : vector<64x128xi1>, vector<64x128xf32>
    %40 = arith.addf %34, %39 : vector<64x128xf32>
    %c8_i32 = arith.constant 8 : i32
    %41 = tpu.dynamic_rotate %40 by %c8_i32 dim 0 : vector<64x128xf32>, i32 -> vector<64x128xf32>
    %cst_15 = arith.constant 0.000000e+00 : f32
    %42 = vector.shape_cast %8 : vector<64x1xi1> to vector<64x1xi1>
    %43 = vector.broadcast %42 : vector<64x1xi1> to vector<64x128xi1>
    %44 = vector.broadcast %cst_15 : f32 to vector<64x128xf32>
    %45 = arith.select %43, %41, %44 : vector<64x128xi1>, vector<64x128xf32>
    %46 = arith.addf %40, %45 : vector<64x128xf32>
    %c56_i32 = arith.constant 56 : i32
    %47 = tpu.dynamic_rotate %40 by %c56_i32 dim 0 : vector<64x128xf32>, i32 -> vector<64x128xf32>
    %cst_16 = arith.constant 0.000000e+00 : f32
    %48 = vector.shape_cast %10 : vector<64x1xi1> to vector<64x1xi1>
    %49 = vector.broadcast %48 : vector<64x1xi1> to vector<64x128xi1>
    %50 = vector.broadcast %cst_16 : f32 to vector<64x128xf32>
    %51 = arith.select %49, %47, %50 : vector<64x128xi1>, vector<64x128xf32>
    %52 = arith.addf %46, %51 : vector<64x128xf32>
    %53 = vector.extract_strided_slice %28 {offsets = [0, 32], sizes = [64, 16], strides = [1, 1]} : vector<64x128xf32> to vector<64x16xf32>
    %c4_17 = arith.constant 4 : index
    %c0_18 = arith.constant 0 : index
    %c0_19 = arith.constant 0 : index
    %54 = vector.load %arg3[%c4_17, %c0_18, %c0_19] : memref<9x16x128xf32, #tpu.memory_space<vmem>>, vector<1x16x128xf32>
    %55 = vector.shape_cast %54 : vector<1x16x128xf32> to vector<16x128xf32>
    %cst_20 = arith.constant dense<0.000000e+00> : vector<64x128xf32>
    %56 = tpu.matmul %53, %55, %cst_20 {dimension_numbers = #tpu.dot_dimension_numbers<[1], [0], [0], [1], [0, 0, 1, 1], [], []>} : vector<64x16xf32>, vector<16x128xf32>, vector<64x128xf32> -> vector<64x128xf32>
    %c9_i32 = arith.constant 9 : i32
    %57 = tpu.dynamic_rotate %53 by %c9_i32 dim 0 : vector<64x16xf32>, i32 -> vector<64x16xf32>
    %cst_21 = arith.constant 0.000000e+00 : f32
    %58 = vector.shape_cast %15 : vector<64x1xi1> to vector<64x1xi1>
    %59 = vector.broadcast %58 : vector<64x1xi1> to vector<64x16xi1>
    %60 = vector.broadcast %cst_21 : f32 to vector<64x16xf32>
    %61 = arith.select %59, %57, %60 : vector<64x16xi1>, vector<64x16xf32>
    %c0_22 = arith.constant 0 : index
    %c0_23 = arith.constant 0 : index
    %c0_24 = arith.constant 0 : index
    %62 = vector.load %arg3[%c0_22, %c0_23, %c0_24] : memref<9x16x128xf32, #tpu.memory_space<vmem>>, vector<1x16x128xf32>
    %63 = vector.shape_cast %62 : vector<1x16x128xf32> to vector<16x128xf32>
    %cst_25 = arith.constant dense<0.000000e+00> : vector<64x128xf32>
    %64 = tpu.matmul %61, %63, %cst_25 {dimension_numbers = #tpu.dot_dimension_numbers<[1], [0], [0], [1], [0, 0, 1, 1], [], []>} : vector<64x16xf32>, vector<16x128xf32>, vector<64x128xf32> -> vector<64x128xf32>
    %65 = arith.addf %56, %64 : vector<64x128xf32>
    %c8_i32_26 = arith.constant 8 : i32
    %66 = tpu.dynamic_rotate %53 by %c8_i32_26 dim 0 : vector<64x16xf32>, i32 -> vector<64x16xf32>
    %cst_27 = arith.constant 0.000000e+00 : f32
    %67 = vector.shape_cast %8 : vector<64x1xi1> to vector<64x1xi1>
    %68 = vector.broadcast %67 : vector<64x1xi1> to vector<64x16xi1>
    %69 = vector.broadcast %cst_27 : f32 to vector<64x16xf32>
    %70 = arith.select %68, %66, %69 : vector<64x16xi1>, vector<64x16xf32>
    %c1_28 = arith.constant 1 : index
    %c0_29 = arith.constant 0 : index
    %c0_30 = arith.constant 0 : index
    %71 = vector.load %arg3[%c1_28, %c0_29, %c0_30] : memref<9x16x128xf32, #tpu.memory_space<vmem>>, vector<1x16x128xf32>
    %72 = vector.shape_cast %71 : vector<1x16x128xf32> to vector<16x128xf32>
    %cst_31 = arith.constant dense<0.000000e+00> : vector<64x128xf32>
    %73 = tpu.matmul %70, %72, %cst_31 {dimension_numbers = #tpu.dot_dimension_numbers<[1], [0], [0], [1], [0, 0, 1, 1], [], []>} : vector<64x16xf32>, vector<16x128xf32>, vector<64x128xf32> -> vector<64x128xf32>
    %74 = arith.addf %65, %73 : vector<64x128xf32>
    %c7_i32_32 = arith.constant 7 : i32
    %75 = tpu.dynamic_rotate %53 by %c7_i32_32 dim 0 : vector<64x16xf32>, i32 -> vector<64x16xf32>
    %cst_33 = arith.constant 0.000000e+00 : f32
    %76 = vector.shape_cast %16 : vector<64x1xi1> to vector<64x1xi1>
    %77 = vector.broadcast %76 : vector<64x1xi1> to vector<64x16xi1>
    %78 = vector.broadcast %cst_33 : f32 to vector<64x16xf32>
    %79 = arith.select %77, %75, %78 : vector<64x16xi1>, vector<64x16xf32>
    %c2_34 = arith.constant 2 : index
    %c0_35 = arith.constant 0 : index
    %c0_36 = arith.constant 0 : index
    %80 = vector.load %arg3[%c2_34, %c0_35, %c0_36] : memref<9x16x128xf32, #tpu.memory_space<vmem>>, vector<1x16x128xf32>
    %81 = vector.shape_cast %80 : vector<1x16x128xf32> to vector<16x128xf32>
    %cst_37 = arith.constant dense<0.000000e+00> : vector<64x128xf32>
    %82 = tpu.matmul %79, %81, %cst_37 {dimension_numbers = #tpu.dot_dimension_numbers<[1], [0], [0], [1], [0, 0, 1, 1], [], []>} : vector<64x16xf32>, vector<16x128xf32>, vector<64x128xf32> -> vector<64x128xf32>
    %83 = arith.addf %74, %82 : vector<64x128xf32>
    %c1_i32_38 = arith.constant 1 : i32
    %84 = tpu.dynamic_rotate %53 by %c1_i32_38 dim 0 : vector<64x16xf32>, i32 -> vector<64x16xf32>
    %cst_39 = arith.constant 0.000000e+00 : f32
    %85 = vector.shape_cast %12 : vector<64x1xi1> to vector<64x1xi1>
    %86 = vector.broadcast %85 : vector<64x1xi1> to vector<64x16xi1>
    %87 = vector.broadcast %cst_39 : f32 to vector<64x16xf32>
    %88 = arith.select %86, %84, %87 : vector<64x16xi1>, vector<64x16xf32>
    %c3_40 = arith.constant 3 : index
    %c0_41 = arith.constant 0 : index
    %c0_42 = arith.constant 0 : index
    %89 = vector.load %arg3[%c3_40, %c0_41, %c0_42] : memref<9x16x128xf32, #tpu.memory_space<vmem>>, vector<1x16x128xf32>
    %90 = vector.shape_cast %89 : vector<1x16x128xf32> to vector<16x128xf32>
    %cst_43 = arith.constant dense<0.000000e+00> : vector<64x128xf32>
    %91 = tpu.matmul %88, %90, %cst_43 {dimension_numbers = #tpu.dot_dimension_numbers<[1], [0], [0], [1], [0, 0, 1, 1], [], []>} : vector<64x16xf32>, vector<16x128xf32>, vector<64x128xf32> -> vector<64x128xf32>
    %92 = arith.addf %83, %91 : vector<64x128xf32>
    %c63_i32_44 = arith.constant 63 : i32
    %93 = tpu.dynamic_rotate %53 by %c63_i32_44 dim 0 : vector<64x16xf32>, i32 -> vector<64x16xf32>
    %cst_45 = arith.constant 0.000000e+00 : f32
    %94 = vector.shape_cast %14 : vector<64x1xi1> to vector<64x1xi1>
    %95 = vector.broadcast %94 : vector<64x1xi1> to vector<64x16xi1>
    %96 = vector.broadcast %cst_45 : f32 to vector<64x16xf32>
    %97 = arith.select %95, %93, %96 : vector<64x16xi1>, vector<64x16xf32>
    %c5 = arith.constant 5 : index
    %c0_46 = arith.constant 0 : index
    %c0_47 = arith.constant 0 : index
    %98 = vector.load %arg3[%c5, %c0_46, %c0_47] : memref<9x16x128xf32, #tpu.memory_space<vmem>>, vector<1x16x128xf32>
    %99 = vector.shape_cast %98 : vector<1x16x128xf32> to vector<16x128xf32>
    %cst_48 = arith.constant dense<0.000000e+00> : vector<64x128xf32>
    %100 = tpu.matmul %97, %99, %cst_48 {dimension_numbers = #tpu.dot_dimension_numbers<[1], [0], [0], [1], [0, 0, 1, 1], [], []>} : vector<64x16xf32>, vector<16x128xf32>, vector<64x128xf32> -> vector<64x128xf32>
    %101 = arith.addf %92, %100 : vector<64x128xf32>
    %c57_i32 = arith.constant 57 : i32
    %102 = tpu.dynamic_rotate %53 by %c57_i32 dim 0 : vector<64x16xf32>, i32 -> vector<64x16xf32>
    %cst_49 = arith.constant 0.000000e+00 : f32
    %103 = vector.shape_cast %17 : vector<64x1xi1> to vector<64x1xi1>
    %104 = vector.broadcast %103 : vector<64x1xi1> to vector<64x16xi1>
    %105 = vector.broadcast %cst_49 : f32 to vector<64x16xf32>
    %106 = arith.select %104, %102, %105 : vector<64x16xi1>, vector<64x16xf32>
    %c6 = arith.constant 6 : index
    %c0_50 = arith.constant 0 : index
    %c0_51 = arith.constant 0 : index
    %107 = vector.load %arg3[%c6, %c0_50, %c0_51] : memref<9x16x128xf32, #tpu.memory_space<vmem>>, vector<1x16x128xf32>
    %108 = vector.shape_cast %107 : vector<1x16x128xf32> to vector<16x128xf32>
    %cst_52 = arith.constant dense<0.000000e+00> : vector<64x128xf32>
    %109 = tpu.matmul %106, %108, %cst_52 {dimension_numbers = #tpu.dot_dimension_numbers<[1], [0], [0], [1], [0, 0, 1, 1], [], []>} : vector<64x16xf32>, vector<16x128xf32>, vector<64x128xf32> -> vector<64x128xf32>
    %110 = arith.addf %101, %109 : vector<64x128xf32>
    %c56_i32_53 = arith.constant 56 : i32
    %111 = tpu.dynamic_rotate %53 by %c56_i32_53 dim 0 : vector<64x16xf32>, i32 -> vector<64x16xf32>
    %cst_54 = arith.constant 0.000000e+00 : f32
    %112 = vector.shape_cast %10 : vector<64x1xi1> to vector<64x1xi1>
    %113 = vector.broadcast %112 : vector<64x1xi1> to vector<64x16xi1>
    %114 = vector.broadcast %cst_54 : f32 to vector<64x16xf32>
    %115 = arith.select %113, %111, %114 : vector<64x16xi1>, vector<64x16xf32>
    %c7 = arith.constant 7 : index
    %c0_55 = arith.constant 0 : index
    %c0_56 = arith.constant 0 : index
    %116 = vector.load %arg3[%c7, %c0_55, %c0_56] : memref<9x16x128xf32, #tpu.memory_space<vmem>>, vector<1x16x128xf32>
    %117 = vector.shape_cast %116 : vector<1x16x128xf32> to vector<16x128xf32>
    %cst_57 = arith.constant dense<0.000000e+00> : vector<64x128xf32>
    %118 = tpu.matmul %115, %117, %cst_57 {dimension_numbers = #tpu.dot_dimension_numbers<[1], [0], [0], [1], [0, 0, 1, 1], [], []>} : vector<64x16xf32>, vector<16x128xf32>, vector<64x128xf32> -> vector<64x128xf32>
    %119 = arith.addf %110, %118 : vector<64x128xf32>
    %c55_i32 = arith.constant 55 : i32
    %120 = tpu.dynamic_rotate %53 by %c55_i32 dim 0 : vector<64x16xf32>, i32 -> vector<64x16xf32>
    %cst_58 = arith.constant 0.000000e+00 : f32
    %121 = vector.shape_cast %18 : vector<64x1xi1> to vector<64x1xi1>
    %122 = vector.broadcast %121 : vector<64x1xi1> to vector<64x16xi1>
    %123 = vector.broadcast %cst_58 : f32 to vector<64x16xf32>
    %124 = arith.select %122, %120, %123 : vector<64x16xi1>, vector<64x16xf32>
    %c8 = arith.constant 8 : index
    %c0_59 = arith.constant 0 : index
    %c0_60 = arith.constant 0 : index
    %125 = vector.load %arg3[%c8, %c0_59, %c0_60] : memref<9x16x128xf32, #tpu.memory_space<vmem>>, vector<1x16x128xf32>
    %126 = vector.shape_cast %125 : vector<1x16x128xf32> to vector<16x128xf32>
    %cst_61 = arith.constant dense<0.000000e+00> : vector<64x128xf32>
    %127 = tpu.matmul %124, %126, %cst_61 {dimension_numbers = #tpu.dot_dimension_numbers<[1], [0], [0], [1], [0, 0, 1, 1], [], []>} : vector<64x16xf32>, vector<16x128xf32>, vector<64x128xf32> -> vector<64x128xf32>
    %128 = arith.addf %119, %127 : vector<64x128xf32>
    %129 = vector.extract_strided_slice %28 {offsets = [0, 48], sizes = [64, 8], strides = [1, 1]} : vector<64x128xf32> to vector<64x8xf32>
    %c4_62 = arith.constant 4 : index
    %c0_63 = arith.constant 0 : index
    %c0_64 = arith.constant 0 : index
    %130 = vector.load %arg4[%c4_62, %c0_63, %c0_64] : memref<9x8x16xf32, #tpu.memory_space<vmem>>, vector<1x8x16xf32>
    %131 = vector.shape_cast %130 : vector<1x8x16xf32> to vector<8x16xf32>
    %cst_65 = arith.constant dense<0.000000e+00> : vector<64x16xf32>
    %132 = tpu.matmul %129, %131, %cst_65 {dimension_numbers = #tpu.dot_dimension_numbers<[1], [0], [0], [1], [0, 0, 1, 1], [], []>} : vector<64x8xf32>, vector<8x16xf32>, vector<64x16xf32> -> vector<64x16xf32>
    %c9_i32_66 = arith.constant 9 : i32
    %133 = tpu.dynamic_rotate %129 by %c9_i32_66 dim 0 : vector<64x8xf32>, i32 -> vector<64x8xf32>
    %cst_67 = arith.constant 0.000000e+00 : f32
    %134 = vector.shape_cast %15 : vector<64x1xi1> to vector<64x1xi1>
    %135 = vector.broadcast %134 : vector<64x1xi1> to vector<64x8xi1>
    %136 = vector.broadcast %cst_67 : f32 to vector<64x8xf32>
    %137 = arith.select %135, %133, %136 : vector<64x8xi1>, vector<64x8xf32>
    %c0_68 = arith.constant 0 : index
    %c0_69 = arith.constant 0 : index
    %c0_70 = arith.constant 0 : index
    %138 = vector.load %arg4[%c0_68, %c0_69, %c0_70] : memref<9x8x16xf32, #tpu.memory_space<vmem>>, vector<1x8x16xf32>
    %139 = vector.shape_cast %138 : vector<1x8x16xf32> to vector<8x16xf32>
    %cst_71 = arith.constant dense<0.000000e+00> : vector<64x16xf32>
    %140 = tpu.matmul %137, %139, %cst_71 {dimension_numbers = #tpu.dot_dimension_numbers<[1], [0], [0], [1], [0, 0, 1, 1], [], []>} : vector<64x8xf32>, vector<8x16xf32>, vector<64x16xf32> -> vector<64x16xf32>
    %141 = arith.addf %132, %140 : vector<64x16xf32>
    %c8_i32_72 = arith.constant 8 : i32
    %142 = tpu.dynamic_rotate %129 by %c8_i32_72 dim 0 : vector<64x8xf32>, i32 -> vector<64x8xf32>
    %cst_73 = arith.constant 0.000000e+00 : f32
    %143 = vector.shape_cast %8 : vector<64x1xi1> to vector<64x1xi1>
    %144 = vector.broadcast %143 : vector<64x1xi1> to vector<64x8xi1>
    %145 = vector.broadcast %cst_73 : f32 to vector<64x8xf32>
    %146 = arith.select %144, %142, %145 : vector<64x8xi1>, vector<64x8xf32>
    %c1_74 = arith.constant 1 : index
    %c0_75 = arith.constant 0 : index
    %c0_76 = arith.constant 0 : index
    %147 = vector.load %arg4[%c1_74, %c0_75, %c0_76] : memref<9x8x16xf32, #tpu.memory_space<vmem>>, vector<1x8x16xf32>
    %148 = vector.shape_cast %147 : vector<1x8x16xf32> to vector<8x16xf32>
    %cst_77 = arith.constant dense<0.000000e+00> : vector<64x16xf32>
    %149 = tpu.matmul %146, %148, %cst_77 {dimension_numbers = #tpu.dot_dimension_numbers<[1], [0], [0], [1], [0, 0, 1, 1], [], []>} : vector<64x8xf32>, vector<8x16xf32>, vector<64x16xf32> -> vector<64x16xf32>
    %150 = arith.addf %141, %149 : vector<64x16xf32>
    %c7_i32_78 = arith.constant 7 : i32
    %151 = tpu.dynamic_rotate %129 by %c7_i32_78 dim 0 : vector<64x8xf32>, i32 -> vector<64x8xf32>
    %cst_79 = arith.constant 0.000000e+00 : f32
    %152 = vector.shape_cast %16 : vector<64x1xi1> to vector<64x1xi1>
    %153 = vector.broadcast %152 : vector<64x1xi1> to vector<64x8xi1>
    %154 = vector.broadcast %cst_79 : f32 to vector<64x8xf32>
    %155 = arith.select %153, %151, %154 : vector<64x8xi1>, vector<64x8xf32>
    %c2_80 = arith.constant 2 : index
    %c0_81 = arith.constant 0 : index
    %c0_82 = arith.constant 0 : index
    %156 = vector.load %arg4[%c2_80, %c0_81, %c0_82] : memref<9x8x16xf32, #tpu.memory_space<vmem>>, vector<1x8x16xf32>
    %157 = vector.shape_cast %156 : vector<1x8x16xf32> to vector<8x16xf32>
    %cst_83 = arith.constant dense<0.000000e+00> : vector<64x16xf32>
    %158 = tpu.matmul %155, %157, %cst_83 {dimension_numbers = #tpu.dot_dimension_numbers<[1], [0], [0], [1], [0, 0, 1, 1], [], []>} : vector<64x8xf32>, vector<8x16xf32>, vector<64x16xf32> -> vector<64x16xf32>
    %159 = arith.addf %150, %158 : vector<64x16xf32>
    %c1_i32_84 = arith.constant 1 : i32
    %160 = tpu.dynamic_rotate %129 by %c1_i32_84 dim 0 : vector<64x8xf32>, i32 -> vector<64x8xf32>
    %cst_85 = arith.constant 0.000000e+00 : f32
    %161 = vector.shape_cast %12 : vector<64x1xi1> to vector<64x1xi1>
    %162 = vector.broadcast %161 : vector<64x1xi1> to vector<64x8xi1>
    %163 = vector.broadcast %cst_85 : f32 to vector<64x8xf32>
    %164 = arith.select %162, %160, %163 : vector<64x8xi1>, vector<64x8xf32>
    %c3_86 = arith.constant 3 : index
    %c0_87 = arith.constant 0 : index
    %c0_88 = arith.constant 0 : index
    %165 = vector.load %arg4[%c3_86, %c0_87, %c0_88] : memref<9x8x16xf32, #tpu.memory_space<vmem>>, vector<1x8x16xf32>
    %166 = vector.shape_cast %165 : vector<1x8x16xf32> to vector<8x16xf32>
    %cst_89 = arith.constant dense<0.000000e+00> : vector<64x16xf32>
    %167 = tpu.matmul %164, %166, %cst_89 {dimension_numbers = #tpu.dot_dimension_numbers<[1], [0], [0], [1], [0, 0, 1, 1], [], []>} : vector<64x8xf32>, vector<8x16xf32>, vector<64x16xf32> -> vector<64x16xf32>
    %168 = arith.addf %159, %167 : vector<64x16xf32>
    %c63_i32_90 = arith.constant 63 : i32
    %169 = tpu.dynamic_rotate %129 by %c63_i32_90 dim 0 : vector<64x8xf32>, i32 -> vector<64x8xf32>
    %cst_91 = arith.constant 0.000000e+00 : f32
    %170 = vector.shape_cast %14 : vector<64x1xi1> to vector<64x1xi1>
    %171 = vector.broadcast %170 : vector<64x1xi1> to vector<64x8xi1>
    %172 = vector.broadcast %cst_91 : f32 to vector<64x8xf32>
    %173 = arith.select %171, %169, %172 : vector<64x8xi1>, vector<64x8xf32>
    %c5_92 = arith.constant 5 : index
    %c0_93 = arith.constant 0 : index
    %c0_94 = arith.constant 0 : index
    %174 = vector.load %arg4[%c5_92, %c0_93, %c0_94] : memref<9x8x16xf32, #tpu.memory_space<vmem>>, vector<1x8x16xf32>
    %175 = vector.shape_cast %174 : vector<1x8x16xf32> to vector<8x16xf32>
    %cst_95 = arith.constant dense<0.000000e+00> : vector<64x16xf32>
    %176 = tpu.matmul %173, %175, %cst_95 {dimension_numbers = #tpu.dot_dimension_numbers<[1], [0], [0], [1], [0, 0, 1, 1], [], []>} : vector<64x8xf32>, vector<8x16xf32>, vector<64x16xf32> -> vector<64x16xf32>
    %177 = arith.addf %168, %176 : vector<64x16xf32>
    %c57_i32_96 = arith.constant 57 : i32
    %178 = tpu.dynamic_rotate %129 by %c57_i32_96 dim 0 : vector<64x8xf32>, i32 -> vector<64x8xf32>
    %cst_97 = arith.constant 0.000000e+00 : f32
    %179 = vector.shape_cast %17 : vector<64x1xi1> to vector<64x1xi1>
    %180 = vector.broadcast %179 : vector<64x1xi1> to vector<64x8xi1>
    %181 = vector.broadcast %cst_97 : f32 to vector<64x8xf32>
    %182 = arith.select %180, %178, %181 : vector<64x8xi1>, vector<64x8xf32>
    %c6_98 = arith.constant 6 : index
    %c0_99 = arith.constant 0 : index
    %c0_100 = arith.constant 0 : index
    %183 = vector.load %arg4[%c6_98, %c0_99, %c0_100] : memref<9x8x16xf32, #tpu.memory_space<vmem>>, vector<1x8x16xf32>
    %184 = vector.shape_cast %183 : vector<1x8x16xf32> to vector<8x16xf32>
    %cst_101 = arith.constant dense<0.000000e+00> : vector<64x16xf32>
    %185 = tpu.matmul %182, %184, %cst_101 {dimension_numbers = #tpu.dot_dimension_numbers<[1], [0], [0], [1], [0, 0, 1, 1], [], []>} : vector<64x8xf32>, vector<8x16xf32>, vector<64x16xf32> -> vector<64x16xf32>
    %186 = arith.addf %177, %185 : vector<64x16xf32>
    %c56_i32_102 = arith.constant 56 : i32
    %187 = tpu.dynamic_rotate %129 by %c56_i32_102 dim 0 : vector<64x8xf32>, i32 -> vector<64x8xf32>
    %cst_103 = arith.constant 0.000000e+00 : f32
    %188 = vector.shape_cast %10 : vector<64x1xi1> to vector<64x1xi1>
    %189 = vector.broadcast %188 : vector<64x1xi1> to vector<64x8xi1>
    %190 = vector.broadcast %cst_103 : f32 to vector<64x8xf32>
    %191 = arith.select %189, %187, %190 : vector<64x8xi1>, vector<64x8xf32>
    %c7_104 = arith.constant 7 : index
    %c0_105 = arith.constant 0 : index
    %c0_106 = arith.constant 0 : index
    %192 = vector.load %arg4[%c7_104, %c0_105, %c0_106] : memref<9x8x16xf32, #tpu.memory_space<vmem>>, vector<1x8x16xf32>
    %193 = vector.shape_cast %192 : vector<1x8x16xf32> to vector<8x16xf32>
    %cst_107 = arith.constant dense<0.000000e+00> : vector<64x16xf32>
    %194 = tpu.matmul %191, %193, %cst_107 {dimension_numbers = #tpu.dot_dimension_numbers<[1], [0], [0], [1], [0, 0, 1, 1], [], []>} : vector<64x8xf32>, vector<8x16xf32>, vector<64x16xf32> -> vector<64x16xf32>
    %195 = arith.addf %186, %194 : vector<64x16xf32>
    %c55_i32_108 = arith.constant 55 : i32
    %196 = tpu.dynamic_rotate %129 by %c55_i32_108 dim 0 : vector<64x8xf32>, i32 -> vector<64x8xf32>
    %cst_109 = arith.constant 0.000000e+00 : f32
    %197 = vector.shape_cast %18 : vector<64x1xi1> to vector<64x1xi1>
    %198 = vector.broadcast %197 : vector<64x1xi1> to vector<64x8xi1>
    %199 = vector.broadcast %cst_109 : f32 to vector<64x8xf32>
    %200 = arith.select %198, %196, %199 : vector<64x8xi1>, vector<64x8xf32>
    %c8_110 = arith.constant 8 : index
    %c0_111 = arith.constant 0 : index
    %c0_112 = arith.constant 0 : index
    %201 = vector.load %arg4[%c8_110, %c0_111, %c0_112] : memref<9x8x16xf32, #tpu.memory_space<vmem>>, vector<1x8x16xf32>
    %202 = vector.shape_cast %201 : vector<1x8x16xf32> to vector<8x16xf32>
    %cst_113 = arith.constant dense<0.000000e+00> : vector<64x16xf32>
    %203 = tpu.matmul %200, %202, %cst_113 {dimension_numbers = #tpu.dot_dimension_numbers<[1], [0], [0], [1], [0, 0, 1, 1], [], []>} : vector<64x8xf32>, vector<8x16xf32>, vector<64x16xf32> -> vector<64x16xf32>
    %204 = arith.addf %195, %203 : vector<64x16xf32>
    %205 = vector.broadcast %21 : vector<1x16xf32> to vector<64x16xf32>
    %206 = arith.addf %204, %205 : vector<64x16xf32>
    %c4_114 = arith.constant 4 : index
    %c0_115 = arith.constant 0 : index
    %c0_116 = arith.constant 0 : index
    %207 = vector.load %arg5[%c4_114, %c0_115, %c0_116] : memref<9x16x128xf32, #tpu.memory_space<vmem>>, vector<1x16x128xf32>
    %208 = vector.shape_cast %207 : vector<1x16x128xf32> to vector<16x128xf32>
    %cst_117 = arith.constant dense<0.000000e+00> : vector<64x128xf32>
    %209 = tpu.matmul %206, %208, %cst_117 {dimension_numbers = #tpu.dot_dimension_numbers<[1], [0], [0], [1], [0, 0, 1, 1], [], []>} : vector<64x16xf32>, vector<16x128xf32>, vector<64x128xf32> -> vector<64x128xf32>
    %c9_i32_118 = arith.constant 9 : i32
    %210 = tpu.dynamic_rotate %206 by %c9_i32_118 dim 0 : vector<64x16xf32>, i32 -> vector<64x16xf32>
    %cst_119 = arith.constant 0.000000e+00 : f32
    %211 = vector.shape_cast %15 : vector<64x1xi1> to vector<64x1xi1>
    %212 = vector.broadcast %211 : vector<64x1xi1> to vector<64x16xi1>
    %213 = vector.broadcast %cst_119 : f32 to vector<64x16xf32>
    %214 = arith.select %212, %210, %213 : vector<64x16xi1>, vector<64x16xf32>
    %c0_120 = arith.constant 0 : index
    %c0_121 = arith.constant 0 : index
    %c0_122 = arith.constant 0 : index
    %215 = vector.load %arg5[%c0_120, %c0_121, %c0_122] : memref<9x16x128xf32, #tpu.memory_space<vmem>>, vector<1x16x128xf32>
    %216 = vector.shape_cast %215 : vector<1x16x128xf32> to vector<16x128xf32>
    %cst_123 = arith.constant dense<0.000000e+00> : vector<64x128xf32>
    %217 = tpu.matmul %214, %216, %cst_123 {dimension_numbers = #tpu.dot_dimension_numbers<[1], [0], [0], [1], [0, 0, 1, 1], [], []>} : vector<64x16xf32>, vector<16x128xf32>, vector<64x128xf32> -> vector<64x128xf32>
    %218 = arith.addf %209, %217 : vector<64x128xf32>
    %c8_i32_124 = arith.constant 8 : i32
    %219 = tpu.dynamic_rotate %206 by %c8_i32_124 dim 0 : vector<64x16xf32>, i32 -> vector<64x16xf32>
    %cst_125 = arith.constant 0.000000e+00 : f32
    %220 = vector.shape_cast %8 : vector<64x1xi1> to vector<64x1xi1>
    %221 = vector.broadcast %220 : vector<64x1xi1> to vector<64x16xi1>
    %222 = vector.broadcast %cst_125 : f32 to vector<64x16xf32>
    %223 = arith.select %221, %219, %222 : vector<64x16xi1>, vector<64x16xf32>
    %c1_126 = arith.constant 1 : index
    %c0_127 = arith.constant 0 : index
    %c0_128 = arith.constant 0 : index
    %224 = vector.load %arg5[%c1_126, %c0_127, %c0_128] : memref<9x16x128xf32, #tpu.memory_space<vmem>>, vector<1x16x128xf32>
    %225 = vector.shape_cast %224 : vector<1x16x128xf32> to vector<16x128xf32>
    %cst_129 = arith.constant dense<0.000000e+00> : vector<64x128xf32>
    %226 = tpu.matmul %223, %225, %cst_129 {dimension_numbers = #tpu.dot_dimension_numbers<[1], [0], [0], [1], [0, 0, 1, 1], [], []>} : vector<64x16xf32>, vector<16x128xf32>, vector<64x128xf32> -> vector<64x128xf32>
    %227 = arith.addf %218, %226 : vector<64x128xf32>
    %c7_i32_130 = arith.constant 7 : i32
    %228 = tpu.dynamic_rotate %206 by %c7_i32_130 dim 0 : vector<64x16xf32>, i32 -> vector<64x16xf32>
    %cst_131 = arith.constant 0.000000e+00 : f32
    %229 = vector.shape_cast %16 : vector<64x1xi1> to vector<64x1xi1>
    %230 = vector.broadcast %229 : vector<64x1xi1> to vector<64x16xi1>
    %231 = vector.broadcast %cst_131 : f32 to vector<64x16xf32>
    %232 = arith.select %230, %228, %231 : vector<64x16xi1>, vector<64x16xf32>
    %c2_132 = arith.constant 2 : index
    %c0_133 = arith.constant 0 : index
    %c0_134 = arith.constant 0 : index
    %233 = vector.load %arg5[%c2_132, %c0_133, %c0_134] : memref<9x16x128xf32, #tpu.memory_space<vmem>>, vector<1x16x128xf32>
    %234 = vector.shape_cast %233 : vector<1x16x128xf32> to vector<16x128xf32>
    %cst_135 = arith.constant dense<0.000000e+00> : vector<64x128xf32>
    %235 = tpu.matmul %232, %234, %cst_135 {dimension_numbers = #tpu.dot_dimension_numbers<[1], [0], [0], [1], [0, 0, 1, 1], [], []>} : vector<64x16xf32>, vector<16x128xf32>, vector<64x128xf32> -> vector<64x128xf32>
    %236 = arith.addf %227, %235 : vector<64x128xf32>
    %c1_i32_136 = arith.constant 1 : i32
    %237 = tpu.dynamic_rotate %206 by %c1_i32_136 dim 0 : vector<64x16xf32>, i32 -> vector<64x16xf32>
    %cst_137 = arith.constant 0.000000e+00 : f32
    %238 = vector.shape_cast %12 : vector<64x1xi1> to vector<64x1xi1>
    %239 = vector.broadcast %238 : vector<64x1xi1> to vector<64x16xi1>
    %240 = vector.broadcast %cst_137 : f32 to vector<64x16xf32>
    %241 = arith.select %239, %237, %240 : vector<64x16xi1>, vector<64x16xf32>
    %c3_138 = arith.constant 3 : index
    %c0_139 = arith.constant 0 : index
    %c0_140 = arith.constant 0 : index
    %242 = vector.load %arg5[%c3_138, %c0_139, %c0_140] : memref<9x16x128xf32, #tpu.memory_space<vmem>>, vector<1x16x128xf32>
    %243 = vector.shape_cast %242 : vector<1x16x128xf32> to vector<16x128xf32>
    %cst_141 = arith.constant dense<0.000000e+00> : vector<64x128xf32>
    %244 = tpu.matmul %241, %243, %cst_141 {dimension_numbers = #tpu.dot_dimension_numbers<[1], [0], [0], [1], [0, 0, 1, 1], [], []>} : vector<64x16xf32>, vector<16x128xf32>, vector<64x128xf32> -> vector<64x128xf32>
    %245 = arith.addf %236, %244 : vector<64x128xf32>
    %c63_i32_142 = arith.constant 63 : i32
    %246 = tpu.dynamic_rotate %206 by %c63_i32_142 dim 0 : vector<64x16xf32>, i32 -> vector<64x16xf32>
    %cst_143 = arith.constant 0.000000e+00 : f32
    %247 = vector.shape_cast %14 : vector<64x1xi1> to vector<64x1xi1>
    %248 = vector.broadcast %247 : vector<64x1xi1> to vector<64x16xi1>
    %249 = vector.broadcast %cst_143 : f32 to vector<64x16xf32>
    %250 = arith.select %248, %246, %249 : vector<64x16xi1>, vector<64x16xf32>
    %c5_144 = arith.constant 5 : index
    %c0_145 = arith.constant 0 : index
    %c0_146 = arith.constant 0 : index
    %251 = vector.load %arg5[%c5_144, %c0_145, %c0_146] : memref<9x16x128xf32, #tpu.memory_space<vmem>>, vector<1x16x128xf32>
    %252 = vector.shape_cast %251 : vector<1x16x128xf32> to vector<16x128xf32>
    %cst_147 = arith.constant dense<0.000000e+00> : vector<64x128xf32>
    %253 = tpu.matmul %250, %252, %cst_147 {dimension_numbers = #tpu.dot_dimension_numbers<[1], [0], [0], [1], [0, 0, 1, 1], [], []>} : vector<64x16xf32>, vector<16x128xf32>, vector<64x128xf32> -> vector<64x128xf32>
    %254 = arith.addf %245, %253 : vector<64x128xf32>
    %c57_i32_148 = arith.constant 57 : i32
    %255 = tpu.dynamic_rotate %206 by %c57_i32_148 dim 0 : vector<64x16xf32>, i32 -> vector<64x16xf32>
    %cst_149 = arith.constant 0.000000e+00 : f32
    %256 = vector.shape_cast %17 : vector<64x1xi1> to vector<64x1xi1>
    %257 = vector.broadcast %256 : vector<64x1xi1> to vector<64x16xi1>
    %258 = vector.broadcast %cst_149 : f32 to vector<64x16xf32>
    %259 = arith.select %257, %255, %258 : vector<64x16xi1>, vector<64x16xf32>
    %c6_150 = arith.constant 6 : index
    %c0_151 = arith.constant 0 : index
    %c0_152 = arith.constant 0 : index
    %260 = vector.load %arg5[%c6_150, %c0_151, %c0_152] : memref<9x16x128xf32, #tpu.memory_space<vmem>>, vector<1x16x128xf32>
    %261 = vector.shape_cast %260 : vector<1x16x128xf32> to vector<16x128xf32>
    %cst_153 = arith.constant dense<0.000000e+00> : vector<64x128xf32>
    %262 = tpu.matmul %259, %261, %cst_153 {dimension_numbers = #tpu.dot_dimension_numbers<[1], [0], [0], [1], [0, 0, 1, 1], [], []>} : vector<64x16xf32>, vector<16x128xf32>, vector<64x128xf32> -> vector<64x128xf32>
    %263 = arith.addf %254, %262 : vector<64x128xf32>
    %c56_i32_154 = arith.constant 56 : i32
    %264 = tpu.dynamic_rotate %206 by %c56_i32_154 dim 0 : vector<64x16xf32>, i32 -> vector<64x16xf32>
    %cst_155 = arith.constant 0.000000e+00 : f32
    %265 = vector.shape_cast %10 : vector<64x1xi1> to vector<64x1xi1>
    %266 = vector.broadcast %265 : vector<64x1xi1> to vector<64x16xi1>
    %267 = vector.broadcast %cst_155 : f32 to vector<64x16xf32>
    %268 = arith.select %266, %264, %267 : vector<64x16xi1>, vector<64x16xf32>
    %c7_156 = arith.constant 7 : index
    %c0_157 = arith.constant 0 : index
    %c0_158 = arith.constant 0 : index
    %269 = vector.load %arg5[%c7_156, %c0_157, %c0_158] : memref<9x16x128xf32, #tpu.memory_space<vmem>>, vector<1x16x128xf32>
    %270 = vector.shape_cast %269 : vector<1x16x128xf32> to vector<16x128xf32>
    %cst_159 = arith.constant dense<0.000000e+00> : vector<64x128xf32>
    %271 = tpu.matmul %268, %270, %cst_159 {dimension_numbers = #tpu.dot_dimension_numbers<[1], [0], [0], [1], [0, 0, 1, 1], [], []>} : vector<64x16xf32>, vector<16x128xf32>, vector<64x128xf32> -> vector<64x128xf32>
    %272 = arith.addf %263, %271 : vector<64x128xf32>
    %c55_i32_160 = arith.constant 55 : i32
    %273 = tpu.dynamic_rotate %206 by %c55_i32_160 dim 0 : vector<64x16xf32>, i32 -> vector<64x16xf32>
    %cst_161 = arith.constant 0.000000e+00 : f32
    %274 = vector.shape_cast %18 : vector<64x1xi1> to vector<64x1xi1>
    %275 = vector.broadcast %274 : vector<64x1xi1> to vector<64x16xi1>
    %276 = vector.broadcast %cst_161 : f32 to vector<64x16xf32>
    %277 = arith.select %275, %273, %276 : vector<64x16xi1>, vector<64x16xf32>
    %c8_162 = arith.constant 8 : index
    %c0_163 = arith.constant 0 : index
    %c0_164 = arith.constant 0 : index
    %278 = vector.load %arg5[%c8_162, %c0_163, %c0_164] : memref<9x16x128xf32, #tpu.memory_space<vmem>>, vector<1x16x128xf32>
    %279 = vector.shape_cast %278 : vector<1x16x128xf32> to vector<16x128xf32>
    %cst_165 = arith.constant dense<0.000000e+00> : vector<64x128xf32>
    %280 = tpu.matmul %277, %279, %cst_165 {dimension_numbers = #tpu.dot_dimension_numbers<[1], [0], [0], [1], [0, 0, 1, 1], [], []>} : vector<64x16xf32>, vector<16x128xf32>, vector<64x128xf32> -> vector<64x128xf32>
    %281 = arith.addf %272, %280 : vector<64x128xf32>
    %282 = vector.broadcast %22 : vector<1x128xf32> to vector<64x128xf32>
    %283 = arith.mulf %28, %282 : vector<64x128xf32>
    %284 = vector.broadcast %23 : vector<1x128xf32> to vector<64x128xf32>
    %285 = arith.mulf %52, %284 : vector<64x128xf32>
    %286 = arith.addf %283, %285 : vector<64x128xf32>
    %287 = arith.addf %286, %128 : vector<64x128xf32>
    %288 = arith.addf %287, %281 : vector<64x128xf32>
    %289 = vector.broadcast %20 : vector<1x128xf32> to vector<64x128xf32>
    %290 = arith.addf %288, %289 : vector<64x128xf32>
    %c0_166 = arith.constant 0 : index
    %c0_167 = arith.constant 0 : index
    %291 = vector.load %arg7[%c0_166, %c0_167] : memref<64x128xf32, #tpu.memory_space<vmem>>, vector<64x128xf32>
    tpu.vector_store %arg7[%c0_166, %c0_167], %290 {strides = array<i32>} : memref<64x128xf32, #tpu.memory_space<vmem>>, vector<64x128xf32>,
    return
  }
  func.func @transform_0(%arg0: i32) -> (i32, i32) {
    %c0_i32 = arith.constant 0 : i32
    %c0_i32_0 = arith.constant 0 : i32
    return %arg0, %c0_i32 : i32, i32
  }
  func.func @transform_1(%arg0: i32) -> (i32, i32) {
    %c0_i32 = arith.constant 0 : i32
    %c0_i32_0 = arith.constant 0 : i32
    %c0_i32_1 = arith.constant 0 : i32
    return %c0_i32, %c0_i32_0 : i32, i32
  }
  func.func @transform_2(%arg0: i32) -> (i32, i32, i32) {
    %c0_i32 = arith.constant 0 : i32
    %c0_i32_0 = arith.constant 0 : i32
    %c0_i32_1 = arith.constant 0 : i32
    %c0_i32_2 = arith.constant 0 : i32
    return %c0_i32, %c0_i32_0, %c0_i32_1 : i32, i32, i32
  }
  func.func @transform_3(%arg0: i32) -> (i32, i32, i32) {
    %c0_i32 = arith.constant 0 : i32
    %c0_i32_0 = arith.constant 0 : i32
    %c0_i32_1 = arith.constant 0 : i32
    %c0_i32_2 = arith.constant 0 : i32
    return %c0_i32, %c0_i32_0, %c0_i32_1 : i32, i32, i32
  }
  func.func @transform_4(%arg0: i32) -> (i32, i32, i32) {
    %c0_i32 = arith.constant 0 : i32
    %c0_i32_0 = arith.constant 0 : i32
    %c0_i32_1 = arith.constant 0 : i32
    %c0_i32_2 = arith.constant 0 : i32
    return %c0_i32, %c0_i32_0, %c0_i32_1 : i32, i32, i32
  }
  func.func @transform_5(%arg0: i32) -> (i32, i32) {
    %c0_i32 = arith.constant 0 : i32
    %c0_i32_0 = arith.constant 0 : i32
    %c0_i32_1 = arith.constant 0 : i32
    return %c0_i32, %c0_i32_0 : i32, i32
  }
  func.func @transform_6(%arg0: i32) -> (i32, i32) {
    %c0_i32 = arith.constant 0 : i32
    %c0_i32_0 = arith.constant 0 : i32
    return %arg0, %c0_i32 : i32, i32
  }
}

</mosaic_0001>

<llo_original>
// kernel: inception_a.1
$region0: #{inception_a.1}
  #allocation0 [shape = 'u32[]', space=smem, size = 0x4, offset = 0x4, fixed_abs, tag = 'smem constant byte address 0x4 - core index']
  #allocation1 [shape = 'u32[72,128]{1,0:T(1,128)}', space=vmem, size = 0x9000, scoped, tag = 'internal scratch']
  %s0 = inlined_call_operand.vmem [shape: bf16[128,128], index: 0, kind: input, shape index: {}]
  %s1 = inlined_call_operand.vmem [shape: bf16[128,128], index: 1, kind: input, shape index: {}]
  %s2 = inlined_call_operand.vmem [shape: f32[9,16,128], index: 2, kind: input, shape index: {}]
  %s3 = inlined_call_operand.vmem [shape: f32[9,8,16], index: 3, kind: input, shape index: {}]
  %s4 = inlined_call_operand.vmem [shape: f32[9,16,128], index: 4, kind: input, shape index: {}]
  %s5 = inlined_call_operand.vmem [shape: f32[5,128], index: 5, kind: input, shape index: {}]
  %s6 = inlined_call_operand.hbm [shape: f32[128,128], index: 6, kind: output, shape index: {}]
  %s7 = sld [smem:[#allocation0]]
  $region57: #{inception_a.1} parent=0
    _
  %s9 = ssub.s32 1, %s7
  %s10 = scalar_select 0, %s9, %s7
  $region1: #{inception_a.1} parent=0
    #allocation2 [shape = 'u8[65536]{0}', space=vmem, size = 0x10000, scoped, tag = 'output window, operand 0']
    #allocation3 [shape = 's32[2]{0}', space=sflag, size = 0x8, scoped, tag = 'scoped memory for inception_a.1']
    %11 = vsyncpa [#allocation3], 0
    %s12 = scalar_lea.sflag [#allocation3], 1
    %13 = vsyncpa %s12, 0
    loop: start=0, step=1, limit=4
    $region2: #{inception_a.1} parent=1 // loop_pre_header
      _
    $region3: #{inception_a.1} parent=1 // loop_header
      %s15 = sphi 0, %s19
      %p16 = scmp.ge.s32.totalorder %s15, 4
      %s25 = sphi 0, %s27
      %s28 = sphi 0, %s25
      %s29 = sphi 0, %s28
      %s45 = sphi 0, %s29
      %s49 = sphi 0, %s49
      %s51 = sphi 0, %s49
      %s52 = sphi 0, %s51
      %s66 = sphi 0, %s52
      %s70 = sphi 0, %s70
      %s72 = sphi 0, %s70
      %s73 = sphi 0, %s72
      %s87 = sphi 0, %s73
      %s91 = sphi 0, %s91
      %s93 = sphi 0, %s91
      %s94 = sphi 0, %s93
      %s108 = sphi 0, %s94
      %s112 = sphi 0, %s112
      %s114 = sphi 0, %s112
      %s115 = sphi 0, %s114
      %s129 = sphi 0, %s115
      %s133 = sphi 0, %s133
      %s135 = sphi 0, %s133
      %s136 = sphi 0, %s135
      %s150 = sphi 0, %s136
      %s156 = sphi 0, %s158
      %s159 = sphi 0, %s156
      %s160 = sphi 0, %s159
      %s176 = sphi 0, %s160
    $region4: #{inception_a.1} parent=1 // loop_header_branch
      %18 = sbr.rel (%p16) target = $region8
    $region5: #{inception_a.1} parent=1 // loop_body
      %s20 = ssub.s32 %s15, 1
      %s21 = ssub.s32 %s15, 2
      %s22 = sadd.s32 %s15, 1
      %s23 = ssub.s32 %s15, %s22
      %p24 = scmp.eq.s32.totalorder %s23, 0
      %s26 = sadd.s32 %s25, 1
      %s27 = scalar_select %p24, %s25, %s26
      %p30 = pneg %p24
      %p31 = scmp.eq.s32.totalorder %s15, 1
      %p32 = por %p30, %p31
      %p33 = scmp.ne.s32.totalorder %s25, %s28
      %p34 = scmp.eq.s32.totalorder %s15, 0
      %p35 = por %p33, %p34
      %p36 = scmp.ne.s32.totalorder %s25, %s28
      %p37 = scmp.eq.s32.totalorder %s20, 1
      %p38 = por %p36, %p37
      %p39 = scmp.ne.s32.totalorder %s28, %s29
      %p40 = scmp.eq.s32.totalorder %s20, 0
      %p41 = por %p39, %p40
      %p42 = scmp.ne.s32.totalorder %s28, %s29
      %p43 = scmp.eq.s32.totalorder %s21, 1
      %p44 = por %p42, %p43
      %p46 = scmp.ne.s32.totalorder %s29, %s45
      %p47 = scmp.eq.s32.totalorder %s21, 0
      %p48 = por %p46, %p47
      %s50 = sadd.s32 %s49, 1
      %p53 = scmp.eq.s32.totalorder %s15, 1
      %p54 = scmp.ne.s32.totalorder %s49, %s51
      %p55 = scmp.eq.s32.totalorder %s15, 0
      %p56 = por %p54, %p55
      %p57 = scmp.ne.s32.totalorder %s49, %s51
      %p58 = scmp.eq.s32.totalorder %s20, 1
      %p59 = por %p57, %p58
      %p60 = scmp.ne.s32.totalorder %s51, %s52
      %p61 = scmp.eq.s32.totalorder %s20, 0
      %p62 = por %p60, %p61
      %p63 = scmp.ne.s32.totalorder %s51, %s52
      %p64 = scmp.eq.s32.totalorder %s21, 1
      %p65 = por %p63, %p64
      %p67 = scmp.ne.s32.totalorder %s52, %s66
      %p68 = scmp.eq.s32.totalorder %s21, 0
      %p69 = por %p67, %p68
      %s71 = sadd.s32 %s70, 1
      %p74 = scmp.eq.s32.totalorder %s15, 1
      %p75 = scmp.ne.s32.totalorder %s70, %s72
      %p76 = scmp.eq.s32.totalorder %s15, 0
      %p77 = por %p75, %p76
      %p78 = scmp.ne.s32.totalorder %s70, %s72
      %p79 = scmp.eq.s32.totalorder %s20, 1
      %p80 = por %p78, %p79
      %p81 = scmp.ne.s32.totalorder %s72, %s73
      %p82 = scmp.eq.s32.totalorder %s20, 0
      %p83 = por %p81, %p82
      %p84 = scmp.ne.s32.totalorder %s72, %s73
      %p85 = scmp.eq.s32.totalorder %s21, 1
      %p86 = por %p84, %p85
      %p88 = scmp.ne.s32.totalorder %s73, %s87
      %p89 = scmp.eq.s32.totalorder %s21, 0
      %p90 = por %p88, %p89
      %s92 = sadd.s32 %s91, 1
      %p95 = scmp.eq.s32.totalorder %s15, 1
      %p96 = scmp.ne.s32.totalorder %s91, %s93
      %p97 = scmp.eq.s32.totalorder %s15, 0
      %p98 = por %p96, %p97
      %p99 = scmp.ne.s32.totalorder %s91, %s93
      %p100 = scmp.eq.s32.totalorder %s20, 1
      %p101 = por %p99, %p100
      %p102 = scmp.ne.s32.totalorder %s93, %s94
      %p103 = scmp.eq.s32.totalorder %s20, 0
      %p104 = por %p102, %p103
      %p105 = scmp.ne.s32.totalorder %s93, %s94
      %p106 = scmp.eq.s32.totalorder %s21, 1
      %p107 = por %p105, %p106
      %p109 = scmp.ne.s32.totalorder %s94, %s108
      %p110 = scmp.eq.s32.totalorder %s21, 0
      %p111 = por %p109, %p110
      %s113 = sadd.s32 %s112, 1
      %p116 = scmp.eq.s32.totalorder %s15, 1
      %p117 = scmp.ne.s32.totalorder %s112, %s114
      %p118 = scmp.eq.s32.totalorder %s15, 0
      %p119 = por %p117, %p118
      %p120 = scmp.ne.s32.totalorder %s112, %s114
      %p121 = scmp.eq.s32.totalorder %s20, 1
      %p122 = por %p120, %p121
      %p123 = scmp.ne.s32.totalorder %s114, %s115
      %p124 = scmp.eq.s32.totalorder %s20, 0
      %p125 = por %p123, %p124
      %p126 = scmp.ne.s32.totalorder %s114, %s115
      %p127 = scmp.eq.s32.totalorder %s21, 1
      %p128 = por %p126, %p127
      %p130 = scmp.ne.s32.totalorder %s115, %s129
      %p131 = scmp.eq.s32.totalorder %s21, 0
      %p132 = por %p130, %p131
      %s134 = sadd.s32 %s133, 1
      %p137 = scmp.eq.s32.totalorder %s15, 1
      %p138 = scmp.ne.s32.totalorder %s133, %s135
      %p139 = scmp.eq.s32.totalorder %s15, 0
      %p140 = por %p138, %p139
      %p141 = scmp.ne.s32.totalorder %s133, %s135
      %p142 = scmp.eq.s32.totalorder %s20, 1
      %p143 = por %p141, %p142
      %p144 = scmp.ne.s32.totalorder %s135, %s136
      %p145 = scmp.eq.s32.totalorder %s20, 0
      %p146 = por %p144, %p145
      %p147 = scmp.ne.s32.totalorder %s135, %s136
      %p148 = scmp.eq.s32.totalorder %s21, 1
      %p149 = por %p147, %p148
      %p151 = scmp.ne.s32.totalorder %s136, %s150
      %p152 = scmp.eq.s32.totalorder %s21, 0
      %p153 = por %p151, %p152
      %s154 = ssub.s32 %s15, %s22
      %p155 = scmp.eq.s32.totalorder %s154, 0
      %s157 = sadd.s32 %s156, 1
      %s158 = scalar_select %p155, %s156, %s157
      %p161 = pneg %p155
      %p162 = scmp.eq.s32.totalorder %s15, 1
      %p163 = por %p161, %p162
      %p164 = scmp.ne.s32.totalorder %s156, %s159
      %p165 = scmp.eq.s32.totalorder %s15, 0
      %p166 = por %p164, %p165
      %p167 = scmp.ne.s32.totalorder %s156, %s159
      %p168 = scmp.eq.s32.totalorder %s20, 1
      %p169 = por %p167, %p168
      %p170 = scmp.ne.s32.totalorder %s159, %s160
      %p171 = scmp.eq.s32.totalorder %s20, 0
      %p172 = por %p170, %p171
      %p173 = scmp.ne.s32.totalorder %s159, %s160
      %p174 = scmp.eq.s32.totalorder %s21, 1
      %p175 = por %p173, %p174
      %p177 = scmp.ne.s32.totalorder %s160, %s176
      %p178 = scmp.eq.s32.totalorder %s21, 0
      %p179 = por %p177, %p178
      %p180 = scmp.le.s32.totalorder 1, %s15
      %p181 = scmp.lt.s32.totalorder %s15, 3
      %p182 = pnand %p180, %p181
      %p183 = pneg %p182
      // Predicated region
      $region9: #{inception_a.1} parent=5 // pred_check
        _
      $region10: #{inception_a.1} parent=5 // pred_check_branch
        %185 = sbr.rel (%p182) target = $region12
      $region11: #{inception_a.1} parent=5 // pred_region
        %s186 = ssub.s32 %s15, 1
        // Predicated region
        $region13: #{inception_a.1} parent=11 // pred_check
          %p187 = pneg %p62
        $region14: #{inception_a.1} parent=11 // pred_check_branch
          %189 = sbr.rel (%p187) target = $region16
        $region15: #{inception_a.1} parent=11 // pred_region
          _
        $region16: #{inception_a.1} parent=11 // pred_fallthru
          _
        // Predicated region
        $region17: #{inception_a.1} parent=11 // pred_check
          %p190 = pneg %p83
        $region18: #{inception_a.1} parent=11 // pred_check_branch
          %192 = sbr.rel (%p190) target = $region20
        $region19: #{inception_a.1} parent=11 // pred_region
          _
        $region20: #{inception_a.1} parent=11 // pred_fallthru
          _
        // Predicated region
        $region21: #{inception_a.1} parent=11 // pred_check
          %p193 = pneg %p104
        $region22: #{inception_a.1} parent=11 // pred_check_branch
          %195 = sbr.rel (%p193) target = $region24
        $region23: #{inception_a.1} parent=11 // pred_region
          _
        $region24: #{inception_a.1} parent=11 // pred_fallthru
          _
        // Predicated region
        $region25: #{inception_a.1} parent=11 // pred_check
          %p196 = pneg %p125
        $region26: #{inception_a.1} parent=11 // pred_check_branch
          %198 = sbr.rel (%p196) target = $region28
        $region27: #{inception_a.1} parent=11 // pred_region
          _
        $region28: #{inception_a.1} parent=11 // pred_fallthru
          _
        // Predicated region
        $region29: #{inception_a.1} parent=11 // pred_check
          %p199 = pneg %p146
        $region30: #{inception_a.1} parent=11 // pred_check_branch
          %201 = sbr.rel (%p199) target = $region32
        $region31: #{inception_a.1} parent=11 // pred_region
          _
        $region32: #{inception_a.1} parent=11 // pred_fallthru
          _
      $region12: #{inception_a.1} parent=5 // pred_fallthru
        _
      %p202 = scmp.lt.s32.totalorder %s15, 2
      // Predicated region
      $region33: #{inception_a.1} parent=5 // pred_check
        %p203 = pneg %p202
      $region34: #{inception_a.1} parent=5 // pred_check_branch
        %205 = sbr.rel (%p203) target = $region36
      $region35: #{inception_a.1} parent=5 // pred_region
        // Predicated region
        $region37: #{inception_a.1} parent=35 // pred_check
          %p206 = pneg %p35
        $region38: #{inception_a.1} parent=35 // pred_check_branch
          %208 = sbr.rel (%p206) target = $region40
        $region39: #{inception_a.1} parent=35 // pred_region
          %s209 = smul.u32 8, %s15
          %p210 = scmp.lt.s32.totalorder %s209, 15
          %s211 = scalar_select %p210, %s209, 15
          %s212 = smul.addr %s211, 4
          %s213 = scalar_lea.vmem %s0, %s212
          %s214 = smul.u32 8, %s15
        $region40: #{inception_a.1} parent=35 // pred_fallthru
          _
      $region36: #{inception_a.1} parent=5 // pred_fallthru
        _
      %p215 = scmp.le.s32.totalorder 1, %s15
      %p216 = scmp.lt.s32.totalorder %s15, 3
      %p217 = pnand %p215, %p216
      %p218 = pneg %p217
      // Predicated region
      $region41: #{inception_a.1} parent=5 // pred_check
        _
      $region42: #{inception_a.1} parent=5 // pred_check_branch
        %220 = sbr.rel (%p217) target = $region44
      $region43: #{inception_a.1} parent=5 // pred_region
        %s221 = ssub.s32 %s15, 1
        %s222 = smul.u32 8, %s20
        %p223 = scmp.lt.s32.totalorder %s222, 15
        %s224 = scalar_select %p223, %s222, 15
        %s225 = smul.addr %s224, 4
        %s226 = scalar_lea.vmem %s0, %s225
        %p227 = pneg %p41
        %p228 = pneg %p38
        %p229 = pneg %p62
        %p230 = pneg %p59
        %p231 = pneg %p83
        %p232 = pneg %p80
        %p233 = pneg %p104
        %p234 = pneg %p101
        %p235 = pneg %p125
        %p236 = pneg %p122
        %p237 = pneg %p146
        %p238 = pneg %p143
        %p239 = pneg %p172
        %p240 = pneg %p169
        %s241 = sand.u32 %s159, 1
        %s242 = scalar_lea.sflag [#allocation3], %s241
        %s243 = sand.u32 %s159, 1
        %s244 = smul.addr %s243, 64
        %s245 = scalar_lea.vmem [#allocation2], %s244
        %s246 = smul.u32 8, %s20
        %p247 = scmp.lt.s32.totalorder %s246, 15
        %s248 = scalar_select %p247, %s246, 15
        %s249 = smul.addr %s248, 4
        %s250 = scalar_lea.vmem %s0, %s249
        %s251 = smul.u32 8, %s20
        %s252 = smul.u32 8, %s20
        %v253 = vlaneseq
        %v254 = vshrl.u32 %v253, 7
        %v255 = vadd.s32 %v254, 8
        %v256 = vadd.s32 %v254, 16
        %v257 = vadd.s32 %v254, 24
        %v258 = vadd.s32 %v254, 32
        %v259 = vadd.s32 %v254, 40
        %v260 = vadd.s32 %v254, 48
        %v261 = vadd.s32 %v254, 56
        %v262 = vand.u32 %v254, 7
        %v263 = vand.u32 %v255, 7
        %v264 = vand.u32 %v256, 7
        %v265 = vand.u32 %v257, 7
        %v266 = vand.u32 %v258, 7
        %v267 = vand.u32 %v259, 7
        %v268 = vand.u32 %v260, 7
        %v269 = vand.u32 %v261, 7
        %v270 = vshrl.u32 %v254, 3
        %v271 = vshrl.u32 %v255, 3
        %v272 = vshrl.u32 %v256, 3
        %v273 = vshrl.u32 %v257, 3
        %v274 = vshrl.u32 %v258, 3
        %v275 = vshrl.u32 %v259, 3
        %v276 = vshrl.u32 %v260, 3
        %v277 = vshrl.u32 %v261, 3
        %v278 = vand.u32 %v270, 7
        %v279 = vand.u32 %v271, 7
        %v280 = vand.u32 %v272, 7
        %v281 = vand.u32 %v273, 7
        %v282 = vand.u32 %v274, 7
        %v283 = vand.u32 %v275, 7
        %v284 = vand.u32 %v276, 7
        %v285 = vand.u32 %v277, 7
        %vm286 = vcmp.gt.s32.totalorder %v278, 0
        %vm287 = vcmp.gt.s32.totalorder %v279, 0
        %vm288 = vcmp.gt.s32.totalorder %v280, 0
        %vm289 = vcmp.gt.s32.totalorder %v281, 0
        %vm290 = vcmp.gt.s32.totalorder %v282, 0
        %vm291 = vcmp.gt.s32.totalorder %v283, 0
        %vm292 = vcmp.gt.s32.totalorder %v284, 0
        %vm293 = vcmp.gt.s32.totalorder %v285, 0
        %vm294 = vcmp.lt.s32.totalorder %v278, 7
        %vm295 = vcmp.lt.s32.totalorder %v279, 7
        %vm296 = vcmp.lt.s32.totalorder %v280, 7
        %vm297 = vcmp.lt.s32.totalorder %v281, 7
        %vm298 = vcmp.lt.s32.totalorder %v282, 7
        %vm299 = vcmp.lt.s32.totalorder %v283, 7
        %vm300 = vcmp.lt.s32.totalorder %v284, 7
        %vm301 = vcmp.lt.s32.totalorder %v285, 7
        %vm302 = vcmp.gt.s32.totalorder %v262, 0
        %vm303 = vcmp.gt.s32.totalorder %v263, 0
        %vm304 = vcmp.gt.s32.totalorder %v264, 0
        %vm305 = vcmp.gt.s32.totalorder %v265, 0
        %vm306 = vcmp.gt.s32.totalorder %v266, 0
        %vm307 = vcmp.gt.s32.totalorder %v267, 0
        %vm308 = vcmp.gt.s32.totalorder %v268, 0
        %vm309 = vcmp.gt.s32.totalorder %v269, 0
        %vm310 = vcmp.lt.s32.totalorder %v262, 7
        %vm311 = vcmp.lt.s32.totalorder %v263, 7
        %vm312 = vcmp.lt.s32.totalorder %v264, 7
        %vm313 = vcmp.lt.s32.totalorder %v265, 7
        %vm314 = vcmp.lt.s32.totalorder %v266, 7
        %vm315 = vcmp.lt.s32.totalorder %v267, 7
        %vm316 = vcmp.lt.s32.totalorder %v268, 7
        %vm317 = vcmp.lt.s32.totalorder %v269, 7
        %vm318 = vmand %vm286, %vm302
        %vm319 = vmand %vm287, %vm303
        %vm320 = vmand %vm288, %vm304
        %vm321 = vmand %vm289, %vm305
        %vm322 = vmand %vm290, %vm306
        %vm323 = vmand %vm291, %vm307
        %vm324 = vmand %vm292, %vm308
        %vm325 = vmand %vm293, %vm309
        %vm326 = vmand %vm286, %vm310
        %vm327 = vmand %vm287, %vm311
        %vm328 = vmand %vm288, %vm312
        %vm329 = vmand %vm289, %vm313
        %vm330 = vmand %vm290, %vm314
        %vm331 = vmand %vm291, %vm315
        %vm332 = vmand %vm292, %vm316
        %vm333 = vmand %vm293, %vm317
        %vm334 = vmand %vm294, %vm302
        %vm335 = vmand %vm295, %vm303
        %vm336 = vmand %vm296, %vm304
        %vm337 = vmand %vm297, %vm305
        %vm338 = vmand %vm298, %vm306
        %vm339 = vmand %vm299, %vm307
        %vm340 = vmand %vm300, %vm308
        %vm341 = vmand %vm301, %vm309
        %vm342 = vmand %vm294, %vm310
        %vm343 = vmand %vm295, %vm311
        %vm344 = vmand %vm296, %vm312
        %vm345 = vmand %vm297, %vm313
        %vm346 = vmand %vm298, %vm314
        %vm347 = vmand %vm299, %vm315
        %vm348 = vmand %vm300, %vm316
        %vm349 = vmand %vm301, %vm317
        %v350 = vld [vmem:[%s5] sm:$0x1]
        %v351 = vld [vmem:[%s5 + $0x1] sm:$0x1]
        %v352 = vld [vmem:[%s5 + $0x2] sm:$0x1]
        %v353 = vld [vmem:[%s5 + $0x3] sm:$0x1]
        %v354 = vld [vmem:[%s5 + $0x4] sm:$0x1]
        %v355 = vld [vmem:[%s250] sm:$0xf]
        %v356 = vld [vmem:[%s250 + $0x4] sm:$0xf]
        %v357 = vld [vmem:[%s250 + $0x8] sm:$0xf]
        %v358 = vld [vmem:[%s250 + $0xc] sm:$0xf]
        %v359 = vld [vmem:[%s250 + $0x10] sm:$0xf]
        %v360 = vld [vmem:[%s250 + $0x14] sm:$0xf]
        %v361 = vld [vmem:[%s250 + $0x18] sm:$0xf]
        %v362 = vld [vmem:[%s250 + $0x1c] sm:$0xf]
        %v363 = vld [vmem:[%s1] sm:$0xf]
        %v364 = vld [vmem:[%s1 + $0x4] sm:$0xf]
        %v365 = vld [vmem:[%s1 + $0x8] sm:$0xf]
        %v366 = vld [vmem:[%s1 + $0xc] sm:$0xf]
        %v367 = vld [vmem:[%s1 + $0x10] sm:$0xf]
        %v368 = vld [vmem:[%s1 + $0x14] sm:$0xf]
        %v369 = vld [vmem:[%s1 + $0x18] sm:$0xf]
        %v370 = vld [vmem:[%s1 + $0x1c] sm:$0xf]
        %v371 = vld [vmem:[%s1 + $0x20] sm:$0xf]
        %v372 = vld [vmem:[%s1 + $0x24] sm:$0xf]
        %v373 = vld [vmem:[%s1 + $0x28] sm:$0xf]
        %v374 = vld [vmem:[%s1 + $0x2c] sm:$0xf]
        %v375 = vld [vmem:[%s1 + $0x30] sm:$0xf]
        %v376 = vld [vmem:[%s1 + $0x34] sm:$0xf]
        %v377 = vld [vmem:[%s1 + $0x38] sm:$0xf]
        %v378 = vld [vmem:[%s1 + $0x3c] sm:$0xf]
        %v379 = vperm.slane %v350, 0
        %v388 = vunpack.c.l.b16 %v355
        %v389 = vunpack.c.l.b16 %v356
        %v390 = vunpack.c.l.b16 %v357
        %v391 = vunpack.c.l.b16 %v358
        %v392 = vunpack.c.l.b16 %v359
        %v393 = vunpack.c.l.b16 %v360
        %v394 = vunpack.c.l.b16 %v361
        %v395 = vunpack.c.l.b16 %v362
        %v396 = vpack.c.b16 %v389, %v388
        %v397 = vpack.c.b16 %v391, %v390
        %v398 = vpack.c.b16 %v393, %v392
        %v399 = vpack.c.b16 %v395, %v394
        %v420 = vunpack.c.l.b16 %v363
        %v421 = vunpack.c.l.b16 %v364
        %v422 = vunpack.c.l.b16 %v365
        %v423 = vunpack.c.l.b16 %v366
        %v424 = vunpack.c.l.b16 %v367
        %v425 = vunpack.c.l.b16 %v368
        %v426 = vunpack.c.l.b16 %v369
        %v427 = vunpack.c.l.b16 %v370
        %v428 = vunpack.c.l.b16 %v371
        %v429 = vunpack.c.l.b16 %v372
        %v430 = vunpack.c.l.b16 %v373
        %v431 = vunpack.c.l.b16 %v374
        %v432 = vunpack.c.l.b16 %v375
        %v433 = vunpack.c.l.b16 %v376
        %v434 = vunpack.c.l.b16 %v377
        %v435 = vunpack.c.l.b16 %v378
        %v436 = vpack.c.b16 %v421, %v420
        %v437 = vpack.c.b16 %v423, %v422
        %v438 = vpack.c.b16 %v425, %v424
        %v439 = vpack.c.b16 %v427, %v426
        %v440 = vpack.c.b16 %v429, %v428
        %v441 = vpack.c.b16 %v431, %v430
        %v442 = vpack.c.b16 %v433, %v432
        %v443 = vpack.c.b16 %v435, %v434
        %452 = vmatpush.bf16.msra.mxu0 %v443
        %453 = vmatpush.bf16.msra.mxu0 %v442
        %454 = vmatpush.bf16.msra.mxu0 %v441
        %455 = vmatpush.bf16.msra.mxu0 %v440
        %456 = vmatpush.bf16.msra.mxu0 %v439
        %457 = vmatpush.bf16.msra.mxu0 %v438
        %458 = vmatpush.bf16.msra.mxu0 %v437
        %459 = vmatpush.bf16.msra.mxu0 %v436
        %460 = vmatmul.bf16.gmra.mxu0 %v396
        %v461 = vpop.f32.mrf.mxu0
        %v462 = vadd.f32 %v379, %v461
        %v463 = vpop.f32.mrf.mxu0
        %v464 = vadd.f32 %v379, %v463
        %465 = vmatmul.bf16.gmra.mxu0 %v397
        %v466 = vpop.f32.mrf.mxu0
        %v467 = vadd.f32 %v379, %v466
        %v468 = vpop.f32.mrf.mxu0
        %v469 = vadd.f32 %v379, %v468
        %470 = vmatmul.bf16.gmra.mxu0 %v398
        %v471 = vpop.f32.mrf.mxu0
        %v472 = vadd.f32 %v379, %v471
        %v473 = vpop.f32.mrf.mxu0
        %v474 = vadd.f32 %v379, %v473
        %475 = vmatmul.bf16.gmra.mxu0 %v399
        %v476 = vpop.f32.mrf.mxu0
        %v477 = vadd.f32 %v379, %v476
        %v478 = vpop.f32.mrf.mxu0
        %v479 = vadd.f32 %v379, %v478
        %480 = vdwg.mxu0
        %v481 = vrot.slane %v462, 7
        %v482 = vrot.slane %v464, 7
        %v483 = vrot.slane %v467, 7
        %v484 = vrot.slane %v469, 7
        %v485 = vrot.slane %v472, 7
        %v486 = vrot.slane %v474, 7
        %v487 = vrot.slane %v477, 7
        %v488 = vrot.slane %v479, 7
        %vm489 = vcmp.lt.s32.totalorder %v254, 1
        %v490 = vsel %vm489, %v487, %v488
        %v491 = vsel %vm489, %v486, %v487
        %v492 = vsel %vm489, %v485, %v486
        %v493 = vsel %vm489, %v484, %v485
        %v494 = vsel %vm489, %v483, %v484
        %v495 = vsel %vm489, %v482, %v483
        %v496 = vsel %vm489, %v481, %v482
        %v497 = vsel %vm489, %v488, %v481
        %v498 = vsel %vm302, 1, 0
        %v499 = vsel %vm303, 1, 0
        %v500 = vsel %vm304, 1, 0
        %v501 = vsel %vm305, 1, 0
        %v502 = vsel %vm306, 1, 0
        %v503 = vsel %vm307, 1, 0
        %v504 = vsel %vm308, 1, 0
        %v505 = vsel %vm309, 1, 0
        %vm506 = vcmp.eq.s32.totalorder %v498, 1
        %vm507 = vcmp.eq.s32.totalorder %v499, 1
        %vm508 = vcmp.eq.s32.totalorder %v500, 1
        %vm509 = vcmp.eq.s32.totalorder %v501, 1
        %vm510 = vcmp.eq.s32.totalorder %v502, 1
        %vm511 = vcmp.eq.s32.totalorder %v503, 1
        %vm512 = vcmp.eq.s32.totalorder %v504, 1
        %vm513 = vcmp.eq.s32.totalorder %v505, 1
        %v514 = vsel %vm506, %v497, 0.0
        %v515 = vsel %vm507, %v496, 0.0
        %v516 = vsel %vm508, %v495, 0.0
        %v517 = vsel %vm509, %v494, 0.0
        %v518 = vsel %vm510, %v493, 0.0
        %v519 = vsel %vm511, %v492, 0.0
        %v520 = vsel %vm512, %v491, 0.0
        %v521 = vsel %vm513, %v490, 0.0
        %v522 = vadd.f32 %v462, %v514
        %v523 = vadd.f32 %v464, %v515
        %v524 = vadd.f32 %v467, %v516
        %v525 = vadd.f32 %v469, %v517
        %v526 = vadd.f32 %v472, %v518
        %v527 = vadd.f32 %v474, %v519
        %v528 = vadd.f32 %v477, %v520
        %v529 = vadd.f32 %v479, %v521
        %v530 = vrot.slane %v462, 1
        %v531 = vrot.slane %v464, 1
        %v532 = vrot.slane %v467, 1
        %v533 = vrot.slane %v469, 1
        %v534 = vrot.slane %v472, 1
        %v535 = vrot.slane %v474, 1
        %v536 = vrot.slane %v477, 1
        %v537 = vrot.slane %v479, 1
        %vm538 = vcmp.lt.s32.totalorder %v254, 7
        %v539 = vsel %vm538, %v536, %v537
        %v540 = vsel %vm538, %v535, %v536
        %v541 = vsel %vm538, %v534, %v535
        %v542 = vsel %vm538, %v533, %v534
        %v543 = vsel %vm538, %v532, %v533
        %v544 = vsel %vm538, %v531, %v532
        %v545 = vsel %vm538, %v530, %v531
        %v546 = vsel %vm538, %v537, %v530
        %v547 = vsel %vm310, 1, 0
        %v548 = vsel %vm311, 1, 0
        %v549 = vsel %vm312, 1, 0
        %v550 = vsel %vm313, 1, 0
        %v551 = vsel %vm314, 1, 0
        %v552 = vsel %vm315, 1, 0
        %v553 = vsel %vm316, 1, 0
        %v554 = vsel %vm317, 1, 0
        %vm555 = vcmp.eq.s32.totalorder %v547, 1
        %vm556 = vcmp.eq.s32.totalorder %v548, 1
        %vm557 = vcmp.eq.s32.totalorder %v549, 1
        %vm558 = vcmp.eq.s32.totalorder %v550, 1
        %vm559 = vcmp.eq.s32.totalorder %v551, 1
        %vm560 = vcmp.eq.s32.totalorder %v552, 1
        %vm561 = vcmp.eq.s32.totalorder %v553, 1
        %vm562 = vcmp.eq.s32.totalorder %v554, 1
        %v563 = vsel %vm555, %v545, 0.0
        %v564 = vsel %vm556, %v544, 0.0
        %v565 = vsel %vm557, %v543, 0.0
        %v566 = vsel %vm558, %v542, 0.0
        %v567 = vsel %vm559, %v541, 0.0
        %v568 = vsel %vm560, %v540, 0.0
        %v569 = vsel %vm561, %v539, 0.0
        %v570 = vsel %vm562, %v546, 0.0
        %v571 = vadd.f32 %v522, %v563
        %v572 = vadd.f32 %v523, %v564
        %v573 = vadd.f32 %v524, %v565
        %v574 = vadd.f32 %v525, %v566
        %v575 = vadd.f32 %v526, %v567
        %v576 = vadd.f32 %v527, %v568
        %v577 = vadd.f32 %v528, %v569
        %v578 = vadd.f32 %v529, %v570
        %v579 = vsel %vm286, 1, 0
        %v580 = vsel %vm287, 1, 0
        %v581 = vsel %vm288, 1, 0
        %v582 = vsel %vm289, 1, 0
        %v583 = vsel %vm290, 1, 0
        %v584 = vsel %vm291, 1, 0
        %v585 = vsel %vm292, 1, 0
        %v586 = vsel %vm293, 1, 0
        %vm587 = vcmp.eq.s32.totalorder %v579, 1
        %vm588 = vcmp.eq.s32.totalorder %v580, 1
        %vm589 = vcmp.eq.s32.totalorder %v581, 1
        %vm590 = vcmp.eq.s32.totalorder %v582, 1
        %vm591 = vcmp.eq.s32.totalorder %v583, 1
        %vm592 = vcmp.eq.s32.totalorder %v584, 1
        %vm593 = vcmp.eq.s32.totalorder %v585, 1
        %vm594 = vcmp.eq.s32.totalorder %v586, 1
        %v595 = vsel %vm587, %v578, 0.0
        %v596 = vsel %vm588, %v571, 0.0
        %v597 = vsel %vm589, %v572, 0.0
        %v598 = vsel %vm590, %v573, 0.0
        %v599 = vsel %vm591, %v574, 0.0
        %v600 = vsel %vm592, %v575, 0.0
        %v601 = vsel %vm593, %v576, 0.0
        %v602 = vsel %vm594, %v577, 0.0
        %v603 = vadd.f32 %v571, %v595
        %v604 = vadd.f32 %v572, %v596
        %v605 = vadd.f32 %v573, %v597
        %v606 = vadd.f32 %v574, %v598
        %v607 = vadd.f32 %v575, %v599
        %v608 = vadd.f32 %v576, %v600
        %v609 = vadd.f32 %v577, %v601
        %v610 = vadd.f32 %v578, %v602
        %v611 = vsel %vm294, 1, 0
        %v612 = vsel %vm295, 1, 0
        %v613 = vsel %vm296, 1, 0
        %v614 = vsel %vm297, 1, 0
        %v615 = vsel %vm298, 1, 0
        %v616 = vsel %vm299, 1, 0
        %v617 = vsel %vm300, 1, 0
        %v618 = vsel %vm301, 1, 0
        %vm619 = vcmp.eq.s32.totalorder %v611, 1
        %vm620 = vcmp.eq.s32.totalorder %v612, 1
        %vm621 = vcmp.eq.s32.totalorder %v613, 1
        %vm622 = vcmp.eq.s32.totalorder %v614, 1
        %vm623 = vcmp.eq.s32.totalorder %v615, 1
        %vm624 = vcmp.eq.s32.totalorder %v616, 1
        %vm625 = vcmp.eq.s32.totalorder %v617, 1
        %vm626 = vcmp.eq.s32.totalorder %v618, 1
        %v627 = vsel %vm619, %v572, 0.0
        %v628 = vsel %vm620, %v573, 0.0
        %v629 = vsel %vm621, %v574, 0.0
        %v630 = vsel %vm622, %v575, 0.0
        %v631 = vsel %vm623, %v576, 0.0
        %v632 = vsel %vm624, %v577, 0.0
        %v633 = vsel %vm625, %v578, 0.0
        %v634 = vsel %vm626, %v571, 0.0
        %v635 = vadd.f32 %v603, %v627
        %v636 = vadd.f32 %v604, %v628
        %v637 = vadd.f32 %v605, %v629
        %v638 = vadd.f32 %v606, %v630
        %v639 = vadd.f32 %v607, %v631
        %v640 = vadd.f32 %v608, %v632
        %v641 = vadd.f32 %v609, %v633
        %v642 = vadd.f32 %v610, %v634
        %s643 = scalar_lea.vmem %s2, 64
        %v644 = vld [vmem:[%s643] sm:$0xff]
        %v645 = vld [vmem:[%s643 + $0x8] sm:$0xff]
        %654 = vrot.lane.b32.xlu0 %v462, 96
        %v655 = vpop.permute.xlu0 %654
        %656 = vrot.lane.b32.xlu0 %v464, 96
        %v657 = vpop.permute.xlu0 %656
        %658 = vrot.lane.b32.xlu0 %v467, 96
        %v659 = vpop.permute.xlu0 %658
        %660 = vrot.lane.b32.xlu0 %v469, 96
        %v661 = vpop.permute.xlu0 %660
        %662 = vrot.lane.b32.xlu0 %v472, 96
        %v663 = vpop.permute.xlu0 %662
        %664 = vrot.lane.b32.xlu0 %v474, 96
        %v665 = vpop.permute.xlu0 %664
        %666 = vrot.lane.b32.xlu0 %v477, 96
        %v667 = vpop.permute.xlu0 %666
        %668 = vrot.lane.b32.xlu0 %v479, 96
        %v669 = vpop.permute.xlu0 %668
        %v678 = vrot.slane %v655, 7
        %v679 = vrot.slane %v657, 7
        %v680 = vrot.slane %v659, 7
        %v681 = vrot.slane %v661, 7
        %v682 = vrot.slane %v663, 7
        %v683 = vrot.slane %v665, 7
        %v684 = vrot.slane %v667, 7
        %v685 = vrot.slane %v669, 7
        %v686 = vsel %vm489, %v684, %v685
        %v687 = vsel %vm489, %v683, %v684
        %v688 = vsel %vm489, %v682, %v683
        %v689 = vsel %vm489, %v681, %v682
        %v690 = vsel %vm489, %v680, %v681
        %v691 = vsel %vm489, %v679, %v680
        %v692 = vsel %vm489, %v678, %v679
        %v693 = vsel %vm489, %v685, %v678
        %v694 = vsel %vm318, 1, 0
        %v695 = vsel %vm319, 1, 0
        %v696 = vsel %vm320, 1, 0
        %v697 = vsel %vm321, 1, 0
        %v698 = vsel %vm322, 1, 0
        %v699 = vsel %vm323, 1, 0
        %v700 = vsel %vm324, 1, 0
        %v701 = vsel %vm325, 1, 0
        %vm702 = vcmp.eq.s32.totalorder %v694, 1
        %vm703 = vcmp.eq.s32.totalorder %v695, 1
        %vm704 = vcmp.eq.s32.totalorder %v696, 1
        %vm705 = vcmp.eq.s32.totalorder %v697, 1
        %vm706 = vcmp.eq.s32.totalorder %v698, 1
        %vm707 = vcmp.eq.s32.totalorder %v699, 1
        %vm708 = vcmp.eq.s32.totalorder %v700, 1
        %vm709 = vcmp.eq.s32.totalorder %v701, 1
        %v710 = vsel %vm702, %v686, 0.0
        %v711 = vsel %vm703, %v693, 0.0
        %v712 = vsel %vm704, %v692, 0.0
        %v713 = vsel %vm705, %v691, 0.0
        %v714 = vsel %vm706, %v690, 0.0
        %v715 = vsel %vm707, %v689, 0.0
        %v716 = vsel %vm708, %v688, 0.0
        %v717 = vsel %vm709, %v687, 0.0
        %v718 = vld [vmem:[%s2] sm:$0xff]
        %v719 = vld [vmem:[%s2 + $0x8] sm:$0xff]
        %vm720 = vcmask 130048
        %v722 = vsel %vm720, %v710, 0
        %v725 = vsel %vm720, %v711, 0
        %v728 = vsel %vm720, %v712, 0
        %v731 = vsel %vm720, %v713, 0
        %v734 = vsel %vm720, %v714, 0
        %v737 = vsel %vm720, %v715, 0
        %v740 = vsel %vm720, %v716, 0
        %v743 = vsel %vm720, %v717, 0
        %745 = vmatpush.msra.mxu0 0.0
        %746 = vmatpush.msra.mxu0 0.0
        %747 = vmatpush.msra.mxu0 0.0
        %748 = vmatpush.msra.mxu0 0.0
        %749 = vmatpush.msra.mxu0 0.0
        %750 = vmatpush.msra.mxu0 0.0
        %751 = vmatpush.msra.mxu0 0.0
        %752 = vmatpush.msra.mxu0 0.0
        %753 = vmatpush.msra.mxu0 0.0
        %754 = vmatpush.msra.mxu0 0.0
        %755 = vmatpush.msra.mxu0 0.0
        %756 = vmatpush.msra.mxu0 0.0
        %757 = vmatpush.msra.mxu0 0.0
        %758 = vmatpush.msra.mxu0 0.0
        %759 = vmatpush.msra.mxu0 %v719
        %760 = vmatpush.msra.mxu0 %v718
        %761 = vmatmul.f32.gmra.mxu0 %v722
        %v762 = vpop.f32.mrf.mxu0
        %v763 = vadd.f32 0.0, %v762
        %764 = vmatmul.f32.gmra.mxu0 %v725
        %v765 = vpop.f32.mrf.mxu0
        %v766 = vadd.f32 0.0, %v765
        %767 = vmatmul.f32.gmra.mxu0 %v728
        %v768 = vpop.f32.mrf.mxu0
        %v769 = vadd.f32 0.0, %v768
        %770 = vmatmul.f32.gmra.mxu0 %v731
        %v771 = vpop.f32.mrf.mxu0
        %v772 = vadd.f32 0.0, %v771
        %773 = vmatmul.f32.gmra.mxu0 %v734
        %v774 = vpop.f32.mrf.mxu0
        %v775 = vadd.f32 0.0, %v774
        %776 = vmatmul.f32.gmra.mxu0 %v737
        %v777 = vpop.f32.mrf.mxu0
        %v778 = vadd.f32 0.0, %v777
        %779 = vmatmul.f32.gmra.mxu0 %v740
        %v780 = vpop.f32.mrf.mxu0
        %v781 = vadd.f32 0.0, %v780
        %782 = vmatmul.f32.gmra.mxu0 %v743
        %v783 = vpop.f32.mrf.mxu0
        %v784 = vadd.f32 0.0, %v783
        %785 = vdwg.mxu0
        %v786 = vsel %vm720, %v655, 0
        %v788 = vsel %vm720, %v657, 0
        %v790 = vsel %vm720, %v659, 0
        %v792 = vsel %vm720, %v661, 0
        %v794 = vsel %vm720, %v663, 0
        %v796 = vsel %vm720, %v665, 0
        %v798 = vsel %vm720, %v667, 0
        %v800 = vsel %vm720, %v669, 0
        %802 = vmatpush.msra.mxu0 0.0
        %803 = vmatpush.msra.mxu0 0.0
        %804 = vmatpush.msra.mxu0 0.0
        %805 = vmatpush.msra.mxu0 0.0
        %806 = vmatpush.msra.mxu0 0.0
        %807 = vmatpush.msra.mxu0 0.0
        %808 = vmatpush.msra.mxu0 0.0
        %809 = vmatpush.msra.mxu0 0.0
        %810 = vmatpush.msra.mxu0 0.0
        %811 = vmatpush.msra.mxu0 0.0
        %812 = vmatpush.msra.mxu0 0.0
        %813 = vmatpush.msra.mxu0 0.0
        %814 = vmatpush.msra.mxu0 0.0
        %815 = vmatpush.msra.mxu0 0.0
        %816 = vmatpush.msra.mxu0 %v645
        %817 = vmatpush.msra.mxu0 %v644
        %818 = vmatmul.f32.gmra.mxu0 %v786
        %v819 = vpop.f32.mrf.mxu0
        %v820 = vadd.f32 %v763, %v819
        %821 = vmatmul.f32.gmra.mxu0 %v788
        %v822 = vpop.f32.mrf.mxu0
        %v823 = vadd.f32 %v766, %v822
        %824 = vmatmul.f32.gmra.mxu0 %v790
        %v825 = vpop.f32.mrf.mxu0
        %v826 = vadd.f32 %v769, %v825
        %827 = vmatmul.f32.gmra.mxu0 %v792
        %v828 = vpop.f32.mrf.mxu0
        %v829 = vadd.f32 %v772, %v828
        %830 = vmatmul.f32.gmra.mxu0 %v794
        %v831 = vpop.f32.mrf.mxu0
        %v832 = vadd.f32 %v775, %v831
        %833 = vmatmul.f32.gmra.mxu0 %v796
        %v834 = vpop.f32.mrf.mxu0
        %v835 = vadd.f32 %v778, %v834
        %836 = vmatmul.f32.gmra.mxu0 %v798
        %v837 = vpop.f32.mrf.mxu0
        %v838 = vadd.f32 %v781, %v837
        %839 = vmatmul.f32.gmra.mxu0 %v800
        %v840 = vpop.f32.mrf.mxu0
        %v841 = vadd.f32 %v784, %v840
        %842 = vdwg.mxu0
        %v843 = vsel %vm587, %v669, 0.0
        %v844 = vsel %vm588, %v655, 0.0
        %v845 = vsel %vm589, %v657, 0.0
        %v846 = vsel %vm590, %v659, 0.0
        %v847 = vsel %vm591, %v661, 0.0
        %v848 = vsel %vm592, %v663, 0.0
        %v849 = vsel %vm593, %v665, 0.0
        %v850 = vsel %vm594, %v667, 0.0
        %s851 = scalar_lea.vmem %s2, 16
        %v852 = vld [vmem:[%s851] sm:$0xff]
        %v853 = vld [vmem:[%s851 + $0x8] sm:$0xff]
        %v855 = vsel %vm720, %v843, 0
        %v858 = vsel %vm720, %v844, 0
        %v861 = vsel %vm720, %v845, 0
        %v864 = vsel %vm720, %v846, 0
        %v867 = vsel %vm720, %v847, 0
        %v870 = vsel %vm720, %v848, 0
        %v873 = vsel %vm720, %v849, 0
        %v876 = vsel %vm720, %v850, 0
        %878 = vmatpush.msra.mxu0 0.0
        %879 = vmatpush.msra.mxu0 0.0
        %880 = vmatpush.msra.mxu0 0.0
        %881 = vmatpush.msra.mxu0 0.0
        %882 = vmatpush.msra.mxu0 0.0
        %883 = vmatpush.msra.mxu0 0.0
        %884 = vmatpush.msra.mxu0 0.0
        %885 = vmatpush.msra.mxu0 0.0
        %886 = vmatpush.msra.mxu0 0.0
        %887 = vmatpush.msra.mxu0 0.0
        %888 = vmatpush.msra.mxu0 0.0
        %889 = vmatpush.msra.mxu0 0.0
        %890 = vmatpush.msra.mxu0 0.0
        %891 = vmatpush.msra.mxu0 0.0
        %892 = vmatpush.msra.mxu0 %v853
        %893 = vmatpush.msra.mxu0 %v852
        %894 = vmatmul.f32.gmra.mxu0 %v855
        %v895 = vpop.f32.mrf.mxu0
        %v896 = vadd.f32 0.0, %v895
        %897 = vmatmul.f32.gmra.mxu0 %v858
        %v898 = vpop.f32.mrf.mxu0
        %v899 = vadd.f32 0.0, %v898
        %900 = vmatmul.f32.gmra.mxu0 %v861
        %v901 = vpop.f32.mrf.mxu0
        %v902 = vadd.f32 0.0, %v901
        %903 = vmatmul.f32.gmra.mxu0 %v864
        %v904 = vpop.f32.mrf.mxu0
        %v905 = vadd.f32 0.0, %v904
        %906 = vmatmul.f32.gmra.mxu0 %v867
        %v907 = vpop.f32.mrf.mxu0
        %v908 = vadd.f32 0.0, %v907
        %909 = vmatmul.f32.gmra.mxu0 %v870
        %v910 = vpop.f32.mrf.mxu0
        %v911 = vadd.f32 0.0, %v910
        %912 = vmatmul.f32.gmra.mxu0 %v873
        %v913 = vpop.f32.mrf.mxu0
        %v914 = vadd.f32 0.0, %v913
        %915 = vmatmul.f32.gmra.mxu0 %v876
        %v916 = vpop.f32.mrf.mxu0
        %v917 = vadd.f32 0.0, %v916
        %918 = vdwg.mxu0
        %v919 = vadd.f32 %v820, %v896
        %v920 = vadd.f32 %v823, %v899
        %v921 = vadd.f32 %v826, %v902
        %v922 = vadd.f32 %v829, %v905
        %v923 = vadd.f32 %v832, %v908
        %v924 = vadd.f32 %v835, %v911
        %v925 = vadd.f32 %v838, %v914
        %v926 = vadd.f32 %v841, %v917
        %v927 = vrot.slane %v655, 1
        %v928 = vrot.slane %v657, 1
        %v929 = vrot.slane %v659, 1
        %v930 = vrot.slane %v661, 1
        %v931 = vrot.slane %v663, 1
        %v932 = vrot.slane %v665, 1
        %v933 = vrot.slane %v667, 1
        %v934 = vrot.slane %v669, 1
        %v935 = vsel %vm538, %v933, %v934
        %v936 = vsel %vm538, %v932, %v933
        %v937 = vsel %vm538, %v931, %v932
        %v938 = vsel %vm538, %v930, %v931
        %v939 = vsel %vm538, %v929, %v930
        %v940 = vsel %vm538, %v928, %v929
        %v941 = vsel %vm538, %v927, %v928
        %v942 = vsel %vm538, %v934, %v927
        %v943 = vsel %vm326, 1, 0
        %v944 = vsel %vm327, 1, 0
        %v945 = vsel %vm328, 1, 0
        %v946 = vsel %vm329, 1, 0
        %v947 = vsel %vm330, 1, 0
        %v948 = vsel %vm331, 1, 0
        %v949 = vsel %vm332, 1, 0
        %v950 = vsel %vm333, 1, 0
        %vm951 = vcmp.eq.s32.totalorder %v943, 1
        %vm952 = vcmp.eq.s32.totalorder %v944, 1
        %vm953 = vcmp.eq.s32.totalorder %v945, 1
        %vm954 = vcmp.eq.s32.totalorder %v946, 1
        %vm955 = vcmp.eq.s32.totalorder %v947, 1
        %vm956 = vcmp.eq.s32.totalorder %v948, 1
        %vm957 = vcmp.eq.s32.totalorder %v949, 1
        %vm958 = vcmp.eq.s32.totalorder %v950, 1
        %v959 = vsel %vm951, %v942, 0.0
        %v960 = vsel %vm952, %v941, 0.0
        %v961 = vsel %vm953, %v940, 0.0
        %v962 = vsel %vm954, %v939, 0.0
        %v963 = vsel %vm955, %v938, 0.0
        %v964 = vsel %vm956, %v937, 0.0
        %v965 = vsel %vm957, %v936, 0.0
        %v966 = vsel %vm958, %v935, 0.0
        %s967 = scalar_lea.vmem %s2, 32
        %v968 = vld [vmem:[%s967] sm:$0xff]
        %v969 = vld [vmem:[%s967 + $0x8] sm:$0xff]
        %v971 = vsel %vm720, %v959, 0
        %v974 = vsel %vm720, %v960, 0
        %v977 = vsel %vm720, %v961, 0
        %v980 = vsel %vm720, %v962, 0
        %v983 = vsel %vm720, %v963, 0
        %v986 = vsel %vm720, %v964, 0
        %v989 = vsel %vm720, %v965, 0
        %v992 = vsel %vm720, %v966, 0
        %994 = vmatpush.msra.mxu0 0.0
        %995 = vmatpush.msra.mxu0 0.0
        %996 = vmatpush.msra.mxu0 0.0
        %997 = vmatpush.msra.mxu0 0.0
        %998 = vmatpush.msra.mxu0 0.0
        %999 = vmatpush.msra.mxu0 0.0
        %1000 = vmatpush.msra.mxu0 0.0
        %1001 = vmatpush.msra.mxu0 0.0
        %1002 = vmatpush.msra.mxu0 0.0
        %1003 = vmatpush.msra.mxu0 0.0
        %1004 = vmatpush.msra.mxu0 0.0
        %1005 = vmatpush.msra.mxu0 0.0
        %1006 = vmatpush.msra.mxu0 0.0
        %1007 = vmatpush.msra.mxu0 0.0
        %1008 = vmatpush.msra.mxu0 %v969
        %1009 = vmatpush.msra.mxu0 %v968
        %1010 = vmatmul.f32.gmra.mxu0 %v971
        %v1011 = vpop.f32.mrf.mxu0
        %v1012 = vadd.f32 0.0, %v1011
        %1013 = vmatmul.f32.gmra.mxu0 %v974
        %v1014 = vpop.f32.mrf.mxu0
        %v1015 = vadd.f32 0.0, %v1014
        %1016 = vmatmul.f32.gmra.mxu0 %v977
        %v1017 = vpop.f32.mrf.mxu0
        %v1018 = vadd.f32 0.0, %v1017
        %1019 = vmatmul.f32.gmra.mxu0 %v980
        %v1020 = vpop.f32.mrf.mxu0
        %v1021 = vadd.f32 0.0, %v1020
        %1022 = vmatmul.f32.gmra.mxu0 %v983
        %v1023 = vpop.f32.mrf.mxu0
        %v1024 = vadd.f32 0.0, %v1023
        %1025 = vmatmul.f32.gmra.mxu0 %v986
        %v1026 = vpop.f32.mrf.mxu0
        %v1027 = vadd.f32 0.0, %v1026
        %1028 = vmatmul.f32.gmra.mxu0 %v989
        %v1029 = vpop.f32.mrf.mxu0
        %v1030 = vadd.f32 0.0, %v1029
        %1031 = vmatmul.f32.gmra.mxu0 %v992
        %v1032 = vpop.f32.mrf.mxu0
        %v1033 = vadd.f32 0.0, %v1032
        %1034 = vdwg.mxu0
        %v1035 = vadd.f32 %v919, %v1012
        %v1036 = vadd.f32 %v920, %v1015
        %v1037 = vadd.f32 %v921, %v1018
        %v1038 = vadd.f32 %v922, %v1021
        %v1039 = vadd.f32 %v923, %v1024
        %v1040 = vadd.f32 %v924, %v1027
        %v1041 = vadd.f32 %v925, %v1030
        %v1042 = vadd.f32 %v926, %v1033
        %v1043 = vsel %vm506, %v693, 0.0
        %v1044 = vsel %vm507, %v692, 0.0
        %v1045 = vsel %vm508, %v691, 0.0
        %v1046 = vsel %vm509, %v690, 0.0
        %v1047 = vsel %vm510, %v689, 0.0
        %v1048 = vsel %vm511, %v688, 0.0
        %v1049 = vsel %vm512, %v687, 0.0
        %v1050 = vsel %vm513, %v686, 0.0
        %s1051 = scalar_lea.vmem %s2, 48
        %v1052 = vld [vmem:[%s1051] sm:$0xff]
        %v1053 = vld [vmem:[%s1051 + $0x8] sm:$0xff]
        %v1055 = vsel %vm720, %v1043, 0
        %v1058 = vsel %vm720, %v1044, 0
        %v1061 = vsel %vm720, %v1045, 0
        %v1064 = vsel %vm720, %v1046, 0
        %v1067 = vsel %vm720, %v1047, 0
        %v1070 = vsel %vm720, %v1048, 0
        %v1073 = vsel %vm720, %v1049, 0
        %v1076 = vsel %vm720, %v1050, 0
        %1078 = vmatpush.msra.mxu0 0.0
        %1079 = vmatpush.msra.mxu0 0.0
        %1080 = vmatpush.msra.mxu0 0.0
        %1081 = vmatpush.msra.mxu0 0.0
        %1082 = vmatpush.msra.mxu0 0.0
        %1083 = vmatpush.msra.mxu0 0.0
        %1084 = vmatpush.msra.mxu0 0.0
        %1085 = vmatpush.msra.mxu0 0.0
        %1086 = vmatpush.msra.mxu0 0.0
        %1087 = vmatpush.msra.mxu0 0.0
        %1088 = vmatpush.msra.mxu0 0.0
        %1089 = vmatpush.msra.mxu0 0.0
        %1090 = vmatpush.msra.mxu0 0.0
        %1091 = vmatpush.msra.mxu0 0.0
        %1092 = vmatpush.msra.mxu0 %v1053
        %1093 = vmatpush.msra.mxu0 %v1052
        %1094 = vmatmul.f32.gmra.mxu0 %v1055
        %v1095 = vpop.f32.mrf.mxu0
        %v1096 = vadd.f32 0.0, %v1095
        %1097 = vmatmul.f32.gmra.mxu0 %v1058
        %v1098 = vpop.f32.mrf.mxu0
        %v1099 = vadd.f32 0.0, %v1098
        %1100 = vmatmul.f32.gmra.mxu0 %v1061
        %v1101 = vpop.f32.mrf.mxu0
        %v1102 = vadd.f32 0.0, %v1101
        %1103 = vmatmul.f32.gmra.mxu0 %v1064
        %v1104 = vpop.f32.mrf.mxu0
        %v1105 = vadd.f32 0.0, %v1104
        %1106 = vmatmul.f32.gmra.mxu0 %v1067
        %v1107 = vpop.f32.mrf.mxu0
        %v1108 = vadd.f32 0.0, %v1107
        %1109 = vmatmul.f32.gmra.mxu0 %v1070
        %v1110 = vpop.f32.mrf.mxu0
        %v1111 = vadd.f32 0.0, %v1110
        %1112 = vmatmul.f32.gmra.mxu0 %v1073
        %v1113 = vpop.f32.mrf.mxu0
        %v1114 = vadd.f32 0.0, %v1113
        %1115 = vmatmul.f32.gmra.mxu0 %v1076
        %v1116 = vpop.f32.mrf.mxu0
        %v1117 = vadd.f32 0.0, %v1116
        %1118 = vdwg.mxu0
        %v1119 = vadd.f32 %v1035, %v1096
        %v1120 = vadd.f32 %v1036, %v1099
        %v1121 = vadd.f32 %v1037, %v1102
        %v1122 = vadd.f32 %v1038, %v1105
        %v1123 = vadd.f32 %v1039, %v1108
        %v1124 = vadd.f32 %v1040, %v1111
        %v1125 = vadd.f32 %v1041, %v1114
        %v1126 = vadd.f32 %v1042, %v1117
        %v1127 = vsel %vm555, %v941, 0.0
        %v1128 = vsel %vm556, %v940, 0.0
        %v1129 = vsel %vm557, %v939, 0.0
        %v1130 = vsel %vm558, %v938, 0.0
        %v1131 = vsel %vm559, %v937, 0.0
        %v1132 = vsel %vm560, %v936, 0.0
        %v1133 = vsel %vm561, %v935, 0.0
        %v1134 = vsel %vm562, %v942, 0.0
        %s1135 = scalar_lea.vmem %s2, 80
        %v1136 = vld [vmem:[%s1135] sm:$0xff]
        %v1137 = vld [vmem:[%s1135 + $0x8] sm:$0xff]
        %v1139 = vsel %vm720, %v1127, 0
        %v1142 = vsel %vm720, %v1128, 0
        %v1145 = vsel %vm720, %v1129, 0
        %v1148 = vsel %vm720, %v1130, 0
        %v1151 = vsel %vm720, %v1131, 0
        %v1154 = vsel %vm720, %v1132, 0
        %v1157 = vsel %vm720, %v1133, 0
        %v1160 = vsel %vm720, %v1134, 0
        %1162 = vmatpush.msra.mxu0 0.0
        %1163 = vmatpush.msra.mxu0 0.0
        %1164 = vmatpush.msra.mxu0 0.0
        %1165 = vmatpush.msra.mxu0 0.0
        %1166 = vmatpush.msra.mxu0 0.0
        %1167 = vmatpush.msra.mxu0 0.0
        %1168 = vmatpush.msra.mxu0 0.0
        %1169 = vmatpush.msra.mxu0 0.0
        %1170 = vmatpush.msra.mxu0 0.0
        %1171 = vmatpush.msra.mxu0 0.0
        %1172 = vmatpush.msra.mxu0 0.0
        %1173 = vmatpush.msra.mxu0 0.0
        %1174 = vmatpush.msra.mxu0 0.0
        %1175 = vmatpush.msra.mxu0 0.0
        %1176 = vmatpush.msra.mxu0 %v1137
        %1177 = vmatpush.msra.mxu0 %v1136
        %1178 = vmatmul.f32.gmra.mxu0 %v1139
        %v1179 = vpop.f32.mrf.mxu0
        %v1180 = vadd.f32 0.0, %v1179
        %1181 = vmatmul.f32.gmra.mxu0 %v1142
        %v1182 = vpop.f32.mrf.mxu0
        %v1183 = vadd.f32 0.0, %v1182
        %1184 = vmatmul.f32.gmra.mxu0 %v1145
        %v1185 = vpop.f32.mrf.mxu0
        %v1186 = vadd.f32 0.0, %v1185
        %1187 = vmatmul.f32.gmra.mxu0 %v1148
        %v1188 = vpop.f32.mrf.mxu0
        %v1189 = vadd.f32 0.0, %v1188
        %1190 = vmatmul.f32.gmra.mxu0 %v1151
        %v1191 = vpop.f32.mrf.mxu0
        %v1192 = vadd.f32 0.0, %v1191
        %1193 = vmatmul.f32.gmra.mxu0 %v1154
        %v1194 = vpop.f32.mrf.mxu0
        %v1195 = vadd.f32 0.0, %v1194
        %1196 = vmatmul.f32.gmra.mxu0 %v1157
        %v1197 = vpop.f32.mrf.mxu0
        %v1198 = vadd.f32 0.0, %v1197
        %1199 = vmatmul.f32.gmra.mxu0 %v1160
        %v1200 = vpop.f32.mrf.mxu0
        %v1201 = vadd.f32 0.0, %v1200
        %1202 = vdwg.mxu0
        %v1203 = vadd.f32 %v1119, %v1180
        %v1204 = vadd.f32 %v1120, %v1183
        %v1205 = vadd.f32 %v1121, %v1186
        %v1206 = vadd.f32 %v1122, %v1189
        %v1207 = vadd.f32 %v1123, %v1192
        %v1208 = vadd.f32 %v1124, %v1195
        %v1209 = vadd.f32 %v1125, %v1198
        %v1210 = vadd.f32 %v1126, %v1201
        %v1211 = vsel %vm334, 1, 0
        %v1212 = vsel %vm335, 1, 0
        %v1213 = vsel %vm336, 1, 0
        %v1214 = vsel %vm337, 1, 0
        %v1215 = vsel %vm338, 1, 0
        %v1216 = vsel %vm339, 1, 0
        %v1217 = vsel %vm340, 1, 0
        %v1218 = vsel %vm341, 1, 0
        %vm1219 = vcmp.eq.s32.totalorder %v1211, 1
        %vm1220 = vcmp.eq.s32.totalorder %v1212, 1
        %vm1221 = vcmp.eq.s32.totalorder %v1213, 1
        %vm1222 = vcmp.eq.s32.totalorder %v1214, 1
        %vm1223 = vcmp.eq.s32.totalorder %v1215, 1
        %vm1224 = vcmp.eq.s32.totalorder %v1216, 1
        %vm1225 = vcmp.eq.s32.totalorder %v1217, 1
        %vm1226 = vcmp.eq.s32.totalorder %v1218, 1
        %v1227 = vsel %vm1219, %v692, 0.0
        %v1228 = vsel %vm1220, %v691, 0.0
        %v1229 = vsel %vm1221, %v690, 0.0
        %v1230 = vsel %vm1222, %v689, 0.0
        %v1231 = vsel %vm1223, %v688, 0.0
        %v1232 = vsel %vm1224, %v687, 0.0
        %v1233 = vsel %vm1225, %v686, 0.0
        %v1234 = vsel %vm1226, %v693, 0.0
        %s1235 = scalar_lea.vmem %s2, 96
        %v1236 = vld [vmem:[%s1235] sm:$0xff]
        %v1237 = vld [vmem:[%s1235 + $0x8] sm:$0xff]
        %v1239 = vsel %vm720, %v1227, 0
        %v1242 = vsel %vm720, %v1228, 0
        %v1245 = vsel %vm720, %v1229, 0
        %v1248 = vsel %vm720, %v1230, 0
        %v1251 = vsel %vm720, %v1231, 0
        %v1254 = vsel %vm720, %v1232, 0
        %v1257 = vsel %vm720, %v1233, 0
        %v1260 = vsel %vm720, %v1234, 0
        %1262 = vmatpush.msra.mxu0 0.0
        %1263 = vmatpush.msra.mxu0 0.0
        %1264 = vmatpush.msra.mxu0 0.0
        %1265 = vmatpush.msra.mxu0 0.0
        %1266 = vmatpush.msra.mxu0 0.0
        %1267 = vmatpush.msra.mxu0 0.0
        %1268 = vmatpush.msra.mxu0 0.0
        %1269 = vmatpush.msra.mxu0 0.0
        %1270 = vmatpush.msra.mxu0 0.0
        %1271 = vmatpush.msra.mxu0 0.0
        %1272 = vmatpush.msra.mxu0 0.0
        %1273 = vmatpush.msra.mxu0 0.0
        %1274 = vmatpush.msra.mxu0 0.0
        %1275 = vmatpush.msra.mxu0 0.0
        %1276 = vmatpush.msra.mxu0 %v1237
        %1277 = vmatpush.msra.mxu0 %v1236
        %1278 = vmatmul.f32.gmra.mxu0 %v1239
        %v1279 = vpop.f32.mrf.mxu0
        %v1280 = vadd.f32 0.0, %v1279
        %1281 = vmatmul.f32.gmra.mxu0 %v1242
        %v1282 = vpop.f32.mrf.mxu0
        %v1283 = vadd.f32 0.0, %v1282
        %1284 = vmatmul.f32.gmra.mxu0 %v1245
        %v1285 = vpop.f32.mrf.mxu0
        %v1286 = vadd.f32 0.0, %v1285
        %1287 = vmatmul.f32.gmra.mxu0 %v1248
        %v1288 = vpop.f32.mrf.mxu0
        %v1289 = vadd.f32 0.0, %v1288
        %1290 = vmatmul.f32.gmra.mxu0 %v1251
        %v1291 = vpop.f32.mrf.mxu0
        %v1292 = vadd.f32 0.0, %v1291
        %1293 = vmatmul.f32.gmra.mxu0 %v1254
        %v1294 = vpop.f32.mrf.mxu0
        %v1295 = vadd.f32 0.0, %v1294
        %1296 = vmatmul.f32.gmra.mxu0 %v1257
        %v1297 = vpop.f32.mrf.mxu0
        %v1298 = vadd.f32 0.0, %v1297
        %1299 = vmatmul.f32.gmra.mxu0 %v1260
        %v1300 = vpop.f32.mrf.mxu0
        %v1301 = vadd.f32 0.0, %v1300
        %1302 = vdwg.mxu0
        %v1303 = vadd.f32 %v1203, %v1280
        %v1304 = vadd.f32 %v1204, %v1283
        %v1305 = vadd.f32 %v1205, %v1286
        %v1306 = vadd.f32 %v1206, %v1289
        %v1307 = vadd.f32 %v1207, %v1292
        %v1308 = vadd.f32 %v1208, %v1295
        %v1309 = vadd.f32 %v1209, %v1298
        %v1310 = vadd.f32 %v1210, %v1301
        %v1311 = vsel %vm619, %v657, 0.0
        %v1312 = vsel %vm620, %v659, 0.0
        %v1313 = vsel %vm621, %v661, 0.0
        %v1314 = vsel %vm622, %v663, 0.0
        %v1315 = vsel %vm623, %v665, 0.0
        %v1316 = vsel %vm624, %v667, 0.0
        %v1317 = vsel %vm625, %v669, 0.0
        %v1318 = vsel %vm626, %v655, 0.0
        %s1319 = scalar_lea.vmem %s2, 112
        %v1320 = vld [vmem:[%s1319] sm:$0xff]
        %v1321 = vld [vmem:[%s1319 + $0x8] sm:$0xff]
        %v1323 = vsel %vm720, %v1311, 0
        %v1326 = vsel %vm720, %v1312, 0
        %v1329 = vsel %vm720, %v1313, 0
        %v1332 = vsel %vm720, %v1314, 0
        %v1335 = vsel %vm720, %v1315, 0
        %v1338 = vsel %vm720, %v1316, 0
        %v1341 = vsel %vm720, %v1317, 0
        %v1344 = vsel %vm720, %v1318, 0
        %1346 = vmatpush.msra.mxu0 0.0
        %1347 = vmatpush.msra.mxu0 0.0
        %1348 = vmatpush.msra.mxu0 0.0
        %1349 = vmatpush.msra.mxu0 0.0
        %1350 = vmatpush.msra.mxu0 0.0
        %1351 = vmatpush.msra.mxu0 0.0
        %1352 = vmatpush.msra.mxu0 0.0
        %1353 = vmatpush.msra.mxu0 0.0
        %1354 = vmatpush.msra.mxu0 0.0
        %1355 = vmatpush.msra.mxu0 0.0
        %1356 = vmatpush.msra.mxu0 0.0
        %1357 = vmatpush.msra.mxu0 0.0
        %1358 = vmatpush.msra.mxu0 0.0
        %1359 = vmatpush.msra.mxu0 0.0
        %1360 = vmatpush.msra.mxu0 %v1321
        %1361 = vmatpush.msra.mxu0 %v1320
        %1362 = vmatmul.f32.gmra.mxu0 %v1323
        %v1363 = vpop.f32.mrf.mxu0
        %v1364 = vadd.f32 0.0, %v1363
        %1365 = vmatmul.f32.gmra.mxu0 %v1326
        %v1366 = vpop.f32.mrf.mxu0
        %v1367 = vadd.f32 0.0, %v1366
        %1368 = vmatmul.f32.gmra.mxu0 %v1329
        %v1369 = vpop.f32.mrf.mxu0
        %v1370 = vadd.f32 0.0, %v1369
        %1371 = vmatmul.f32.gmra.mxu0 %v1332
        %v1372 = vpop.f32.mrf.mxu0
        %v1373 = vadd.f32 0.0, %v1372
        %1374 = vmatmul.f32.gmra.mxu0 %v1335
        %v1375 = vpop.f32.mrf.mxu0
        %v1376 = vadd.f32 0.0, %v1375
        %1377 = vmatmul.f32.gmra.mxu0 %v1338
        %v1378 = vpop.f32.mrf.mxu0
        %v1379 = vadd.f32 0.0, %v1378
        %1380 = vmatmul.f32.gmra.mxu0 %v1341
        %v1381 = vpop.f32.mrf.mxu0
        %v1382 = vadd.f32 0.0, %v1381
        %1383 = vmatmul.f32.gmra.mxu0 %v1344
        %v1384 = vpop.f32.mrf.mxu0
        %v1385 = vadd.f32 0.0, %v1384
        %1386 = vdwg.mxu0
        %v1387 = vadd.f32 %v1303, %v1364
        %v1388 = vadd.f32 %v1304, %v1367
        %v1389 = vadd.f32 %v1305, %v1370
        %v1390 = vadd.f32 %v1306, %v1373
        %v1391 = vadd.f32 %v1307, %v1376
        %v1392 = vadd.f32 %v1308, %v1379
        %v1393 = vadd.f32 %v1309, %v1382
        %v1394 = vadd.f32 %v1310, %v1385
        %v1395 = vsel %vm342, 1, 0
        %v1396 = vsel %vm343, 1, 0
        %v1397 = vsel %vm344, 1, 0
        %v1398 = vsel %vm345, 1, 0
        %v1399 = vsel %vm346, 1, 0
        %v1400 = vsel %vm347, 1, 0
        %v1401 = vsel %vm348, 1, 0
        %v1402 = vsel %vm349, 1, 0
        %vm1403 = vcmp.eq.s32.totalorder %v1395, 1
        %vm1404 = vcmp.eq.s32.totalorder %v1396, 1
        %vm1405 = vcmp.eq.s32.totalorder %v1397, 1
        %vm1406 = vcmp.eq.s32.totalorder %v1398, 1
        %vm1407 = vcmp.eq.s32.totalorder %v1399, 1
        %vm1408 = vcmp.eq.s32.totalorder %v1400, 1
        %vm1409 = vcmp.eq.s32.totalorder %v1401, 1
        %vm1410 = vcmp.eq.s32.totalorder %v1402, 1
        %v1411 = vsel %vm1403, %v940, 0.0
        %v1412 = vsel %vm1404, %v939, 0.0
        %v1413 = vsel %vm1405, %v938, 0.0
        %v1414 = vsel %vm1406, %v937, 0.0
        %v1415 = vsel %vm1407, %v936, 0.0
        %v1416 = vsel %vm1408, %v935, 0.0
        %v1417 = vsel %vm1409, %v942, 0.0
        %v1418 = vsel %vm1410, %v941, 0.0
        %s1419 = scalar_lea.vmem %s2, 128
        %v1420 = vld [vmem:[%s1419] sm:$0xff]
        %v1421 = vld [vmem:[%s1419 + $0x8] sm:$0xff]
        %v1423 = vsel %vm720, %v1411, 0
        %v1426 = vsel %vm720, %v1412, 0
        %v1429 = vsel %vm720, %v1413, 0
        %v1432 = vsel %vm720, %v1414, 0
        %v1435 = vsel %vm720, %v1415, 0
        %v1438 = vsel %vm720, %v1416, 0
        %v1441 = vsel %vm720, %v1417, 0
        %v1444 = vsel %vm720, %v1418, 0
        %1446 = vmatpush.msra.mxu0 0.0
        %1447 = vmatpush.msra.mxu0 0.0
        %1448 = vmatpush.msra.mxu0 0.0
        %1449 = vmatpush.msra.mxu0 0.0
        %1450 = vmatpush.msra.mxu0 0.0
        %1451 = vmatpush.msra.mxu0 0.0
        %1452 = vmatpush.msra.mxu0 0.0
        %1453 = vmatpush.msra.mxu0 0.0
        %1454 = vmatpush.msra.mxu0 0.0
        %1455 = vmatpush.msra.mxu0 0.0
        %1456 = vmatpush.msra.mxu0 0.0
        %1457 = vmatpush.msra.mxu0 0.0
        %1458 = vmatpush.msra.mxu0 0.0
        %1459 = vmatpush.msra.mxu0 0.0
        %1460 = vmatpush.msra.mxu0 %v1421
        %1461 = vmatpush.msra.mxu0 %v1420
        %1462 = vmatmul.f32.gmra.mxu0 %v1423
        %v1463 = vpop.f32.mrf.mxu0
        %v1464 = vadd.f32 0.0, %v1463
        %1465 = vmatmul.f32.gmra.mxu0 %v1426
        %v1466 = vpop.f32.mrf.mxu0
        %v1467 = vadd.f32 0.0, %v1466
        %1468 = vmatmul.f32.gmra.mxu0 %v1429
        %v1469 = vpop.f32.mrf.mxu0
        %v1470 = vadd.f32 0.0, %v1469
        %1471 = vmatmul.f32.gmra.mxu0 %v1432
        %v1472 = vpop.f32.mrf.mxu0
        %v1473 = vadd.f32 0.0, %v1472
        %1474 = vmatmul.f32.gmra.mxu0 %v1435
        %v1475 = vpop.f32.mrf.mxu0
        %v1476 = vadd.f32 0.0, %v1475
        %1477 = vmatmul.f32.gmra.mxu0 %v1438
        %v1478 = vpop.f32.mrf.mxu0
        %v1479 = vadd.f32 0.0, %v1478
        %1480 = vmatmul.f32.gmra.mxu0 %v1441
        %v1481 = vpop.f32.mrf.mxu0
        %v1482 = vadd.f32 0.0, %v1481
        %1483 = vmatmul.f32.gmra.mxu0 %v1444
        %v1484 = vpop.f32.mrf.mxu0
        %v1485 = vadd.f32 0.0, %v1484
        %1486 = vdwg.mxu0
        %v1487 = vadd.f32 %v1387, %v1464
        %v1488 = vadd.f32 %v1388, %v1467
        %v1489 = vadd.f32 %v1389, %v1470
        %v1490 = vadd.f32 %v1390, %v1473
        %v1491 = vadd.f32 %v1391, %v1476
        %v1492 = vadd.f32 %v1392, %v1479
        %v1493 = vadd.f32 %v1393, %v1482
        %v1494 = vadd.f32 %v1394, %v1485
        %s1495 = scalar_lea.vmem %s3, 32
        %v1496 = vld [vmem:[%s1495] sm:$0xff]
        %1497 = vrot.lane.b32.xlu0 %v462, 80
        %v1498 = vpop.permute.xlu0 %1497
        %1499 = vrot.lane.b32.xlu0 %v464, 80
        %v1500 = vpop.permute.xlu0 %1499
        %1501 = vrot.lane.b32.xlu0 %v467, 80
        %v1502 = vpop.permute.xlu0 %1501
        %1503 = vrot.lane.b32.xlu0 %v469, 80
        %v1504 = vpop.permute.xlu0 %1503
        %1505 = vrot.lane.b32.xlu0 %v472, 80
        %v1506 = vpop.permute.xlu0 %1505
        %1507 = vrot.lane.b32.xlu0 %v474, 80
        %v1508 = vpop.permute.xlu0 %1507
        %1509 = vrot.lane.b32.xlu0 %v477, 80
        %v1510 = vpop.permute.xlu0 %1509
        %1511 = vrot.lane.b32.xlu0 %v479, 80
        %v1512 = vpop.permute.xlu0 %1511
        %v1521 = vrot.slane %v1498, 7
        %v1522 = vrot.slane %v1500, 7
        %v1523 = vrot.slane %v1502, 7
        %v1524 = vrot.slane %v1504, 7
        %v1525 = vrot.slane %v1506, 7
        %v1526 = vrot.slane %v1508, 7
        %v1527 = vrot.slane %v1510, 7
        %v1528 = vrot.slane %v1512, 7
        %v1529 = vsel %vm489, %v1527, %v1528
        %v1530 = vsel %vm489, %v1526, %v1527
        %v1531 = vsel %vm489, %v1525, %v1526
        %v1532 = vsel %vm489, %v1524, %v1525
        %v1533 = vsel %vm489, %v1523, %v1524
        %v1534 = vsel %vm489, %v1522, %v1523
        %v1535 = vsel %vm489, %v1521, %v1522
        %v1536 = vsel %vm489, %v1528, %v1521
        %v1537 = vsel %vm702, %v1529, 0.0
        %v1538 = vsel %vm703, %v1536, 0.0
        %v1539 = vsel %vm704, %v1535, 0.0
        %v1540 = vsel %vm705, %v1534, 0.0
        %v1541 = vsel %vm706, %v1533, 0.0
        %v1542 = vsel %vm707, %v1532, 0.0
        %v1543 = vsel %vm708, %v1531, 0.0
        %v1544 = vsel %vm709, %v1530, 0.0
        %v1545 = vld [vmem:[%s3] sm:$0xff]
        %vm1546 = vcmask 64512
        %v1548 = vsel %vm1546, %v1537, 0
        %v1551 = vsel %vm1546, %v1538, 0
        %v1554 = vsel %vm1546, %v1539, 0
        %v1557 = vsel %vm1546, %v1540, 0
        %v1560 = vsel %vm1546, %v1541, 0
        %v1563 = vsel %vm1546, %v1542, 0
        %v1566 = vsel %vm1546, %v1543, 0
        %v1569 = vsel %vm1546, %v1544, 0
        %1571 = vmatpush.msra.mxu0 0.0
        %1572 = vmatpush.msra.mxu0 0.0
        %1573 = vmatpush.msra.mxu0 0.0
        %1574 = vmatpush.msra.mxu0 0.0
        %1575 = vmatpush.msra.mxu0 0.0
        %1576 = vmatpush.msra.mxu0 0.0
        %1577 = vmatpush.msra.mxu0 0.0
        %1578 = vmatpush.msra.mxu0 0.0
        %1579 = vmatpush.msra.mxu0 0.0
        %1580 = vmatpush.msra.mxu0 0.0
        %1581 = vmatpush.msra.mxu0 0.0
        %1582 = vmatpush.msra.mxu0 0.0
        %1583 = vmatpush.msra.mxu0 0.0
        %1584 = vmatpush.msra.mxu0 0.0
        %1585 = vmatpush.msra.mxu0 0.0
        %1586 = vmatpush.msra.mxu0 %v1545
        %1587 = vmatmul.f32.gmra.mxu0 %v1548
        %v1588 = vpop.f32.mrf.mxu0
        %v1589 = vadd.f32 0.0, %v1588
        %1590 = vmatmul.f32.gmra.mxu0 %v1551
        %v1591 = vpop.f32.mrf.mxu0
        %v1592 = vadd.f32 0.0, %v1591
        %1593 = vmatmul.f32.gmra.mxu0 %v1554
        %v1594 = vpop.f32.mrf.mxu0
        %v1595 = vadd.f32 0.0, %v1594
        %1596 = vmatmul.f32.gmra.mxu0 %v1557
        %v1597 = vpop.f32.mrf.mxu0
        %v1598 = vadd.f32 0.0, %v1597
        %1599 = vmatmul.f32.gmra.mxu0 %v1560
        %v1600 = vpop.f32.mrf.mxu0
        %v1601 = vadd.f32 0.0, %v1600
        %1602 = vmatmul.f32.gmra.mxu0 %v1563
        %v1603 = vpop.f32.mrf.mxu0
        %v1604 = vadd.f32 0.0, %v1603
        %1605 = vmatmul.f32.gmra.mxu0 %v1566
        %v1606 = vpop.f32.mrf.mxu0
        %v1607 = vadd.f32 0.0, %v1606
        %1608 = vmatmul.f32.gmra.mxu0 %v1569
        %v1609 = vpop.f32.mrf.mxu0
        %v1610 = vadd.f32 0.0, %v1609
        %1611 = vdwg.mxu0
        %v1612 = vsel %vm1546, %v1498, 0
        %v1614 = vsel %vm1546, %v1500, 0
        %v1616 = vsel %vm1546, %v1502, 0
        %v1618 = vsel %vm1546, %v1504, 0
        %v1620 = vsel %vm1546, %v1506, 0
        %v1622 = vsel %vm1546, %v1508, 0
        %v1624 = vsel %vm1546, %v1510, 0
        %v1626 = vsel %vm1546, %v1512, 0
        %1628 = vmatpush.msra.mxu0 0.0
        %1629 = vmatpush.msra.mxu0 0.0
        %1630 = vmatpush.msra.mxu0 0.0
        %1631 = vmatpush.msra.mxu0 0.0
        %1632 = vmatpush.msra.mxu0 0.0
        %1633 = vmatpush.msra.mxu0 0.0
        %1634 = vmatpush.msra.mxu0 0.0
        %1635 = vmatpush.msra.mxu0 0.0
        %1636 = vmatpush.msra.mxu0 0.0
        %1637 = vmatpush.msra.mxu0 0.0
        %1638 = vmatpush.msra.mxu0 0.0
        %1639 = vmatpush.msra.mxu0 0.0
        %1640 = vmatpush.msra.mxu0 0.0
        %1641 = vmatpush.msra.mxu0 0.0
        %1642 = vmatpush.msra.mxu0 0.0
        %1643 = vmatpush.msra.mxu0 %v1496
        %1644 = vmatmul.f32.gmra.mxu0 %v1612
        %v1645 = vpop.f32.mrf.mxu0
        %v1646 = vadd.f32 %v1589, %v1645
        %1647 = vmatmul.f32.gmra.mxu0 %v1614
        %v1648 = vpop.f32.mrf.mxu0
        %v1649 = vadd.f32 %v1592, %v1648
        %1650 = vmatmul.f32.gmra.mxu0 %v1616
        %v1651 = vpop.f32.mrf.mxu0
        %v1652 = vadd.f32 %v1595, %v1651
        %1653 = vmatmul.f32.gmra.mxu0 %v1618
        %v1654 = vpop.f32.mrf.mxu0
        %v1655 = vadd.f32 %v1598, %v1654
        %1656 = vmatmul.f32.gmra.mxu0 %v1620
        %v1657 = vpop.f32.mrf.mxu0
        %v1658 = vadd.f32 %v1601, %v1657
        %1659 = vmatmul.f32.gmra.mxu0 %v1622
        %v1660 = vpop.f32.mrf.mxu0
        %v1661 = vadd.f32 %v1604, %v1660
        %1662 = vmatmul.f32.gmra.mxu0 %v1624
        %v1663 = vpop.f32.mrf.mxu0
        %v1664 = vadd.f32 %v1607, %v1663
        %1665 = vmatmul.f32.gmra.mxu0 %v1626
        %v1666 = vpop.f32.mrf.mxu0
        %v1667 = vadd.f32 %v1610, %v1666
        %1668 = vdwg.mxu0
        %v1669 = vsel %vm587, %v1512, 0.0
        %v1670 = vsel %vm588, %v1498, 0.0
        %v1671 = vsel %vm589, %v1500, 0.0
        %v1672 = vsel %vm590, %v1502, 0.0
        %v1673 = vsel %vm591, %v1504, 0.0
        %v1674 = vsel %vm592, %v1506, 0.0
        %v1675 = vsel %vm593, %v1508, 0.0
        %v1676 = vsel %vm594, %v1510, 0.0
        %s1677 = scalar_lea.vmem %s3, 8
        %v1678 = vld [vmem:[%s1677] sm:$0xff]
        %v1680 = vsel %vm1546, %v1669, 0
        %v1683 = vsel %vm1546, %v1670, 0
        %v1686 = vsel %vm1546, %v1671, 0
        %v1689 = vsel %vm1546, %v1672, 0
        %v1692 = vsel %vm1546, %v1673, 0
        %v1695 = vsel %vm1546, %v1674, 0
        %v1698 = vsel %vm1546, %v1675, 0
        %v1701 = vsel %vm1546, %v1676, 0
        %1703 = vmatpush.msra.mxu0 0.0
        %1704 = vmatpush.msra.mxu0 0.0
        %1705 = vmatpush.msra.mxu0 0.0
        %1706 = vmatpush.msra.mxu0 0.0
        %1707 = vmatpush.msra.mxu0 0.0
        %1708 = vmatpush.msra.mxu0 0.0
        %1709 = vmatpush.msra.mxu0 0.0
        %1710 = vmatpush.msra.mxu0 0.0
        %1711 = vmatpush.msra.mxu0 0.0
        %1712 = vmatpush.msra.mxu0 0.0
        %1713 = vmatpush.msra.mxu0 0.0
        %1714 = vmatpush.msra.mxu0 0.0
        %1715 = vmatpush.msra.mxu0 0.0
        %1716 = vmatpush.msra.mxu0 0.0
        %1717 = vmatpush.msra.mxu0 0.0
        %1718 = vmatpush.msra.mxu0 %v1678
        %1719 = vmatmul.f32.gmra.mxu0 %v1680
        %v1720 = vpop.f32.mrf.mxu0
        %v1721 = vadd.f32 0.0, %v1720
        %1722 = vmatmul.f32.gmra.mxu0 %v1683
        %v1723 = vpop.f32.mrf.mxu0
        %v1724 = vadd.f32 0.0, %v1723
        %1725 = vmatmul.f32.gmra.mxu0 %v1686
        %v1726 = vpop.f32.mrf.mxu0
        %v1727 = vadd.f32 0.0, %v1726
        %1728 = vmatmul.f32.gmra.mxu0 %v1689
        %v1729 = vpop.f32.mrf.mxu0
        %v1730 = vadd.f32 0.0, %v1729
        %1731 = vmatmul.f32.gmra.mxu0 %v1692
        %v1732 = vpop.f32.mrf.mxu0
        %v1733 = vadd.f32 0.0, %v1732
        %1734 = vmatmul.f32.gmra.mxu0 %v1695
        %v1735 = vpop.f32.mrf.mxu0
        %v1736 = vadd.f32 0.0, %v1735
        %1737 = vmatmul.f32.gmra.mxu0 %v1698
        %v1738 = vpop.f32.mrf.mxu0
        %v1739 = vadd.f32 0.0, %v1738
        %1740 = vmatmul.f32.gmra.mxu0 %v1701
        %v1741 = vpop.f32.mrf.mxu0
        %v1742 = vadd.f32 0.0, %v1741
        %1743 = vdwg.mxu0
        %v1744 = vadd.f32 %v1646, %v1721
        %v1745 = vadd.f32 %v1649, %v1724
        %v1746 = vadd.f32 %v1652, %v1727
        %v1747 = vadd.f32 %v1655, %v1730
        %v1748 = vadd.f32 %v1658, %v1733
        %v1749 = vadd.f32 %v1661, %v1736
        %v1750 = vadd.f32 %v1664, %v1739
        %v1751 = vadd.f32 %v1667, %v1742
        %v1752 = vrot.slane %v1498, 1
        %v1753 = vrot.slane %v1500, 1
        %v1754 = vrot.slane %v1502, 1
        %v1755 = vrot.slane %v1504, 1
        %v1756 = vrot.slane %v1506, 1
        %v1757 = vrot.slane %v1508, 1
        %v1758 = vrot.slane %v1510, 1
        %v1759 = vrot.slane %v1512, 1
        %v1760 = vsel %vm538, %v1758, %v1759
        %v1761 = vsel %vm538, %v1757, %v1758
        %v1762 = vsel %vm538, %v1756, %v1757
        %v1763 = vsel %vm538, %v1755, %v1756
        %v1764 = vsel %vm538, %v1754, %v1755
        %v1765 = vsel %vm538, %v1753, %v1754
        %v1766 = vsel %vm538, %v1752, %v1753
        %v1767 = vsel %vm538, %v1759, %v1752
        %v1768 = vsel %vm951, %v1767, 0.0
        %v1769 = vsel %vm952, %v1766, 0.0
        %v1770 = vsel %vm953, %v1765, 0.0
        %v1771 = vsel %vm954, %v1764, 0.0
        %v1772 = vsel %vm955, %v1763, 0.0
        %v1773 = vsel %vm956, %v1762, 0.0
        %v1774 = vsel %vm957, %v1761, 0.0
        %v1775 = vsel %vm958, %v1760, 0.0
        %s1776 = scalar_lea.vmem %s3, 16
        %v1777 = vld [vmem:[%s1776] sm:$0xff]
        %v1779 = vsel %vm1546, %v1768, 0
        %v1782 = vsel %vm1546, %v1769, 0
        %v1785 = vsel %vm1546, %v1770, 0
        %v1788 = vsel %vm1546, %v1771, 0
        %v1791 = vsel %vm1546, %v1772, 0
        %v1794 = vsel %vm1546, %v1773, 0
        %v1797 = vsel %vm1546, %v1774, 0
        %v1800 = vsel %vm1546, %v1775, 0
        %1802 = vmatpush.msra.mxu0 0.0
        %1803 = vmatpush.msra.mxu0 0.0
        %1804 = vmatpush.msra.mxu0 0.0
        %1805 = vmatpush.msra.mxu0 0.0
        %1806 = vmatpush.msra.mxu0 0.0
        %1807 = vmatpush.msra.mxu0 0.0
        %1808 = vmatpush.msra.mxu0 0.0
        %1809 = vmatpush.msra.mxu0 0.0
        %1810 = vmatpush.msra.mxu0 0.0
        %1811 = vmatpush.msra.mxu0 0.0
        %1812 = vmatpush.msra.mxu0 0.0
        %1813 = vmatpush.msra.mxu0 0.0
        %1814 = vmatpush.msra.mxu0 0.0
        %1815 = vmatpush.msra.mxu0 0.0
        %1816 = vmatpush.msra.mxu0 0.0
        %1817 = vmatpush.msra.mxu0 %v1777
        %1818 = vmatmul.f32.gmra.mxu0 %v1779
        %v1819 = vpop.f32.mrf.mxu0
        %v1820 = vadd.f32 0.0, %v1819
        %1821 = vmatmul.f32.gmra.mxu0 %v1782
        %v1822 = vpop.f32.mrf.mxu0
        %v1823 = vadd.f32 0.0, %v1822
        %1824 = vmatmul.f32.gmra.mxu0 %v1785
        %v1825 = vpop.f32.mrf.mxu0
        %v1826 = vadd.f32 0.0, %v1825
        %1827 = vmatmul.f32.gmra.mxu0 %v1788
        %v1828 = vpop.f32.mrf.mxu0
        %v1829 = vadd.f32 0.0, %v1828
        %1830 = vmatmul.f32.gmra.mxu0 %v1791
        %v1831 = vpop.f32.mrf.mxu0
        %v1832 = vadd.f32 0.0, %v1831
        %1833 = vmatmul.f32.gmra.mxu0 %v1794
        %v1834 = vpop.f32.mrf.mxu0
        %v1835 = vadd.f32 0.0, %v1834
        %1836 = vmatmul.f32.gmra.mxu0 %v1797
        %v1837 = vpop.f32.mrf.mxu0
        %v1838 = vadd.f32 0.0, %v1837
        %1839 = vmatmul.f32.gmra.mxu0 %v1800
        %v1840 = vpop.f32.mrf.mxu0
        %v1841 = vadd.f32 0.0, %v1840
        %1842 = vdwg.mxu0
        %v1843 = vadd.f32 %v1744, %v1820
        %v1844 = vadd.f32 %v1745, %v1823
        %v1845 = vadd.f32 %v1746, %v1826
        %v1846 = vadd.f32 %v1747, %v1829
        %v1847 = vadd.f32 %v1748, %v1832
        %v1848 = vadd.f32 %v1749, %v1835
        %v1849 = vadd.f32 %v1750, %v1838
        %v1850 = vadd.f32 %v1751, %v1841
        %v1851 = vsel %vm506, %v1536, 0.0
        %v1852 = vsel %vm507, %v1535, 0.0
        %v1853 = vsel %vm508, %v1534, 0.0
        %v1854 = vsel %vm509, %v1533, 0.0
        %v1855 = vsel %vm510, %v1532, 0.0
        %v1856 = vsel %vm511, %v1531, 0.0
        %v1857 = vsel %vm512, %v1530, 0.0
        %v1858 = vsel %vm513, %v1529, 0.0
        %s1859 = scalar_lea.vmem %s3, 24
        %v1860 = vld [vmem:[%s1859] sm:$0xff]
        %v1862 = vsel %vm1546, %v1851, 0
        %v1865 = vsel %vm1546, %v1852, 0
        %v1868 = vsel %vm1546, %v1853, 0
        %v1871 = vsel %vm1546, %v1854, 0
        %v1874 = vsel %vm1546, %v1855, 0
        %v1877 = vsel %vm1546, %v1856, 0
        %v1880 = vsel %vm1546, %v1857, 0
        %v1883 = vsel %vm1546, %v1858, 0
        %1885 = vmatpush.msra.mxu0 0.0
        %1886 = vmatpush.msra.mxu0 0.0
        %1887 = vmatpush.msra.mxu0 0.0
        %1888 = vmatpush.msra.mxu0 0.0
        %1889 = vmatpush.msra.mxu0 0.0
        %1890 = vmatpush.msra.mxu0 0.0
        %1891 = vmatpush.msra.mxu0 0.0
        %1892 = vmatpush.msra.mxu0 0.0
        %1893 = vmatpush.msra.mxu0 0.0
        %1894 = vmatpush.msra.mxu0 0.0
        %1895 = vmatpush.msra.mxu0 0.0
        %1896 = vmatpush.msra.mxu0 0.0
        %1897 = vmatpush.msra.mxu0 0.0
        %1898 = vmatpush.msra.mxu0 0.0
        %1899 = vmatpush.msra.mxu0 0.0
        %1900 = vmatpush.msra.mxu0 %v1860
        %1901 = vmatmul.f32.gmra.mxu0 %v1862
        %v1902 = vpop.f32.mrf.mxu0
        %v1903 = vadd.f32 0.0, %v1902
        %1904 = vmatmul.f32.gmra.mxu0 %v1865
        %v1905 = vpop.f32.mrf.mxu0
        %v1906 = vadd.f32 0.0, %v1905
        %1907 = vmatmul.f32.gmra.mxu0 %v1868
        %v1908 = vpop.f32.mrf.mxu0
        %v1909 = vadd.f32 0.0, %v1908
        %1910 = vmatmul.f32.gmra.mxu0 %v1871
        %v1911 = vpop.f32.mrf.mxu0
        %v1912 = vadd.f32 0.0, %v1911
        %1913 = vmatmul.f32.gmra.mxu0 %v1874
        %v1914 = vpop.f32.mrf.mxu0
        %v1915 = vadd.f32 0.0, %v1914
        %1916 = vmatmul.f32.gmra.mxu0 %v1877
        %v1917 = vpop.f32.mrf.mxu0
        %v1918 = vadd.f32 0.0, %v1917
        %1919 = vmatmul.f32.gmra.mxu0 %v1880
        %v1920 = vpop.f32.mrf.mxu0
        %v1921 = vadd.f32 0.0, %v1920
        %1922 = vmatmul.f32.gmra.mxu0 %v1883
        %v1923 = vpop.f32.mrf.mxu0
        %v1924 = vadd.f32 0.0, %v1923
        %1925 = vdwg.mxu0
        %v1926 = vadd.f32 %v1843, %v1903
        %v1927 = vadd.f32 %v1844, %v1906
        %v1928 = vadd.f32 %v1845, %v1909
        %v1929 = vadd.f32 %v1846, %v1912
        %v1930 = vadd.f32 %v1847, %v1915
        %v1931 = vadd.f32 %v1848, %v1918
        %v1932 = vadd.f32 %v1849, %v1921
        %v1933 = vadd.f32 %v1850, %v1924
        %v1934 = vsel %vm555, %v1766, 0.0
        %v1935 = vsel %vm556, %v1765, 0.0
        %v1936 = vsel %vm557, %v1764, 0.0
        %v1937 = vsel %vm558, %v1763, 0.0
        %v1938 = vsel %vm559, %v1762, 0.0
        %v1939 = vsel %vm560, %v1761, 0.0
        %v1940 = vsel %vm561, %v1760, 0.0
        %v1941 = vsel %vm562, %v1767, 0.0
        %s1942 = scalar_lea.vmem %s3, 40
        %v1943 = vld [vmem:[%s1942] sm:$0xff]
        %v1945 = vsel %vm1546, %v1934, 0
        %v1948 = vsel %vm1546, %v1935, 0
        %v1951 = vsel %vm1546, %v1936, 0
        %v1954 = vsel %vm1546, %v1937, 0
        %v1957 = vsel %vm1546, %v1938, 0
        %v1960 = vsel %vm1546, %v1939, 0
        %v1963 = vsel %vm1546, %v1940, 0
        %v1966 = vsel %vm1546, %v1941, 0
        %1968 = vmatpush.msra.mxu0 0.0
        %1969 = vmatpush.msra.mxu0 0.0
        %1970 = vmatpush.msra.mxu0 0.0
        %1971 = vmatpush.msra.mxu0 0.0
        %1972 = vmatpush.msra.mxu0 0.0
        %1973 = vmatpush.msra.mxu0 0.0
        %1974 = vmatpush.msra.mxu0 0.0
        %1975 = vmatpush.msra.mxu0 0.0
        %1976 = vmatpush.msra.mxu0 0.0
        %1977 = vmatpush.msra.mxu0 0.0
        %1978 = vmatpush.msra.mxu0 0.0
        %1979 = vmatpush.msra.mxu0 0.0
        %1980 = vmatpush.msra.mxu0 0.0
        %1981 = vmatpush.msra.mxu0 0.0
        %1982 = vmatpush.msra.mxu0 0.0
        %1983 = vmatpush.msra.mxu0 %v1943
        %1984 = vmatmul.f32.gmra.mxu0 %v1945
        %v1985 = vpop.f32.mrf.mxu0
        %v1986 = vadd.f32 0.0, %v1985
        %1987 = vmatmul.f32.gmra.mxu0 %v1948
        %v1988 = vpop.f32.mrf.mxu0
        %v1989 = vadd.f32 0.0, %v1988
        %1990 = vmatmul.f32.gmra.mxu0 %v1951
        %v1991 = vpop.f32.mrf.mxu0
        %v1992 = vadd.f32 0.0, %v1991
        %1993 = vmatmul.f32.gmra.mxu0 %v1954
        %v1994 = vpop.f32.mrf.mxu0
        %v1995 = vadd.f32 0.0, %v1994
        %1996 = vmatmul.f32.gmra.mxu0 %v1957
        %v1997 = vpop.f32.mrf.mxu0
        %v1998 = vadd.f32 0.0, %v1997
        %1999 = vmatmul.f32.gmra.mxu0 %v1960
        %v2000 = vpop.f32.mrf.mxu0
        %v2001 = vadd.f32 0.0, %v2000
        %2002 = vmatmul.f32.gmra.mxu0 %v1963
        %v2003 = vpop.f32.mrf.mxu0
        %v2004 = vadd.f32 0.0, %v2003
        %2005 = vmatmul.f32.gmra.mxu0 %v1966
        %v2006 = vpop.f32.mrf.mxu0
        %v2007 = vadd.f32 0.0, %v2006
        %2008 = vdwg.mxu0
        %v2009 = vadd.f32 %v1926, %v1986
        %v2010 = vadd.f32 %v1927, %v1989
        %v2011 = vadd.f32 %v1928, %v1992
        %v2012 = vadd.f32 %v1929, %v1995
        %v2013 = vadd.f32 %v1930, %v1998
        %v2014 = vadd.f32 %v1931, %v2001
        %v2015 = vadd.f32 %v1932, %v2004
        %v2016 = vadd.f32 %v1933, %v2007
        %v2017 = vsel %vm1219, %v1535, 0.0
        %v2018 = vsel %vm1220, %v1534, 0.0
        %v2019 = vsel %vm1221, %v1533, 0.0
        %v2020 = vsel %vm1222, %v1532, 0.0
        %v2021 = vsel %vm1223, %v1531, 0.0
        %v2022 = vsel %vm1224, %v1530, 0.0
        %v2023 = vsel %vm1225, %v1529, 0.0
        %v2024 = vsel %vm1226, %v1536, 0.0
        %s2025 = scalar_lea.vmem %s3, 48
        %v2026 = vld [vmem:[%s2025] sm:$0xff]
        %v2028 = vsel %vm1546, %v2017, 0
        %v2031 = vsel %vm1546, %v2018, 0
        %v2034 = vsel %vm1546, %v2019, 0
        %v2037 = vsel %vm1546, %v2020, 0
        %v2040 = vsel %vm1546, %v2021, 0
        %v2043 = vsel %vm1546, %v2022, 0
        %v2046 = vsel %vm1546, %v2023, 0
        %v2049 = vsel %vm1546, %v2024, 0
        %2051 = vmatpush.msra.mxu0 0.0
        %2052 = vmatpush.msra.mxu0 0.0
        %2053 = vmatpush.msra.mxu0 0.0
        %2054 = vmatpush.msra.mxu0 0.0
        %2055 = vmatpush.msra.mxu0 0.0
        %2056 = vmatpush.msra.mxu0 0.0
        %2057 = vmatpush.msra.mxu0 0.0
        %2058 = vmatpush.msra.mxu0 0.0
        %2059 = vmatpush.msra.mxu0 0.0
        %2060 = vmatpush.msra.mxu0 0.0
        %2061 = vmatpush.msra.mxu0 0.0
        %2062 = vmatpush.msra.mxu0 0.0
        %2063 = vmatpush.msra.mxu0 0.0
        %2064 = vmatpush.msra.mxu0 0.0
        %2065 = vmatpush.msra.mxu0 0.0
        %2066 = vmatpush.msra.mxu0 %v2026
        %2067 = vmatmul.f32.gmra.mxu0 %v2028
        %v2068 = vpop.f32.mrf.mxu0
        %v2069 = vadd.f32 0.0, %v2068
        %2070 = vmatmul.f32.gmra.mxu0 %v2031
        %v2071 = vpop.f32.mrf.mxu0
        %v2072 = vadd.f32 0.0, %v2071
        %2073 = vmatmul.f32.gmra.mxu0 %v2034
        %v2074 = vpop.f32.mrf.mxu0
        %v2075 = vadd.f32 0.0, %v2074
        %2076 = vmatmul.f32.gmra.mxu0 %v2037
        %v2077 = vpop.f32.mrf.mxu0
        %v2078 = vadd.f32 0.0, %v2077
        %2079 = vmatmul.f32.gmra.mxu0 %v2040
        %v2080 = vpop.f32.mrf.mxu0
        %v2081 = vadd.f32 0.0, %v2080
        %2082 = vmatmul.f32.gmra.mxu0 %v2043
        %v2083 = vpop.f32.mrf.mxu0
        %v2084 = vadd.f32 0.0, %v2083
        %2085 = vmatmul.f32.gmra.mxu0 %v2046
        %v2086 = vpop.f32.mrf.mxu0
        %v2087 = vadd.f32 0.0, %v2086
        %2088 = vmatmul.f32.gmra.mxu0 %v2049
        %v2089 = vpop.f32.mrf.mxu0
        %v2090 = vadd.f32 0.0, %v2089
        %2091 = vdwg.mxu0
        %v2092 = vadd.f32 %v2009, %v2069
        %v2093 = vadd.f32 %v2010, %v2072
        %v2094 = vadd.f32 %v2011, %v2075
        %v2095 = vadd.f32 %v2012, %v2078
        %v2096 = vadd.f32 %v2013, %v2081
        %v2097 = vadd.f32 %v2014, %v2084
        %v2098 = vadd.f32 %v2015, %v2087
        %v2099 = vadd.f32 %v2016, %v2090
        %v2100 = vsel %vm619, %v1500, 0.0
        %v2101 = vsel %vm620, %v1502, 0.0
        %v2102 = vsel %vm621, %v1504, 0.0
        %v2103 = vsel %vm622, %v1506, 0.0
        %v2104 = vsel %vm623, %v1508, 0.0
        %v2105 = vsel %vm624, %v1510, 0.0
        %v2106 = vsel %vm625, %v1512, 0.0
        %v2107 = vsel %vm626, %v1498, 0.0
        %s2108 = scalar_lea.vmem %s3, 56
        %v2109 = vld [vmem:[%s2108] sm:$0xff]
        %v2111 = vsel %vm1546, %v2100, 0
        %v2114 = vsel %vm1546, %v2101, 0
        %v2117 = vsel %vm1546, %v2102, 0
        %v2120 = vsel %vm1546, %v2103, 0
        %v2123 = vsel %vm1546, %v2104, 0
        %v2126 = vsel %vm1546, %v2105, 0
        %v2129 = vsel %vm1546, %v2106, 0
        %v2132 = vsel %vm1546, %v2107, 0
        %2134 = vmatpush.msra.mxu0 0.0
        %2135 = vmatpush.msra.mxu0 0.0
        %2136 = vmatpush.msra.mxu0 0.0
        %2137 = vmatpush.msra.mxu0 0.0
        %2138 = vmatpush.msra.mxu0 0.0
        %2139 = vmatpush.msra.mxu0 0.0
        %2140 = vmatpush.msra.mxu0 0.0
        %2141 = vmatpush.msra.mxu0 0.0
        %2142 = vmatpush.msra.mxu0 0.0
        %2143 = vmatpush.msra.mxu0 0.0
        %2144 = vmatpush.msra.mxu0 0.0
        %2145 = vmatpush.msra.mxu0 0.0
        %2146 = vmatpush.msra.mxu0 0.0
        %2147 = vmatpush.msra.mxu0 0.0
        %2148 = vmatpush.msra.mxu0 0.0
        %2149 = vmatpush.msra.mxu0 %v2109
        %2150 = vmatmul.f32.gmra.mxu0 %v2111
        %v2151 = vpop.f32.mrf.mxu0
        %v2152 = vadd.f32 0.0, %v2151
        %2153 = vmatmul.f32.gmra.mxu0 %v2114
        %v2154 = vpop.f32.mrf.mxu0
        %v2155 = vadd.f32 0.0, %v2154
        %2156 = vmatmul.f32.gmra.mxu0 %v2117
        %v2157 = vpop.f32.mrf.mxu0
        %v2158 = vadd.f32 0.0, %v2157
        %2159 = vmatmul.f32.gmra.mxu0 %v2120
        %v2160 = vpop.f32.mrf.mxu0
        %v2161 = vadd.f32 0.0, %v2160
        %2162 = vmatmul.f32.gmra.mxu0 %v2123
        %v2163 = vpop.f32.mrf.mxu0
        %v2164 = vadd.f32 0.0, %v2163
        %2165 = vmatmul.f32.gmra.mxu0 %v2126
        %v2166 = vpop.f32.mrf.mxu0
        %v2167 = vadd.f32 0.0, %v2166
        %2168 = vmatmul.f32.gmra.mxu0 %v2129
        %v2169 = vpop.f32.mrf.mxu0
        %v2170 = vadd.f32 0.0, %v2169
        %2171 = vmatmul.f32.gmra.mxu0 %v2132
        %v2172 = vpop.f32.mrf.mxu0
        %v2173 = vadd.f32 0.0, %v2172
        %2174 = vdwg.mxu0
        %v2175 = vadd.f32 %v2092, %v2152
        %v2176 = vadd.f32 %v2093, %v2155
        %v2177 = vadd.f32 %v2094, %v2158
        %v2178 = vadd.f32 %v2095, %v2161
        %v2179 = vadd.f32 %v2096, %v2164
        %v2180 = vadd.f32 %v2097, %v2167
        %v2181 = vadd.f32 %v2098, %v2170
        %v2182 = vadd.f32 %v2099, %v2173
        %v2183 = vsel %vm1403, %v1765, 0.0
        %v2184 = vsel %vm1404, %v1764, 0.0
        %v2185 = vsel %vm1405, %v1763, 0.0
        %v2186 = vsel %vm1406, %v1762, 0.0
        %v2187 = vsel %vm1407, %v1761, 0.0
        %v2188 = vsel %vm1408, %v1760, 0.0
        %v2189 = vsel %vm1409, %v1767, 0.0
        %v2190 = vsel %vm1410, %v1766, 0.0
        %s2191 = scalar_lea.vmem %s3, 64
        %v2192 = vld [vmem:[%s2191] sm:$0xff]
        %v2194 = vsel %vm1546, %v2183, 0
        %v2197 = vsel %vm1546, %v2184, 0
        %v2200 = vsel %vm1546, %v2185, 0
        %v2203 = vsel %vm1546, %v2186, 0
        %v2206 = vsel %vm1546, %v2187, 0
        %v2209 = vsel %vm1546, %v2188, 0
        %v2212 = vsel %vm1546, %v2189, 0
        %v2215 = vsel %vm1546, %v2190, 0
        %2217 = vmatpush.msra.mxu0 0.0
        %2218 = vmatpush.msra.mxu0 0.0
        %2219 = vmatpush.msra.mxu0 0.0
        %2220 = vmatpush.msra.mxu0 0.0
        %2221 = vmatpush.msra.mxu0 0.0
        %2222 = vmatpush.msra.mxu0 0.0
        %2223 = vmatpush.msra.mxu0 0.0
        %2224 = vmatpush.msra.mxu0 0.0
        %2225 = vmatpush.msra.mxu0 0.0
        %2226 = vmatpush.msra.mxu0 0.0
        %2227 = vmatpush.msra.mxu0 0.0
        %2228 = vmatpush.msra.mxu0 0.0
        %2229 = vmatpush.msra.mxu0 0.0
        %2230 = vmatpush.msra.mxu0 0.0
        %2231 = vmatpush.msra.mxu0 0.0
        %2232 = vmatpush.msra.mxu0 %v2192
        %2233 = vmatmul.f32.gmra.mxu0 %v2194
        %v2234 = vpop.f32.mrf.mxu0
        %v2235 = vadd.f32 0.0, %v2234
        %2236 = vmatmul.f32.gmra.mxu0 %v2197
        %v2237 = vpop.f32.mrf.mxu0
        %v2238 = vadd.f32 0.0, %v2237
        %2239 = vmatmul.f32.gmra.mxu0 %v2200
        %v2240 = vpop.f32.mrf.mxu0
        %v2241 = vadd.f32 0.0, %v2240
        %2242 = vmatmul.f32.gmra.mxu0 %v2203
        %v2243 = vpop.f32.mrf.mxu0
        %v2244 = vadd.f32 0.0, %v2243
        %2245 = vmatmul.f32.gmra.mxu0 %v2206
        %v2246 = vpop.f32.mrf.mxu0
        %v2247 = vadd.f32 0.0, %v2246
        %2248 = vmatmul.f32.gmra.mxu0 %v2209
        %v2249 = vpop.f32.mrf.mxu0
        %v2250 = vadd.f32 0.0, %v2249
        %2251 = vmatmul.f32.gmra.mxu0 %v2212
        %v2252 = vpop.f32.mrf.mxu0
        %v2253 = vadd.f32 0.0, %v2252
        %2254 = vmatmul.f32.gmra.mxu0 %v2215
        %v2255 = vpop.f32.mrf.mxu0
        %v2256 = vadd.f32 0.0, %v2255
        %2257 = vdwg.mxu0
        %v2258 = vadd.f32 %v2175, %v2235
        %v2259 = vadd.f32 %v2176, %v2238
        %v2260 = vadd.f32 %v2177, %v2241
        %v2261 = vadd.f32 %v2178, %v2244
        %v2262 = vadd.f32 %v2179, %v2247
        %v2263 = vadd.f32 %v2180, %v2250
        %v2264 = vadd.f32 %v2181, %v2253
        %v2265 = vadd.f32 %v2182, %v2256
        %v2266 = vperm.slane %v352, 0
        %v2267 = vadd.f32 %v2258, %v2266
        %v2268 = vadd.f32 %v2259, %v2266
        %v2269 = vadd.f32 %v2260, %v2266
        %v2270 = vadd.f32 %v2261, %v2266
        %v2271 = vadd.f32 %v2262, %v2266
        %v2272 = vadd.f32 %v2263, %v2266
        %v2273 = vadd.f32 %v2264, %v2266
        %v2274 = vadd.f32 %v2265, %v2266
        %s2275 = scalar_lea.vmem %s4, 64
        %v2276 = vld [vmem:[%s2275] sm:$0xff]
        %v2277 = vld [vmem:[%s2275 + $0x8] sm:$0xff]
        %v2278 = vrot.slane %v2267, 7
        %v2279 = vrot.slane %v2268, 7
        %v2280 = vrot.slane %v2269, 7
        %v2281 = vrot.slane %v2270, 7
        %v2282 = vrot.slane %v2271, 7
        %v2283 = vrot.slane %v2272, 7
        %v2284 = vrot.slane %v2273, 7
        %v2285 = vrot.slane %v2274, 7
        %v2286 = vsel %vm489, %v2284, %v2285
        %v2287 = vsel %vm489, %v2283, %v2284
        %v2288 = vsel %vm489, %v2282, %v2283
        %v2289 = vsel %vm489, %v2281, %v2282
        %v2290 = vsel %vm489, %v2280, %v2281
        %v2291 = vsel %vm489, %v2279, %v2280
        %v2292 = vsel %vm489, %v2278, %v2279
        %v2293 = vsel %vm489, %v2285, %v2278
        %v2294 = vsel %vm702, %v2286, 0.0
        %v2295 = vsel %vm703, %v2293, 0.0
        %v2296 = vsel %vm704, %v2292, 0.0
        %v2297 = vsel %vm705, %v2291, 0.0
        %v2298 = vsel %vm706, %v2290, 0.0
        %v2299 = vsel %vm707, %v2289, 0.0
        %v2300 = vsel %vm708, %v2288, 0.0
        %v2301 = vsel %vm709, %v2287, 0.0
        %v2302 = vld [vmem:[%s4] sm:$0xff]
        %v2303 = vld [vmem:[%s4 + $0x8] sm:$0xff]
        %v2305 = vsel %vm720, %v2294, 0
        %v2308 = vsel %vm720, %v2295, 0
        %v2311 = vsel %vm720, %v2296, 0
        %v2314 = vsel %vm720, %v2297, 0
        %v2317 = vsel %vm720, %v2298, 0
        %v2320 = vsel %vm720, %v2299, 0
        %v2323 = vsel %vm720, %v2300, 0
        %v2326 = vsel %vm720, %v2301, 0
        %2328 = vmatpush.msra.mxu0 0.0
        %2329 = vmatpush.msra.mxu0 0.0
        %2330 = vmatpush.msra.mxu0 0.0
        %2331 = vmatpush.msra.mxu0 0.0
        %2332 = vmatpush.msra.mxu0 0.0
        %2333 = vmatpush.msra.mxu0 0.0
        %2334 = vmatpush.msra.mxu0 0.0
        %2335 = vmatpush.msra.mxu0 0.0
        %2336 = vmatpush.msra.mxu0 0.0
        %2337 = vmatpush.msra.mxu0 0.0
        %2338 = vmatpush.msra.mxu0 0.0
        %2339 = vmatpush.msra.mxu0 0.0
        %2340 = vmatpush.msra.mxu0 0.0
        %2341 = vmatpush.msra.mxu0 0.0
        %2342 = vmatpush.msra.mxu0 %v2303
        %2343 = vmatpush.msra.mxu0 %v2302
        %2344 = vmatmul.f32.gmra.mxu0 %v2305
        %v2345 = vpop.f32.mrf.mxu0
        %v2346 = vadd.f32 0.0, %v2345
        %2347 = vmatmul.f32.gmra.mxu0 %v2308
        %v2348 = vpop.f32.mrf.mxu0
        %v2349 = vadd.f32 0.0, %v2348
        %2350 = vmatmul.f32.gmra.mxu0 %v2311
        %v2351 = vpop.f32.mrf.mxu0
        %v2352 = vadd.f32 0.0, %v2351
        %2353 = vmatmul.f32.gmra.mxu0 %v2314
        %v2354 = vpop.f32.mrf.mxu0
        %v2355 = vadd.f32 0.0, %v2354
        %2356 = vmatmul.f32.gmra.mxu0 %v2317
        %v2357 = vpop.f32.mrf.mxu0
        %v2358 = vadd.f32 0.0, %v2357
        %2359 = vmatmul.f32.gmra.mxu0 %v2320
        %v2360 = vpop.f32.mrf.mxu0
        %v2361 = vadd.f32 0.0, %v2360
        %2362 = vmatmul.f32.gmra.mxu0 %v2323
        %v2363 = vpop.f32.mrf.mxu0
        %v2364 = vadd.f32 0.0, %v2363
        %2365 = vmatmul.f32.gmra.mxu0 %v2326
        %v2366 = vpop.f32.mrf.mxu0
        %v2367 = vadd.f32 0.0, %v2366
        %2368 = vdwg.mxu0
        %v2370 = vsel %vm720, %v2267, 0
        %v2373 = vsel %vm720, %v2268, 0
        %v2376 = vsel %vm720, %v2269, 0
        %v2379 = vsel %vm720, %v2270, 0
        %v2382 = vsel %vm720, %v2271, 0
        %v2385 = vsel %vm720, %v2272, 0
        %v2388 = vsel %vm720, %v2273, 0
        %v2391 = vsel %vm720, %v2274, 0
        %2393 = vmatpush.msra.mxu0 0.0
        %2394 = vmatpush.msra.mxu0 0.0
        %2395 = vmatpush.msra.mxu0 0.0
        %2396 = vmatpush.msra.mxu0 0.0
        %2397 = vmatpush.msra.mxu0 0.0
        %2398 = vmatpush.msra.mxu0 0.0
        %2399 = vmatpush.msra.mxu0 0.0
        %2400 = vmatpush.msra.mxu0 0.0
        %2401 = vmatpush.msra.mxu0 0.0
        %2402 = vmatpush.msra.mxu0 0.0
        %2403 = vmatpush.msra.mxu0 0.0
        %2404 = vmatpush.msra.mxu0 0.0
        %2405 = vmatpush.msra.mxu0 0.0
        %2406 = vmatpush.msra.mxu0 0.0
        %2407 = vmatpush.msra.mxu0 %v2277
        %2408 = vmatpush.msra.mxu0 %v2276
        %2409 = vmatmul.f32.gmra.mxu0 %v2370
        %v2410 = vpop.f32.mrf.mxu0
        %v2411 = vadd.f32 %v2346, %v2410
        %2412 = vmatmul.f32.gmra.mxu0 %v2373
        %v2413 = vpop.f32.mrf.mxu0
        %v2414 = vadd.f32 %v2349, %v2413
        %2415 = vmatmul.f32.gmra.mxu0 %v2376
        %v2416 = vpop.f32.mrf.mxu0
        %v2417 = vadd.f32 %v2352, %v2416
        %2418 = vmatmul.f32.gmra.mxu0 %v2379
        %v2419 = vpop.f32.mrf.mxu0
        %v2420 = vadd.f32 %v2355, %v2419
        %2421 = vmatmul.f32.gmra.mxu0 %v2382
        %v2422 = vpop.f32.mrf.mxu0
        %v2423 = vadd.f32 %v2358, %v2422
        %2424 = vmatmul.f32.gmra.mxu0 %v2385
        %v2425 = vpop.f32.mrf.mxu0
        %v2426 = vadd.f32 %v2361, %v2425
        %2427 = vmatmul.f32.gmra.mxu0 %v2388
        %v2428 = vpop.f32.mrf.mxu0
        %v2429 = vadd.f32 %v2364, %v2428
        %2430 = vmatmul.f32.gmra.mxu0 %v2391
        %v2431 = vpop.f32.mrf.mxu0
        %v2432 = vadd.f32 %v2367, %v2431
        %2433 = vdwg.mxu0
        %v2434 = vsel %vm587, %v2274, 0.0
        %v2435 = vsel %vm588, %v2267, 0.0
        %v2436 = vsel %vm589, %v2268, 0.0
        %v2437 = vsel %vm590, %v2269, 0.0
        %v2438 = vsel %vm591, %v2270, 0.0
        %v2439 = vsel %vm592, %v2271, 0.0
        %v2440 = vsel %vm593, %v2272, 0.0
        %v2441 = vsel %vm594, %v2273, 0.0
        %s2442 = scalar_lea.vmem %s4, 16
        %v2443 = vld [vmem:[%s2442] sm:$0xff]
        %v2444 = vld [vmem:[%s2442 + $0x8] sm:$0xff]
        %v2446 = vsel %vm720, %v2434, 0
        %v2449 = vsel %vm720, %v2435, 0
        %v2452 = vsel %vm720, %v2436, 0
        %v2455 = vsel %vm720, %v2437, 0
        %v2458 = vsel %vm720, %v2438, 0
        %v2461 = vsel %vm720, %v2439, 0
        %v2464 = vsel %vm720, %v2440, 0
        %v2467 = vsel %vm720, %v2441, 0
        %2469 = vmatpush.msra.mxu0 0.0
        %2470 = vmatpush.msra.mxu0 0.0
        %2471 = vmatpush.msra.mxu0 0.0
        %2472 = vmatpush.msra.mxu0 0.0
        %2473 = vmatpush.msra.mxu0 0.0
        %2474 = vmatpush.msra.mxu0 0.0
        %2475 = vmatpush.msra.mxu0 0.0
        %2476 = vmatpush.msra.mxu0 0.0
        %2477 = vmatpush.msra.mxu0 0.0
        %2478 = vmatpush.msra.mxu0 0.0
        %2479 = vmatpush.msra.mxu0 0.0
        %2480 = vmatpush.msra.mxu0 0.0
        %2481 = vmatpush.msra.mxu0 0.0
        %2482 = vmatpush.msra.mxu0 0.0
        %2483 = vmatpush.msra.mxu0 %v2444
        %2484 = vmatpush.msra.mxu0 %v2443
        %2485 = vmatmul.f32.gmra.mxu0 %v2446
        %v2486 = vpop.f32.mrf.mxu0
        %v2487 = vadd.f32 0.0, %v2486
        %2488 = vmatmul.f32.gmra.mxu0 %v2449
        %v2489 = vpop.f32.mrf.mxu0
        %v2490 = vadd.f32 0.0, %v2489
        %2491 = vmatmul.f32.gmra.mxu0 %v2452
        %v2492 = vpop.f32.mrf.mxu0
        %v2493 = vadd.f32 0.0, %v2492
        %2494 = vmatmul.f32.gmra.mxu0 %v2455
        %v2495 = vpop.f32.mrf.mxu0
        %v2496 = vadd.f32 0.0, %v2495
        %2497 = vmatmul.f32.gmra.mxu0 %v2458
        %v2498 = vpop.f32.mrf.mxu0
        %v2499 = vadd.f32 0.0, %v2498
        %2500 = vmatmul.f32.gmra.mxu0 %v2461
        %v2501 = vpop.f32.mrf.mxu0
        %v2502 = vadd.f32 0.0, %v2501
        %2503 = vmatmul.f32.gmra.mxu0 %v2464
        %v2504 = vpop.f32.mrf.mxu0
        %v2505 = vadd.f32 0.0, %v2504
        %2506 = vmatmul.f32.gmra.mxu0 %v2467
        %v2507 = vpop.f32.mrf.mxu0
        %v2508 = vadd.f32 0.0, %v2507
        %2509 = vdwg.mxu0
        %v2510 = vadd.f32 %v2411, %v2487
        %v2511 = vadd.f32 %v2414, %v2490
        %v2512 = vadd.f32 %v2417, %v2493
        %v2513 = vadd.f32 %v2420, %v2496
        %v2514 = vadd.f32 %v2423, %v2499
        %v2515 = vadd.f32 %v2426, %v2502
        %v2516 = vadd.f32 %v2429, %v2505
        %v2517 = vadd.f32 %v2432, %v2508
        %v2518 = vrot.slane %v2267, 1
        %v2519 = vrot.slane %v2268, 1
        %v2520 = vrot.slane %v2269, 1
        %v2521 = vrot.slane %v2270, 1
        %v2522 = vrot.slane %v2271, 1
        %v2523 = vrot.slane %v2272, 1
        %v2524 = vrot.slane %v2273, 1
        %v2525 = vrot.slane %v2274, 1
        %v2526 = vsel %vm538, %v2524, %v2525
        %v2527 = vsel %vm538, %v2523, %v2524
        %v2528 = vsel %vm538, %v2522, %v2523
        %v2529 = vsel %vm538, %v2521, %v2522
        %v2530 = vsel %vm538, %v2520, %v2521
        %v2531 = vsel %vm538, %v2519, %v2520
        %v2532 = vsel %vm538, %v2518, %v2519
        %v2533 = vsel %vm538, %v2525, %v2518
        %v2534 = vsel %vm951, %v2533, 0.0
        %v2535 = vsel %vm952, %v2532, 0.0
        %v2536 = vsel %vm953, %v2531, 0.0
        %v2537 = vsel %vm954, %v2530, 0.0
        %v2538 = vsel %vm955, %v2529, 0.0
        %v2539 = vsel %vm956, %v2528, 0.0
        %v2540 = vsel %vm957, %v2527, 0.0
        %v2541 = vsel %vm958, %v2526, 0.0
        %s2542 = scalar_lea.vmem %s4, 32
        %v2543 = vld [vmem:[%s2542] sm:$0xff]
        %v2544 = vld [vmem:[%s2542 + $0x8] sm:$0xff]
        %v2546 = vsel %vm720, %v2534, 0
        %v2549 = vsel %vm720, %v2535, 0
        %v2552 = vsel %vm720, %v2536, 0
        %v2555 = vsel %vm720, %v2537, 0
        %v2558 = vsel %vm720, %v2538, 0
        %v2561 = vsel %vm720, %v2539, 0
        %v2564 = vsel %vm720, %v2540, 0
        %v2567 = vsel %vm720, %v2541, 0
        %2569 = vmatpush.msra.mxu0 0.0
        %2570 = vmatpush.msra.mxu0 0.0
        %2571 = vmatpush.msra.mxu0 0.0
        %2572 = vmatpush.msra.mxu0 0.0
        %2573 = vmatpush.msra.mxu0 0.0
        %2574 = vmatpush.msra.mxu0 0.0
        %2575 = vmatpush.msra.mxu0 0.0
        %2576 = vmatpush.msra.mxu0 0.0
        %2577 = vmatpush.msra.mxu0 0.0
        %2578 = vmatpush.msra.mxu0 0.0
        %2579 = vmatpush.msra.mxu0 0.0
        %2580 = vmatpush.msra.mxu0 0.0
        %2581 = vmatpush.msra.mxu0 0.0
        %2582 = vmatpush.msra.mxu0 0.0
        %2583 = vmatpush.msra.mxu0 %v2544
        %2584 = vmatpush.msra.mxu0 %v2543
        %2585 = vmatmul.f32.gmra.mxu0 %v2546
        %v2586 = vpop.f32.mrf.mxu0
        %v2587 = vadd.f32 0.0, %v2586
        %2588 = vmatmul.f32.gmra.mxu0 %v2549
        %v2589 = vpop.f32.mrf.mxu0
        %v2590 = vadd.f32 0.0, %v2589
        %2591 = vmatmul.f32.gmra.mxu0 %v2552
        %v2592 = vpop.f32.mrf.mxu0
        %v2593 = vadd.f32 0.0, %v2592
        %2594 = vmatmul.f32.gmra.mxu0 %v2555
        %v2595 = vpop.f32.mrf.mxu0
        %v2596 = vadd.f32 0.0, %v2595
        %2597 = vmatmul.f32.gmra.mxu0 %v2558
        %v2598 = vpop.f32.mrf.mxu0
        %v2599 = vadd.f32 0.0, %v2598
        %2600 = vmatmul.f32.gmra.mxu0 %v2561
        %v2601 = vpop.f32.mrf.mxu0
        %v2602 = vadd.f32 0.0, %v2601
        %2603 = vmatmul.f32.gmra.mxu0 %v2564
        %v2604 = vpop.f32.mrf.mxu0
        %v2605 = vadd.f32 0.0, %v2604
        %2606 = vmatmul.f32.gmra.mxu0 %v2567
        %v2607 = vpop.f32.mrf.mxu0
        %v2608 = vadd.f32 0.0, %v2607
        %2609 = vdwg.mxu0
        %v2610 = vadd.f32 %v2510, %v2587
        %v2611 = vadd.f32 %v2511, %v2590
        %v2612 = vadd.f32 %v2512, %v2593
        %v2613 = vadd.f32 %v2513, %v2596
        %v2614 = vadd.f32 %v2514, %v2599
        %v2615 = vadd.f32 %v2515, %v2602
        %v2616 = vadd.f32 %v2516, %v2605
        %v2617 = vadd.f32 %v2517, %v2608
        %v2618 = vsel %vm506, %v2293, 0.0
        %v2619 = vsel %vm507, %v2292, 0.0
        %v2620 = vsel %vm508, %v2291, 0.0
        %v2621 = vsel %vm509, %v2290, 0.0
        %v2622 = vsel %vm510, %v2289, 0.0
        %v2623 = vsel %vm511, %v2288, 0.0
        %v2624 = vsel %vm512, %v2287, 0.0
        %v2625 = vsel %vm513, %v2286, 0.0
        %s2626 = scalar_lea.vmem %s4, 48
        %v2627 = vld [vmem:[%s2626] sm:$0xff]
        %v2628 = vld [vmem:[%s2626 + $0x8] sm:$0xff]
        %v2630 = vsel %vm720, %v2618, 0
        %v2633 = vsel %vm720, %v2619, 0
        %v2636 = vsel %vm720, %v2620, 0
        %v2639 = vsel %vm720, %v2621, 0
        %v2642 = vsel %vm720, %v2622, 0
        %v2645 = vsel %vm720, %v2623, 0
        %v2648 = vsel %vm720, %v2624, 0
        %v2651 = vsel %vm720, %v2625, 0
        %2653 = vmatpush.msra.mxu0 0.0
        %2654 = vmatpush.msra.mxu0 0.0
        %2655 = vmatpush.msra.mxu0 0.0
        %2656 = vmatpush.msra.mxu0 0.0
        %2657 = vmatpush.msra.mxu0 0.0
        %2658 = vmatpush.msra.mxu0 0.0
        %2659 = vmatpush.msra.mxu0 0.0
        %2660 = vmatpush.msra.mxu0 0.0
        %2661 = vmatpush.msra.mxu0 0.0
        %2662 = vmatpush.msra.mxu0 0.0
        %2663 = vmatpush.msra.mxu0 0.0
        %2664 = vmatpush.msra.mxu0 0.0
        %2665 = vmatpush.msra.mxu0 0.0
        %2666 = vmatpush.msra.mxu0 0.0
        %2667 = vmatpush.msra.mxu0 %v2628
        %2668 = vmatpush.msra.mxu0 %v2627
        %2669 = vmatmul.f32.gmra.mxu0 %v2630
        %v2670 = vpop.f32.mrf.mxu0
        %v2671 = vadd.f32 0.0, %v2670
        %2672 = vmatmul.f32.gmra.mxu0 %v2633
        %v2673 = vpop.f32.mrf.mxu0
        %v2674 = vadd.f32 0.0, %v2673
        %2675 = vmatmul.f32.gmra.mxu0 %v2636
        %v2676 = vpop.f32.mrf.mxu0
        %v2677 = vadd.f32 0.0, %v2676
        %2678 = vmatmul.f32.gmra.mxu0 %v2639
        %v2679 = vpop.f32.mrf.mxu0
        %v2680 = vadd.f32 0.0, %v2679
        %2681 = vmatmul.f32.gmra.mxu0 %v2642
        %v2682 = vpop.f32.mrf.mxu0
        %v2683 = vadd.f32 0.0, %v2682
        %2684 = vmatmul.f32.gmra.mxu0 %v2645
        %v2685 = vpop.f32.mrf.mxu0
        %v2686 = vadd.f32 0.0, %v2685
        %2687 = vmatmul.f32.gmra.mxu0 %v2648
        %v2688 = vpop.f32.mrf.mxu0
        %v2689 = vadd.f32 0.0, %v2688
        %2690 = vmatmul.f32.gmra.mxu0 %v2651
        %v2691 = vpop.f32.mrf.mxu0
        %v2692 = vadd.f32 0.0, %v2691
        %2693 = vdwg.mxu0
        %v2694 = vadd.f32 %v2610, %v2671
        %v2695 = vadd.f32 %v2611, %v2674
        %v2696 = vadd.f32 %v2612, %v2677
        %v2697 = vadd.f32 %v2613, %v2680
        %v2698 = vadd.f32 %v2614, %v2683
        %v2699 = vadd.f32 %v2615, %v2686
        %v2700 = vadd.f32 %v2616, %v2689
        %v2701 = vadd.f32 %v2617, %v2692
        %v2702 = vsel %vm555, %v2532, 0.0
        %v2703 = vsel %vm556, %v2531, 0.0
        %v2704 = vsel %vm557, %v2530, 0.0
        %v2705 = vsel %vm558, %v2529, 0.0
        %v2706 = vsel %vm559, %v2528, 0.0
        %v2707 = vsel %vm560, %v2527, 0.0
        %v2708 = vsel %vm561, %v2526, 0.0
        %v2709 = vsel %vm562, %v2533, 0.0
        %s2710 = scalar_lea.vmem %s4, 80
        %v2711 = vld [vmem:[%s2710] sm:$0xff]
        %v2712 = vld [vmem:[%s2710 + $0x8] sm:$0xff]
        %v2714 = vsel %vm720, %v2702, 0
        %v2717 = vsel %vm720, %v2703, 0
        %v2720 = vsel %vm720, %v2704, 0
        %v2723 = vsel %vm720, %v2705, 0
        %v2726 = vsel %vm720, %v2706, 0
        %v2729 = vsel %vm720, %v2707, 0
        %v2732 = vsel %vm720, %v2708, 0
        %v2735 = vsel %vm720, %v2709, 0
        %2737 = vmatpush.msra.mxu0 0.0
        %2738 = vmatpush.msra.mxu0 0.0
        %2739 = vmatpush.msra.mxu0 0.0
        %2740 = vmatpush.msra.mxu0 0.0
        %2741 = vmatpush.msra.mxu0 0.0
        %2742 = vmatpush.msra.mxu0 0.0
        %2743 = vmatpush.msra.mxu0 0.0
        %2744 = vmatpush.msra.mxu0 0.0
        %2745 = vmatpush.msra.mxu0 0.0
        %2746 = vmatpush.msra.mxu0 0.0
        %2747 = vmatpush.msra.mxu0 0.0
        %2748 = vmatpush.msra.mxu0 0.0
        %2749 = vmatpush.msra.mxu0 0.0
        %2750 = vmatpush.msra.mxu0 0.0
        %2751 = vmatpush.msra.mxu0 %v2712
        %2752 = vmatpush.msra.mxu0 %v2711
        %2753 = vmatmul.f32.gmra.mxu0 %v2714
        %v2754 = vpop.f32.mrf.mxu0
        %v2755 = vadd.f32 0.0, %v2754
        %2756 = vmatmul.f32.gmra.mxu0 %v2717
        %v2757 = vpop.f32.mrf.mxu0
        %v2758 = vadd.f32 0.0, %v2757
        %2759 = vmatmul.f32.gmra.mxu0 %v2720
        %v2760 = vpop.f32.mrf.mxu0
        %v2761 = vadd.f32 0.0, %v2760
        %2762 = vmatmul.f32.gmra.mxu0 %v2723
        %v2763 = vpop.f32.mrf.mxu0
        %v2764 = vadd.f32 0.0, %v2763
        %2765 = vmatmul.f32.gmra.mxu0 %v2726
        %v2766 = vpop.f32.mrf.mxu0
        %v2767 = vadd.f32 0.0, %v2766
        %2768 = vmatmul.f32.gmra.mxu0 %v2729
        %v2769 = vpop.f32.mrf.mxu0
        %v2770 = vadd.f32 0.0, %v2769
        %2771 = vmatmul.f32.gmra.mxu0 %v2732
        %v2772 = vpop.f32.mrf.mxu0
        %v2773 = vadd.f32 0.0, %v2772
        %2774 = vmatmul.f32.gmra.mxu0 %v2735
        %v2775 = vpop.f32.mrf.mxu0
        %v2776 = vadd.f32 0.0, %v2775
        %2777 = vdwg.mxu0
        %v2778 = vadd.f32 %v2694, %v2755
        %v2779 = vadd.f32 %v2695, %v2758
        %v2780 = vadd.f32 %v2696, %v2761
        %v2781 = vadd.f32 %v2697, %v2764
        %v2782 = vadd.f32 %v2698, %v2767
        %v2783 = vadd.f32 %v2699, %v2770
        %v2784 = vadd.f32 %v2700, %v2773
        %v2785 = vadd.f32 %v2701, %v2776
        %v2786 = vsel %vm1219, %v2292, 0.0
        %v2787 = vsel %vm1220, %v2291, 0.0
        %v2788 = vsel %vm1221, %v2290, 0.0
        %v2789 = vsel %vm1222, %v2289, 0.0
        %v2790 = vsel %vm1223, %v2288, 0.0
        %v2791 = vsel %vm1224, %v2287, 0.0
        %v2792 = vsel %vm1225, %v2286, 0.0
        %v2793 = vsel %vm1226, %v2293, 0.0
        %s2794 = scalar_lea.vmem %s4, 96
        %v2795 = vld [vmem:[%s2794] sm:$0xff]
        %v2796 = vld [vmem:[%s2794 + $0x8] sm:$0xff]
        %v2798 = vsel %vm720, %v2786, 0
        %v2801 = vsel %vm720, %v2787, 0
        %v2804 = vsel %vm720, %v2788, 0
        %v2807 = vsel %vm720, %v2789, 0
        %v2810 = vsel %vm720, %v2790, 0
        %v2813 = vsel %vm720, %v2791, 0
        %v2816 = vsel %vm720, %v2792, 0
        %v2819 = vsel %vm720, %v2793, 0
        %2821 = vmatpush.msra.mxu0 0.0
        %2822 = vmatpush.msra.mxu0 0.0
        %2823 = vmatpush.msra.mxu0 0.0
        %2824 = vmatpush.msra.mxu0 0.0
        %2825 = vmatpush.msra.mxu0 0.0
        %2826 = vmatpush.msra.mxu0 0.0
        %2827 = vmatpush.msra.mxu0 0.0
        %2828 = vmatpush.msra.mxu0 0.0
        %2829 = vmatpush.msra.mxu0 0.0
        %2830 = vmatpush.msra.mxu0 0.0
        %2831 = vmatpush.msra.mxu0 0.0
        %2832 = vmatpush.msra.mxu0 0.0
        %2833 = vmatpush.msra.mxu0 0.0
        %2834 = vmatpush.msra.mxu0 0.0
        %2835 = vmatpush.msra.mxu0 %v2796
        %2836 = vmatpush.msra.mxu0 %v2795
        %2837 = vmatmul.f32.gmra.mxu0 %v2798
        %v2838 = vpop.f32.mrf.mxu0
        %v2839 = vadd.f32 0.0, %v2838
        %2840 = vmatmul.f32.gmra.mxu0 %v2801
        %v2841 = vpop.f32.mrf.mxu0
        %v2842 = vadd.f32 0.0, %v2841
        %2843 = vmatmul.f32.gmra.mxu0 %v2804
        %v2844 = vpop.f32.mrf.mxu0
        %v2845 = vadd.f32 0.0, %v2844
        %2846 = vmatmul.f32.gmra.mxu0 %v2807
        %v2847 = vpop.f32.mrf.mxu0
        %v2848 = vadd.f32 0.0, %v2847
        %2849 = vmatmul.f32.gmra.mxu0 %v2810
        %v2850 = vpop.f32.mrf.mxu0
        %v2851 = vadd.f32 0.0, %v2850
        %2852 = vmatmul.f32.gmra.mxu0 %v2813
        %v2853 = vpop.f32.mrf.mxu0
        %v2854 = vadd.f32 0.0, %v2853
        %2855 = vmatmul.f32.gmra.mxu0 %v2816
        %v2856 = vpop.f32.mrf.mxu0
        %v2857 = vadd.f32 0.0, %v2856
        %2858 = vmatmul.f32.gmra.mxu0 %v2819
        %v2859 = vpop.f32.mrf.mxu0
        %v2860 = vadd.f32 0.0, %v2859
        %2861 = vdwg.mxu0
        %v2862 = vadd.f32 %v2778, %v2839
        %v2863 = vadd.f32 %v2779, %v2842
        %v2864 = vadd.f32 %v2780, %v2845
        %v2865 = vadd.f32 %v2781, %v2848
        %v2866 = vadd.f32 %v2782, %v2851
        %v2867 = vadd.f32 %v2783, %v2854
        %v2868 = vadd.f32 %v2784, %v2857
        %v2869 = vadd.f32 %v2785, %v2860
        %v2870 = vsel %vm619, %v2268, 0.0
        %v2871 = vsel %vm620, %v2269, 0.0
        %v2872 = vsel %vm621, %v2270, 0.0
        %v2873 = vsel %vm622, %v2271, 0.0
        %v2874 = vsel %vm623, %v2272, 0.0
        %v2875 = vsel %vm624, %v2273, 0.0
        %v2876 = vsel %vm625, %v2274, 0.0
        %v2877 = vsel %vm626, %v2267, 0.0
        %s2878 = scalar_lea.vmem %s4, 112
        %v2879 = vld [vmem:[%s2878] sm:$0xff]
        %v2880 = vld [vmem:[%s2878 + $0x8] sm:$0xff]
        %v2882 = vsel %vm720, %v2870, 0
        %v2885 = vsel %vm720, %v2871, 0
        %v2888 = vsel %vm720, %v2872, 0
        %v2891 = vsel %vm720, %v2873, 0
        %v2894 = vsel %vm720, %v2874, 0
        %v2897 = vsel %vm720, %v2875, 0
        %v2900 = vsel %vm720, %v2876, 0
        %v2903 = vsel %vm720, %v2877, 0
        %2905 = vmatpush.msra.mxu0 0.0
        %2906 = vmatpush.msra.mxu0 0.0
        %2907 = vmatpush.msra.mxu0 0.0
        %2908 = vmatpush.msra.mxu0 0.0
        %2909 = vmatpush.msra.mxu0 0.0
        %2910 = vmatpush.msra.mxu0 0.0
        %2911 = vmatpush.msra.mxu0 0.0
        %2912 = vmatpush.msra.mxu0 0.0
        %2913 = vmatpush.msra.mxu0 0.0
        %2914 = vmatpush.msra.mxu0 0.0
        %2915 = vmatpush.msra.mxu0 0.0
        %2916 = vmatpush.msra.mxu0 0.0
        %2917 = vmatpush.msra.mxu0 0.0
        %2918 = vmatpush.msra.mxu0 0.0
        %2919 = vmatpush.msra.mxu0 %v2880
        %2920 = vmatpush.msra.mxu0 %v2879
        %2921 = vmatmul.f32.gmra.mxu0 %v2882
        %v2922 = vpop.f32.mrf.mxu0
        %v2923 = vadd.f32 0.0, %v2922
        %2924 = vmatmul.f32.gmra.mxu0 %v2885
        %v2925 = vpop.f32.mrf.mxu0
        %v2926 = vadd.f32 0.0, %v2925
        %2927 = vmatmul.f32.gmra.mxu0 %v2888
        %v2928 = vpop.f32.mrf.mxu0
        %v2929 = vadd.f32 0.0, %v2928
        %2930 = vmatmul.f32.gmra.mxu0 %v2891
        %v2931 = vpop.f32.mrf.mxu0
        %v2932 = vadd.f32 0.0, %v2931
        %2933 = vmatmul.f32.gmra.mxu0 %v2894
        %v2934 = vpop.f32.mrf.mxu0
        %v2935 = vadd.f32 0.0, %v2934
        %2936 = vmatmul.f32.gmra.mxu0 %v2897
        %v2937 = vpop.f32.mrf.mxu0
        %v2938 = vadd.f32 0.0, %v2937
        %2939 = vmatmul.f32.gmra.mxu0 %v2900
        %v2940 = vpop.f32.mrf.mxu0
        %v2941 = vadd.f32 0.0, %v2940
        %2942 = vmatmul.f32.gmra.mxu0 %v2903
        %v2943 = vpop.f32.mrf.mxu0
        %v2944 = vadd.f32 0.0, %v2943
        %2945 = vdwg.mxu0
        %v2946 = vadd.f32 %v2862, %v2923
        %v2947 = vadd.f32 %v2863, %v2926
        %v2948 = vadd.f32 %v2864, %v2929
        %v2949 = vadd.f32 %v2865, %v2932
        %v2950 = vadd.f32 %v2866, %v2935
        %v2951 = vadd.f32 %v2867, %v2938
        %v2952 = vadd.f32 %v2868, %v2941
        %v2953 = vadd.f32 %v2869, %v2944
        %v2954 = vsel %vm1403, %v2531, 0.0
        %v2955 = vsel %vm1404, %v2530, 0.0
        %v2956 = vsel %vm1405, %v2529, 0.0
        %v2957 = vsel %vm1406, %v2528, 0.0
        %v2958 = vsel %vm1407, %v2527, 0.0
        %v2959 = vsel %vm1408, %v2526, 0.0
        %v2960 = vsel %vm1409, %v2533, 0.0
        %v2961 = vsel %vm1410, %v2532, 0.0
        %s2962 = scalar_lea.vmem %s4, 128
        %v2963 = vld [vmem:[%s2962] sm:$0xff]
        %v2964 = vld [vmem:[%s2962 + $0x8] sm:$0xff]
        %v2966 = vsel %vm720, %v2954, 0
        %v2969 = vsel %vm720, %v2955, 0
        %v2972 = vsel %vm720, %v2956, 0
        %v2975 = vsel %vm720, %v2957, 0
        %v2978 = vsel %vm720, %v2958, 0
        %v2981 = vsel %vm720, %v2959, 0
        %v2984 = vsel %vm720, %v2960, 0
        %v2987 = vsel %vm720, %v2961, 0
        %2989 = vmatpush.msra.mxu0 0.0
        %2990 = vmatpush.msra.mxu0 0.0
        %2991 = vmatpush.msra.mxu0 0.0
        %2992 = vmatpush.msra.mxu0 0.0
        %2993 = vmatpush.msra.mxu0 0.0
        %2994 = vmatpush.msra.mxu0 0.0
        %2995 = vmatpush.msra.mxu0 0.0
        %2996 = vmatpush.msra.mxu0 0.0
        %2997 = vmatpush.msra.mxu0 0.0
        %2998 = vmatpush.msra.mxu0 0.0
        %2999 = vmatpush.msra.mxu0 0.0
        %3000 = vmatpush.msra.mxu0 0.0
        %3001 = vmatpush.msra.mxu0 0.0
        %3002 = vmatpush.msra.mxu0 0.0
        %3003 = vmatpush.msra.mxu0 %v2964
        %3004 = vmatpush.msra.mxu0 %v2963
        %3005 = vmatmul.f32.gmra.mxu0 %v2966
        %v3006 = vpop.f32.mrf.mxu0
        %v3007 = vadd.f32 0.0, %v3006
        %3008 = vmatmul.f32.gmra.mxu0 %v2969
        %v3009 = vpop.f32.mrf.mxu0
        %v3010 = vadd.f32 0.0, %v3009
        %3011 = vmatmul.f32.gmra.mxu0 %v2972
        %v3012 = vpop.f32.mrf.mxu0
        %v3013 = vadd.f32 0.0, %v3012
        %3014 = vmatmul.f32.gmra.mxu0 %v2975
        %v3015 = vpop.f32.mrf.mxu0
        %v3016 = vadd.f32 0.0, %v3015
        %3017 = vmatmul.f32.gmra.mxu0 %v2978
        %v3018 = vpop.f32.mrf.mxu0
        %v3019 = vadd.f32 0.0, %v3018
        %3020 = vmatmul.f32.gmra.mxu0 %v2981
        %v3021 = vpop.f32.mrf.mxu0
        %v3022 = vadd.f32 0.0, %v3021
        %3023 = vmatmul.f32.gmra.mxu0 %v2984
        %v3024 = vpop.f32.mrf.mxu0
        %v3025 = vadd.f32 0.0, %v3024
        %3026 = vmatmul.f32.gmra.mxu0 %v2987
        %v3027 = vpop.f32.mrf.mxu0
        %v3028 = vadd.f32 0.0, %v3027
        %3029 = vdwg.mxu0
        %v3030 = vadd.f32 %v2946, %v3007
        %v3031 = vadd.f32 %v2947, %v3010
        %v3032 = vadd.f32 %v2948, %v3013
        %v3033 = vadd.f32 %v2949, %v3016
        %v3034 = vadd.f32 %v2950, %v3019
        %v3035 = vadd.f32 %v2951, %v3022
        %v3036 = vadd.f32 %v2952, %v3025
        %v3037 = vadd.f32 %v2953, %v3028
        %v3038 = vperm.slane %v353, 0
        %v3039 = vmul.f32 %v462, %v3038
        %v3040 = vmul.f32 %v464, %v3038
        %v3041 = vmul.f32 %v467, %v3038
        %v3042 = vmul.f32 %v469, %v3038
        %v3043 = vmul.f32 %v472, %v3038
        %v3044 = vmul.f32 %v474, %v3038
        %v3045 = vmul.f32 %v477, %v3038
        %v3046 = vmul.f32 %v479, %v3038
        %v3047 = vperm.slane %v354, 0
        %v3048 = vmul.f32 %v635, %v3047
        %v3049 = vmul.f32 %v636, %v3047
        %v3050 = vmul.f32 %v637, %v3047
        %v3051 = vmul.f32 %v638, %v3047
        %v3052 = vmul.f32 %v639, %v3047
        %v3053 = vmul.f32 %v640, %v3047
        %v3054 = vmul.f32 %v641, %v3047
        %v3055 = vmul.f32 %v642, %v3047
        %v3056 = vadd.f32 %v3039, %v3048
        %v3057 = vadd.f32 %v3040, %v3049
        %v3058 = vadd.f32 %v3041, %v3050
        %v3059 = vadd.f32 %v3042, %v3051
        %v3060 = vadd.f32 %v3043, %v3052
        %v3061 = vadd.f32 %v3044, %v3053
        %v3062 = vadd.f32 %v3045, %v3054
        %v3063 = vadd.f32 %v3046, %v3055
        %v3064 = vadd.f32 %v3056, %v1487
        %v3065 = vadd.f32 %v3057, %v1488
        %v3066 = vadd.f32 %v3058, %v1489
        %v3067 = vadd.f32 %v3059, %v1490
        %v3068 = vadd.f32 %v3060, %v1491
        %v3069 = vadd.f32 %v3061, %v1492
        %v3070 = vadd.f32 %v3062, %v1493
        %v3071 = vadd.f32 %v3063, %v1494
        %v3072 = vadd.f32 %v3064, %v3030
        %v3073 = vadd.f32 %v3065, %v3031
        %v3074 = vadd.f32 %v3066, %v3032
        %v3075 = vadd.f32 %v3067, %v3033
        %v3076 = vadd.f32 %v3068, %v3034
        %v3077 = vadd.f32 %v3069, %v3035
        %v3078 = vadd.f32 %v3070, %v3036
        %v3079 = vadd.f32 %v3071, %v3037
        %v3080 = vperm.slane %v351, 0
        %v3081 = vadd.f32 %v3072, %v3080
        %v3082 = vadd.f32 %v3073, %v3080
        %v3083 = vadd.f32 %v3074, %v3080
        %v3084 = vadd.f32 %v3075, %v3080
        %v3085 = vadd.f32 %v3076, %v3080
        %v3086 = vadd.f32 %v3077, %v3080
        %v3087 = vadd.f32 %v3078, %v3080
        %v3088 = vadd.f32 %v3079, %v3080
        %3089 = vst [vmem:[%s245] sm:$0xff] %v3081
        %3090 = vst [vmem:[%s245 + $0x8] sm:$0xff] %v3082
        %3091 = vst [vmem:[%s245 + $0x10] sm:$0xff] %v3083
        %3092 = vst [vmem:[%s245 + $0x18] sm:$0xff] %v3084
        %3093 = vst [vmem:[%s245 + $0x20] sm:$0xff] %v3085
        %3094 = vst [vmem:[%s245 + $0x28] sm:$0xff] %v3086
        %3095 = vst [vmem:[%s245 + $0x30] sm:$0xff] %v3087
        %3096 = vst [vmem:[%s245 + $0x38] sm:$0xff] %v3088
        %s3097 = sand.u32 %s159, 1
        %s3098 = scalar_lea.sflag [#allocation3], %s3097
        %s3099 = sand.u32 %s159, 1
        %s3100 = smul.addr %s3099, 64
        %s3101 = scalar_lea.vmem [#allocation2], %s3100
        // Predicated region
        $region45: #{inception_a.1} parent=43 // pred_check
          %p3102 = pneg %p169
        $region46: #{inception_a.1} parent=43 // pred_check_branch
          %3104 = sbr.rel (%p3102) target = $region48
        $region47: #{inception_a.1} parent=43 // pred_region
          %s3105 = smul.u32 8, %s20
          %3107 = vsyncadd %s3098, 0
          %s3108 = smul.addr %s3105, 8
          %s3109 = scalar_lea.hbm %s6, %s3108
          %s3110 = sshll.u32 %s3101, 4
          %s3111 = int_to_ptr.vmem [resolvable:$true] %s3110
          %s3112 = sshll.u32 %s3109, 4
          %s3113 = int_to_ptr.hbm [resolvable:$true] %s3112
          %3118 = dma.vmem_to_hbm [thread:$0]  %s3111, 1024, %s3113, %s3098, 128, 128, 8
        $region48: #{inception_a.1} parent=43 // pred_fallthru
          _
      $region44: #{inception_a.1} parent=5 // pred_fallthru
        _
      %p3119 = scmp.le.s32.totalorder 2, %s15
      // Predicated region
      $region49: #{inception_a.1} parent=5 // pred_check
        %p3120 = pneg %p3119
      $region50: #{inception_a.1} parent=5 // pred_check_branch
        %3122 = sbr.rel (%p3120) target = $region52
      $region51: #{inception_a.1} parent=5 // pred_region
        %s3123 = ssub.s32 %s15, 2
        // Predicated region
        $region53: #{inception_a.1} parent=51 // pred_check
          %p3124 = pneg %p175
        $region54: #{inception_a.1} parent=51 // pred_check_branch
          %3126 = sbr.rel (%p3124) target = $region56
        $region55: #{inception_a.1} parent=51 // pred_region
          %s3127 = sand.u32 %s160, 1
          %s3128 = scalar_lea.sflag [#allocation3], %s3127
          %s3129 = sand.u32 %s160, 1
          %s3130 = smul.addr %s3129, 64
          %s3131 = scalar_lea.vmem [#allocation2], %s3130
          %3133 = dma.done %s3128, 1024
        $region56: #{inception_a.1} parent=51 // pred_fallthru
          _
      $region52: #{inception_a.1} parent=5 // pred_fallthru
        _
    $region6: #{inception_a.1} parent=1 // loop_footer
      %s19 = sadd.s32 1, %s15
    $region7: #{inception_a.1} parent=1 // loop_footer_branch
      %14 = sbr.rel target = $region3
    $region8: #{inception_a.1} parent=1 // loop_exit
      _
    %3134 = vsyncpa [#allocation3], 1
    %s3135 = scalar_lea.sflag [#allocation3], 1
    %3136 = vsyncpa %s3135, 1

</llo_original>
